<compile_context>
chip_gen: v7x
topology: tpu7x:2x2x1
jax: 0.10.0
libtpu: 0.0.40
codegen_flags: <defaults>
</compile_context>

<pallas_src>
import functools
import math

import jax
import jax.numpy as jnp
from jax import lax
from jax.experimental import pallas as pl
from jax.experimental.pallas import tpu as pltpu

SQRT2 = 1.4142135623730951
_BF16 = jnp.bfloat16


def _round_up(n, m):
    return ((n + m - 1) // m) * m


def _lstm_kernel(T, Bp, F, H, L,
                 x_ref, wih_ref, whh_ref, b_ref, fcw_ref, fcb_ref,
                 out_ref, seq_ref, xg_ref):
    # x_ref:    (T*Bp, F)   padded input sequence, f32, in HBM (pl.ANY)
    # wih_ref:  (L, F, 4H)  stacked W_ih^T (feature rows zero-padded), bf16, VMEM
    # whh_ref:  (L, H, 4H)  stacked W_hh^T, bf16, VMEM
    # b_ref:    (L, 1, 4H)  combined bias (b_ih + b_hh), f32, VMEM
    # fcw_ref:  (H, Ep)     fc weight^T, lane-padded, bf16, VMEM
    # fcb_ref:  (1, Ep)     fc bias, lane-padded, f32, VMEM
    # out_ref:  (Bp, Ep)    f32, VMEM
    # seq_ref:  (T*Bp, F)   f32 scratch: current layer's input sequence
    # xg_ref:   (T*Bp, 4H)  f32 scratch: precomputed input->gates, all timesteps
    G = 4 * H

    # Bring the input sequence into VMEM once via DMA (off the compute slots).
    pltpu.sync_copy(x_ref, seq_ref)

    def run_layer(l, store_seq):
        w_ih = wih_ref[l]          # (F, 4H) bf16, static layer index
        w_hh = whh_ref[l]          # (H, 4H) bf16
        bias = b_ref[l]            # (1, 4H) f32

        # One batched input->gates matmul for ALL timesteps, bias folded in once.
        xg_ref[...] = (
            jnp.dot(seq_ref[...].astype(_BF16), w_ih,
                    preferred_element_type=jnp.float32)
            + bias
        )

        def step(t, carry):
            h, c = carry
            row = pl.multiple_of(t * Bp, 8)
            gates = xg_ref[pl.ds(row, Bp), :] + jnp.dot(
                h.astype(_BF16), w_hh, preferred_element_type=jnp.float32)

            # Whole-vreg activations (2 EUP pushes over the full 4H-lane tile),
            # then cheap static lane slices for the gate combine.  For H < 128
            # the slices cost a few XLU cycles — acceptable (XLU slot has slack).
            sig = jax.nn.sigmoid(gates)
            tnh = jnp.tanh(gates)
            c_new = sig[:, H:2 * H] * c + sig[:, 0:H] * tnh[:, 2 * H:3 * H]
            h_new = sig[:, 3 * H:4 * H] * jnp.tanh(c_new)

            if store_seq:
                # Only columns 0:H are written; stale columns H:F (if E > H)
                # are nullified by the zero-padded W_ih rows of layers >= 1.
                seq_ref[pl.ds(row, Bp), 0:H] = h_new

            return h_new, c_new

        h0 = jnp.zeros((Bp, H), jnp.float32)
        c0 = jnp.zeros((Bp, H), jnp.float32)
        # T=8: full unroll is appropriate (serially dependent recurrence).
        return lax.fori_loop(0, T, step, (h0, c0), unroll=True)

    # Intermediate layers store their output sequence; the last one does not.
    for l in range(L - 1):
        run_layer(l, store_seq=True)
    h_last, _ = run_layer(L - 1, store_seq=False)

    # Exact (erf) GELU on h_{T-1}, then the Linear.  Lane-dense (Bp, Ep=128)
    # store -> unmasked vst.
    g = 0.5 * h_last * (1.0 + lax.erf(h_last / SQRT2))
    out_ref[...] = (
        jnp.dot(g.astype(_BF16), fcw_ref[...],
                preferred_element_type=jnp.float32)
        + fcb_ref[...]
    )


def lstm_forward(x, params):
    """x: (T, B, E) float32.  Returns (B, E) float32."""
    wih0, wih_rest, whh, b, fcw, fcb = params
    T, B, E = x.shape
    L, H = whh.shape[0], whh.shape[1]
    G = 4 * H
    F = max(E, H)                 # common contraction width for all layers
    Bp = _round_up(B, 8)          # sublane granule
    Ep = _round_up(E, 128)        # lane-dense fc output

    # Stack per-layer W_ih^T into one (L, F, G) tensor (zero-padded feature
    # rows for layers >= 1); cast matmul weights to bf16.
    wih_full = jnp.zeros((L, F, G), jnp.float32)
    wih_full = wih_full.at[0, :E, :].set(wih0)
    if L > 1:
        wih_full = wih_full.at[1:, :H, :].set(wih_rest)
    wih_bf = wih_full.astype(_BF16)
    whh_bf = whh.astype(_BF16)

    # Pad the input: batch -> Bp, features -> F, flatten time*batch for 2D dots.
    x_p = jnp.zeros((T, Bp, F), jnp.float32).at[:, :B, :E].set(x)
    x_p = x_p.reshape(T * Bp, F)
    fcw_p = jnp.zeros((H, Ep), _BF16).at[:, :E].set(fcw.astype(_BF16))
    fcb_p = jnp.zeros((1, Ep), jnp.float32).at[:, :E].set(fcb)

    kernel = functools.partial(_lstm_kernel, T, Bp, F, H, L)

    vmem = pltpu.MemorySpace.VMEM
    out_p = pl.pallas_call(
        kernel,
        out_shape=jax.ShapeDtypeStruct((Bp, Ep), jnp.float32),
        in_specs=[
            pl.BlockSpec(memory_space=pl.ANY),     # x stays in HBM, DMA'd once
            pl.BlockSpec(memory_space=vmem),       # stacked W_ih (L, F, G)
            pl.BlockSpec(memory_space=vmem),       # stacked W_hh (L, H, G)
            pl.BlockSpec(memory_space=vmem),       # stacked bias (L, 1, G)
            pl.BlockSpec(memory_space=vmem),       # fc weight (H, Ep)
            pl.BlockSpec(memory_space=vmem),       # fc bias   (1, Ep)
        ],
        out_specs=pl.BlockSpec(memory_space=vmem),
        scratch_shapes=[
            pltpu.VMEM((T * Bp, F), jnp.float32),  # inter-layer sequence
            pltpu.VMEM((T * Bp, G), jnp.float32),  # precomputed input->gates
        ],
    )(x_p, wih_bf, whh_bf, b, fcw_p, fcb_p)

    return out_p[:B, :E]


def make_params(key, embedding_dim, hidden_size, num_layers):
    """Deterministic parameter init (uniform, PyTorch-like scale), kernel layout."""
    E, H, L = embedding_dim, hidden_size, num_layers
    scale = 1.0 / math.sqrt(H)
    ks = jax.random.split(key, 7)
    u = lambda k, shp: jax.random.uniform(k, shp, jnp.float32, -scale, scale)

    wih0 = u(ks[0], (E, 4 * H))                  # layer 0: W_ih^T
    wih_rest = u(ks[1], (L - 1, H, 4 * H))       # layers 1..L-1: W_ih^T
    whh = u(ks[2], (L, H, 4 * H))                # all layers: W_hh^T
    b = u(ks[3], (L, 1, 4 * H)) + u(ks[4], (L, 1, 4 * H))   # b_ih + b_hh
    fcw = u(ks[5], (H, E))                       # fc weight^T
    fcb = u(ks[6], (1, E))                       # fc bias
    return (wih0, wih_rest, whh, b, fcw, fcb)


def reference_forward(x, params):
    """Pure-JAX reference with the same numerics (bf16 weights, f32 accum/state)."""
    wih0, wih_rest, whh, b, fcw, fcb = params
    T, B, E = x.shape
    L, H = whh.shape[0], whh.shape[1]
    seq = x
    h = None
    for l in range(L):
        w_ih = (wih0 if l == 0 else wih_rest[l - 1]).astype(_BF16)
        w_hh = whh[l].astype(_BF16)
        bias = b[l]
        h = jnp.zeros((B, H), jnp.float32)
        c = jnp.zeros((B, H), jnp.float32)
        outs = []
        for t in range(T):
            gates = (
                jnp.dot(seq[t].astype(_BF16), w_ih,
                        preferred_element_type=jnp.float32)
                + jnp.dot(h.astype(_BF16), w_hh,
                          preferred_element_type=jnp.float32)
                + bias
            )
            i_g = jax.nn.sigmoid(gates[:, 0 * H:1 * H])
            f_g = jax.nn.sigmoid(gates[:, 1 * H:2 * H])
            g_g = jnp.tanh(gates[:, 2 * H:3 * H])
            o_g = jax.nn.sigmoid(gates[:, 3 * H:4 * H])
            c = f_g * c + i_g * g_g
            h = o_g * jnp.tanh(c)
            outs.append(h)
        seq = jnp.stack(outs)
    last = h
    gelu = 0.5 * last * (1.0 + lax.erf(last / SQRT2))
    return (jnp.dot(gelu.astype(_BF16), fcw.astype(_BF16),
                    preferred_element_type=jnp.float32) + fcb)


if __name__ == "__main__":
    T, B, E, H, L = 8, 4, 32, 32, 5

    key = jax.random.PRNGKey(0)
    kx, kp = jax.random.split(key)
    x = jax.random.normal(kx, (T, B, E), jnp.float32)
    params = make_params(kp, E, H, L)

    out = jax.jit(lstm_forward)(x, params)
    jax.block_until_ready(out)

    ref = reference_forward(x, params)
    assert out.shape == (B, E)
    # bf16 weights -> loosen tolerance vs an f32-exact check.
    assert jnp.allclose(out, ref, atol=1e-2, rtol=1e-2), "mismatch vs reference"

    print("KERNEL_OK")
</pallas_src>

<mosaic_0001>
module attributes {stable_mosaic.version = 11 : i64} {
  func.func @_lstm_kernel(%arg0: memref<64x32xf32, #tpu.memory_space<any>>, %arg1: memref<5x32x128xbf16, #tpu.memory_space<vmem>>, %arg2: memref<5x32x128xbf16, #tpu.memory_space<vmem>>, %arg3: memref<5x1x128xf32, #tpu.memory_space<vmem>>, %arg4: memref<32x128xbf16, #tpu.memory_space<vmem>>, %arg5: memref<1x128xf32, #tpu.memory_space<vmem>>, %arg6: memref<8x128xf32, #tpu.memory_space<vmem>>, %arg7: memref<64x32xf32, #tpu.memory_space<vmem>>, %arg8: memref<64x128xf32, #tpu.memory_space<vmem>>) attributes {dimension_semantics = [], scalar_prefetch = 0 : i64, scratch_operands = 2 : i64, tpu.core_type = #tpu.core_type<tc>} {
    "tpu.region"() ({
      %1029 = tpu.sem_alloc : memref<!tpu.dma_semaphore, #tpu.memory_space<semaphore_mem>>
      tpu.enqueue_dma source(%arg0 : memref<64x32xf32, #tpu.memory_space<any>>) target(%arg7 : memref<64x32xf32, #tpu.memory_space<vmem>>) target_semaphore(%1029 : memref<!tpu.dma_semaphore, #tpu.memory_space<semaphore_mem>>)
      tpu.wait_dma2 semaphore(%1029 : memref<!tpu.dma_semaphore, #tpu.memory_space<semaphore_mem>>) src(%arg0 : memref<64x32xf32, #tpu.memory_space<any>>) dst(%arg7 : memref<64x32xf32, #tpu.memory_space<vmem>>)
      tpu.yield
    }) : () -> ()
    %c0 = arith.constant 0 : index
    %c0_0 = arith.constant 0 : index
    %c0_1 = arith.constant 0 : index
    %0 = vector.load %arg1[%c0, %c0_0, %c0_1] : memref<5x32x128xbf16, #tpu.memory_space<vmem>>, vector<1x32x128xbf16>
    %1 = vector.shape_cast %0 : vector<1x32x128xbf16> to vector<32x128xbf16>
    %c0_2 = arith.constant 0 : index
    %c0_3 = arith.constant 0 : index
    %c0_4 = arith.constant 0 : index
    %2 = vector.load %arg2[%c0_2, %c0_3, %c0_4] : memref<5x32x128xbf16, #tpu.memory_space<vmem>>, vector<1x32x128xbf16>
    %3 = vector.shape_cast %2 : vector<1x32x128xbf16> to vector<32x128xbf16>
    %c0_5 = arith.constant 0 : index
    %c0_6 = arith.constant 0 : index
    %c0_7 = arith.constant 0 : index
    %4 = vector.load %arg3[%c0_5, %c0_6, %c0_7] : memref<5x1x128xf32, #tpu.memory_space<vmem>>, vector<1x1x128xf32>
    %5 = vector.shape_cast %4 : vector<1x1x128xf32> to vector<1x128xf32>
    %c0_8 = arith.constant 0 : index
    %c0_9 = arith.constant 0 : index
    %6 = vector.load %arg7[%c0_8, %c0_9] : memref<64x32xf32, #tpu.memory_space<vmem>>, vector<64x32xf32>
    %7 = arith.truncf %6 : vector<64x32xf32> to vector<64x32xbf16>
    %cst = arith.constant dense<0.000000e+00> : vector<64x128xf32>
    %8 = tpu.matmul %7, %1, %cst {dimension_numbers = #tpu.dot_dimension_numbers<[1], [0], [0], [1], [0, 0, 1, 1], [], []>} : vector<64x32xbf16>, vector<32x128xbf16>, vector<64x128xf32> -> vector<64x128xf32>
    %9 = vector.broadcast %5 : vector<1x128xf32> to vector<64x128xf32>
    %10 = arith.addf %8, %9 : vector<64x128xf32>
    %c0_10 = arith.constant 0 : index
    %c0_11 = arith.constant 0 : index
    %11 = vector.load %arg8[%c0_10, %c0_11] : memref<64x128xf32, #tpu.memory_space<vmem>>, vector<64x128xf32>
    tpu.vector_store %arg8[%c0_10, %c0_11], %10 {strides = array<i32>} : memref<64x128xf32, #tpu.memory_space<vmem>>, vector<64x128xf32>,
    %cst_12 = arith.constant 0.000000e+00 : f32
    %12 = vector.broadcast %cst_12 : f32 to vector<8x32xf32>
    %cst_13 = arith.constant 0.000000e+00 : f32
    %13 = vector.broadcast %cst_13 : f32 to vector<8x32xf32>
    %c0_i32 = arith.constant 0 : i32
    %c8_i32 = arith.constant 8 : i32
    %14 = arith.muli %c0_i32, %c8_i32 : i32
    %15 = tpu.assume_multiple %14, 8 : i32
    %16 = arith.index_cast %15 : i32 to index
    %c0_14 = arith.constant 0 : index
    %17 = vector.load %arg8[%16, %c0_14] : memref<64x128xf32, #tpu.memory_space<vmem>>, vector<8x128xf32>
    %18 = arith.truncf %12 : vector<8x32xf32> to vector<8x32xbf16>
    %cst_15 = arith.constant dense<0.000000e+00> : vector<8x128xf32>
    %19 = tpu.matmul %18, %3, %cst_15 {dimension_numbers = #tpu.dot_dimension_numbers<[1], [0], [0], [1], [0, 0, 1, 1], [], []>} : vector<8x32xbf16>, vector<32x128xbf16>, vector<8x128xf32> -> vector<8x128xf32>
    %20 = arith.addf %17, %19 : vector<8x128xf32>
    %21 = arith.negf %20 : vector<8x128xf32>
    %22 = math.exp %21 : vector<8x128xf32>
    %cst_16 = arith.constant 1.000000e+00 : f32
    %23 = vector.broadcast %cst_16 : f32 to vector<8x128xf32>
    %24 = arith.addf %23, %22 : vector<8x128xf32>
    %25 = arith.divf %23, %24 : vector<8x128xf32>
    %26 = math.tanh %20 : vector<8x128xf32>
    %27 = vector.extract_strided_slice %25 {offsets = [0, 32], sizes = [8, 32], strides = [1, 1]} : vector<8x128xf32> to vector<8x32xf32>
    %28 = arith.mulf %27, %13 : vector<8x32xf32>
    %29 = vector.extract_strided_slice %25 {offsets = [0, 0], sizes = [8, 32], strides = [1, 1]} : vector<8x128xf32> to vector<8x32xf32>
    %30 = vector.extract_strided_slice %26 {offsets = [0, 64], sizes = [8, 32], strides = [1, 1]} : vector<8x128xf32> to vector<8x32xf32>
    %31 = arith.mulf %29, %30 : vector<8x32xf32>
    %32 = arith.addf %28, %31 : vector<8x32xf32>
    %33 = vector.extract_strided_slice %25 {offsets = [0, 96], sizes = [8, 32], strides = [1, 1]} : vector<8x128xf32> to vector<8x32xf32>
    %34 = math.tanh %32 : vector<8x32xf32>
    %35 = arith.mulf %33, %34 : vector<8x32xf32>
    %36 = arith.index_cast %15 : i32 to index
    %c0_17 = arith.constant 0 : index
    %37 = vector.load %arg7[%36, %c0_17] : memref<64x32xf32, #tpu.memory_space<vmem>>, vector<8x32xf32>
    tpu.vector_store %arg7[%36, %c0_17], %35 {strides = array<i32>} : memref<64x32xf32, #tpu.memory_space<vmem>>, vector<8x32xf32>,
    %c1_i32 = arith.constant 1 : i32
    %c8_i32_18 = arith.constant 8 : i32
    %38 = arith.muli %c1_i32, %c8_i32_18 : i32
    %39 = tpu.assume_multiple %38, 8 : i32
    %40 = arith.index_cast %39 : i32 to index
    %c0_19 = arith.constant 0 : index
    %41 = vector.load %arg8[%40, %c0_19] : memref<64x128xf32, #tpu.memory_space<vmem>>, vector<8x128xf32>
    %42 = arith.truncf %35 : vector<8x32xf32> to vector<8x32xbf16>
    %cst_20 = arith.constant dense<0.000000e+00> : vector<8x128xf32>
    %43 = tpu.matmul %42, %3, %cst_20 {dimension_numbers = #tpu.dot_dimension_numbers<[1], [0], [0], [1], [0, 0, 1, 1], [], []>} : vector<8x32xbf16>, vector<32x128xbf16>, vector<8x128xf32> -> vector<8x128xf32>
    %44 = arith.addf %41, %43 : vector<8x128xf32>
    %45 = arith.negf %44 : vector<8x128xf32>
    %46 = math.exp %45 : vector<8x128xf32>
    %cst_21 = arith.constant 1.000000e+00 : f32
    %47 = vector.broadcast %cst_21 : f32 to vector<8x128xf32>
    %48 = arith.addf %47, %46 : vector<8x128xf32>
    %49 = arith.divf %47, %48 : vector<8x128xf32>
    %50 = math.tanh %44 : vector<8x128xf32>
    %51 = vector.extract_strided_slice %49 {offsets = [0, 32], sizes = [8, 32], strides = [1, 1]} : vector<8x128xf32> to vector<8x32xf32>
    %52 = arith.mulf %51, %32 : vector<8x32xf32>
    %53 = vector.extract_strided_slice %49 {offsets = [0, 0], sizes = [8, 32], strides = [1, 1]} : vector<8x128xf32> to vector<8x32xf32>
    %54 = vector.extract_strided_slice %50 {offsets = [0, 64], sizes = [8, 32], strides = [1, 1]} : vector<8x128xf32> to vector<8x32xf32>
    %55 = arith.mulf %53, %54 : vector<8x32xf32>
    %56 = arith.addf %52, %55 : vector<8x32xf32>
    %57 = vector.extract_strided_slice %49 {offsets = [0, 96], sizes = [8, 32], strides = [1, 1]} : vector<8x128xf32> to vector<8x32xf32>
    %58 = math.tanh %56 : vector<8x32xf32>
    %59 = arith.mulf %57, %58 : vector<8x32xf32>
    %60 = arith.index_cast %39 : i32 to index
    %c0_22 = arith.constant 0 : index
    %61 = vector.load %arg7[%60, %c0_22] : memref<64x32xf32, #tpu.memory_space<vmem>>, vector<8x32xf32>
    tpu.vector_store %arg7[%60, %c0_22], %59 {strides = array<i32>} : memref<64x32xf32, #tpu.memory_space<vmem>>, vector<8x32xf32>,
    %c2_i32 = arith.constant 2 : i32
    %c8_i32_23 = arith.constant 8 : i32
    %62 = arith.muli %c2_i32, %c8_i32_23 : i32
    %63 = tpu.assume_multiple %62, 8 : i32
    %64 = arith.index_cast %63 : i32 to index
    %c0_24 = arith.constant 0 : index
    %65 = vector.load %arg8[%64, %c0_24] : memref<64x128xf32, #tpu.memory_space<vmem>>, vector<8x128xf32>
    %66 = arith.truncf %59 : vector<8x32xf32> to vector<8x32xbf16>
    %cst_25 = arith.constant dense<0.000000e+00> : vector<8x128xf32>
    %67 = tpu.matmul %66, %3, %cst_25 {dimension_numbers = #tpu.dot_dimension_numbers<[1], [0], [0], [1], [0, 0, 1, 1], [], []>} : vector<8x32xbf16>, vector<32x128xbf16>, vector<8x128xf32> -> vector<8x128xf32>
    %68 = arith.addf %65, %67 : vector<8x128xf32>
    %69 = arith.negf %68 : vector<8x128xf32>
    %70 = math.exp %69 : vector<8x128xf32>
    %cst_26 = arith.constant 1.000000e+00 : f32
    %71 = vector.broadcast %cst_26 : f32 to vector<8x128xf32>
    %72 = arith.addf %71, %70 : vector<8x128xf32>
    %73 = arith.divf %71, %72 : vector<8x128xf32>
    %74 = math.tanh %68 : vector<8x128xf32>
    %75 = vector.extract_strided_slice %73 {offsets = [0, 32], sizes = [8, 32], strides = [1, 1]} : vector<8x128xf32> to vector<8x32xf32>
    %76 = arith.mulf %75, %56 : vector<8x32xf32>
    %77 = vector.extract_strided_slice %73 {offsets = [0, 0], sizes = [8, 32], strides = [1, 1]} : vector<8x128xf32> to vector<8x32xf32>
    %78 = vector.extract_strided_slice %74 {offsets = [0, 64], sizes = [8, 32], strides = [1, 1]} : vector<8x128xf32> to vector<8x32xf32>
    %79 = arith.mulf %77, %78 : vector<8x32xf32>
    %80 = arith.addf %76, %79 : vector<8x32xf32>
    %81 = vector.extract_strided_slice %73 {offsets = [0, 96], sizes = [8, 32], strides = [1, 1]} : vector<8x128xf32> to vector<8x32xf32>
    %82 = math.tanh %80 : vector<8x32xf32>
    %83 = arith.mulf %81, %82 : vector<8x32xf32>
    %84 = arith.index_cast %63 : i32 to index
    %c0_27 = arith.constant 0 : index
    %85 = vector.load %arg7[%84, %c0_27] : memref<64x32xf32, #tpu.memory_space<vmem>>, vector<8x32xf32>
    tpu.vector_store %arg7[%84, %c0_27], %83 {strides = array<i32>} : memref<64x32xf32, #tpu.memory_space<vmem>>, vector<8x32xf32>,
    %c3_i32 = arith.constant 3 : i32
    %c8_i32_28 = arith.constant 8 : i32
    %86 = arith.muli %c3_i32, %c8_i32_28 : i32
    %87 = tpu.assume_multiple %86, 8 : i32
    %88 = arith.index_cast %87 : i32 to index
    %c0_29 = arith.constant 0 : index
    %89 = vector.load %arg8[%88, %c0_29] : memref<64x128xf32, #tpu.memory_space<vmem>>, vector<8x128xf32>
    %90 = arith.truncf %83 : vector<8x32xf32> to vector<8x32xbf16>
    %cst_30 = arith.constant dense<0.000000e+00> : vector<8x128xf32>
    %91 = tpu.matmul %90, %3, %cst_30 {dimension_numbers = #tpu.dot_dimension_numbers<[1], [0], [0], [1], [0, 0, 1, 1], [], []>} : vector<8x32xbf16>, vector<32x128xbf16>, vector<8x128xf32> -> vector<8x128xf32>
    %92 = arith.addf %89, %91 : vector<8x128xf32>
    %93 = arith.negf %92 : vector<8x128xf32>
    %94 = math.exp %93 : vector<8x128xf32>
    %cst_31 = arith.constant 1.000000e+00 : f32
    %95 = vector.broadcast %cst_31 : f32 to vector<8x128xf32>
    %96 = arith.addf %95, %94 : vector<8x128xf32>
    %97 = arith.divf %95, %96 : vector<8x128xf32>
    %98 = math.tanh %92 : vector<8x128xf32>
    %99 = vector.extract_strided_slice %97 {offsets = [0, 32], sizes = [8, 32], strides = [1, 1]} : vector<8x128xf32> to vector<8x32xf32>
    %100 = arith.mulf %99, %80 : vector<8x32xf32>
    %101 = vector.extract_strided_slice %97 {offsets = [0, 0], sizes = [8, 32], strides = [1, 1]} : vector<8x128xf32> to vector<8x32xf32>
    %102 = vector.extract_strided_slice %98 {offsets = [0, 64], sizes = [8, 32], strides = [1, 1]} : vector<8x128xf32> to vector<8x32xf32>
    %103 = arith.mulf %101, %102 : vector<8x32xf32>
    %104 = arith.addf %100, %103 : vector<8x32xf32>
    %105 = vector.extract_strided_slice %97 {offsets = [0, 96], sizes = [8, 32], strides = [1, 1]} : vector<8x128xf32> to vector<8x32xf32>
    %106 = math.tanh %104 : vector<8x32xf32>
    %107 = arith.mulf %105, %106 : vector<8x32xf32>
    %108 = arith.index_cast %87 : i32 to index
    %c0_32 = arith.constant 0 : index
    %109 = vector.load %arg7[%108, %c0_32] : memref<64x32xf32, #tpu.memory_space<vmem>>, vector<8x32xf32>
    tpu.vector_store %arg7[%108, %c0_32], %107 {strides = array<i32>} : memref<64x32xf32, #tpu.memory_space<vmem>>, vector<8x32xf32>,
    %c4_i32 = arith.constant 4 : i32
    %c8_i32_33 = arith.constant 8 : i32
    %110 = arith.muli %c4_i32, %c8_i32_33 : i32
    %111 = tpu.assume_multiple %110, 8 : i32
    %112 = arith.index_cast %111 : i32 to index
    %c0_34 = arith.constant 0 : index
    %113 = vector.load %arg8[%112, %c0_34] : memref<64x128xf32, #tpu.memory_space<vmem>>, vector<8x128xf32>
    %114 = arith.truncf %107 : vector<8x32xf32> to vector<8x32xbf16>
    %cst_35 = arith.constant dense<0.000000e+00> : vector<8x128xf32>
    %115 = tpu.matmul %114, %3, %cst_35 {dimension_numbers = #tpu.dot_dimension_numbers<[1], [0], [0], [1], [0, 0, 1, 1], [], []>} : vector<8x32xbf16>, vector<32x128xbf16>, vector<8x128xf32> -> vector<8x128xf32>
    %116 = arith.addf %113, %115 : vector<8x128xf32>
    %117 = arith.negf %116 : vector<8x128xf32>
    %118 = math.exp %117 : vector<8x128xf32>
    %cst_36 = arith.constant 1.000000e+00 : f32
    %119 = vector.broadcast %cst_36 : f32 to vector<8x128xf32>
    %120 = arith.addf %119, %118 : vector<8x128xf32>
    %121 = arith.divf %119, %120 : vector<8x128xf32>
    %122 = math.tanh %116 : vector<8x128xf32>
    %123 = vector.extract_strided_slice %121 {offsets = [0, 32], sizes = [8, 32], strides = [1, 1]} : vector<8x128xf32> to vector<8x32xf32>
    %124 = arith.mulf %123, %104 : vector<8x32xf32>
    %125 = vector.extract_strided_slice %121 {offsets = [0, 0], sizes = [8, 32], strides = [1, 1]} : vector<8x128xf32> to vector<8x32xf32>
    %126 = vector.extract_strided_slice %122 {offsets = [0, 64], sizes = [8, 32], strides = [1, 1]} : vector<8x128xf32> to vector<8x32xf32>
    %127 = arith.mulf %125, %126 : vector<8x32xf32>
    %128 = arith.addf %124, %127 : vector<8x32xf32>
    %129 = vector.extract_strided_slice %121 {offsets = [0, 96], sizes = [8, 32], strides = [1, 1]} : vector<8x128xf32> to vector<8x32xf32>
    %130 = math.tanh %128 : vector<8x32xf32>
    %131 = arith.mulf %129, %130 : vector<8x32xf32>
    %132 = arith.index_cast %111 : i32 to index
    %c0_37 = arith.constant 0 : index
    %133 = vector.load %arg7[%132, %c0_37] : memref<64x32xf32, #tpu.memory_space<vmem>>, vector<8x32xf32>
    tpu.vector_store %arg7[%132, %c0_37], %131 {strides = array<i32>} : memref<64x32xf32, #tpu.memory_space<vmem>>, vector<8x32xf32>,
    %c5_i32 = arith.constant 5 : i32
    %c8_i32_38 = arith.constant 8 : i32
    %134 = arith.muli %c5_i32, %c8_i32_38 : i32
    %135 = tpu.assume_multiple %134, 8 : i32
    %136 = arith.index_cast %135 : i32 to index
    %c0_39 = arith.constant 0 : index
    %137 = vector.load %arg8[%136, %c0_39] : memref<64x128xf32, #tpu.memory_space<vmem>>, vector<8x128xf32>
    %138 = arith.truncf %131 : vector<8x32xf32> to vector<8x32xbf16>
    %cst_40 = arith.constant dense<0.000000e+00> : vector<8x128xf32>
    %139 = tpu.matmul %138, %3, %cst_40 {dimension_numbers = #tpu.dot_dimension_numbers<[1], [0], [0], [1], [0, 0, 1, 1], [], []>} : vector<8x32xbf16>, vector<32x128xbf16>, vector<8x128xf32> -> vector<8x128xf32>
    %140 = arith.addf %137, %139 : vector<8x128xf32>
    %141 = arith.negf %140 : vector<8x128xf32>
    %142 = math.exp %141 : vector<8x128xf32>
    %cst_41 = arith.constant 1.000000e+00 : f32
    %143 = vector.broadcast %cst_41 : f32 to vector<8x128xf32>
    %144 = arith.addf %143, %142 : vector<8x128xf32>
    %145 = arith.divf %143, %144 : vector<8x128xf32>
    %146 = math.tanh %140 : vector<8x128xf32>
    %147 = vector.extract_strided_slice %145 {offsets = [0, 32], sizes = [8, 32], strides = [1, 1]} : vector<8x128xf32> to vector<8x32xf32>
    %148 = arith.mulf %147, %128 : vector<8x32xf32>
    %149 = vector.extract_strided_slice %145 {offsets = [0, 0], sizes = [8, 32], strides = [1, 1]} : vector<8x128xf32> to vector<8x32xf32>
    %150 = vector.extract_strided_slice %146 {offsets = [0, 64], sizes = [8, 32], strides = [1, 1]} : vector<8x128xf32> to vector<8x32xf32>
    %151 = arith.mulf %149, %150 : vector<8x32xf32>
    %152 = arith.addf %148, %151 : vector<8x32xf32>
    %153 = vector.extract_strided_slice %145 {offsets = [0, 96], sizes = [8, 32], strides = [1, 1]} : vector<8x128xf32> to vector<8x32xf32>
    %154 = math.tanh %152 : vector<8x32xf32>
    %155 = arith.mulf %153, %154 : vector<8x32xf32>
    %156 = arith.index_cast %135 : i32 to index
    %c0_42 = arith.constant 0 : index
    %157 = vector.load %arg7[%156, %c0_42] : memref<64x32xf32, #tpu.memory_space<vmem>>, vector<8x32xf32>
    tpu.vector_store %arg7[%156, %c0_42], %155 {strides = array<i32>} : memref<64x32xf32, #tpu.memory_space<vmem>>, vector<8x32xf32>,
    %c6_i32 = arith.constant 6 : i32
    %c8_i32_43 = arith.constant 8 : i32
    %158 = arith.muli %c6_i32, %c8_i32_43 : i32
    %159 = tpu.assume_multiple %158, 8 : i32
    %160 = arith.index_cast %159 : i32 to index
    %c0_44 = arith.constant 0 : index
    %161 = vector.load %arg8[%160, %c0_44] : memref<64x128xf32, #tpu.memory_space<vmem>>, vector<8x128xf32>
    %162 = arith.truncf %155 : vector<8x32xf32> to vector<8x32xbf16>
    %cst_45 = arith.constant dense<0.000000e+00> : vector<8x128xf32>
    %163 = tpu.matmul %162, %3, %cst_45 {dimension_numbers = #tpu.dot_dimension_numbers<[1], [0], [0], [1], [0, 0, 1, 1], [], []>} : vector<8x32xbf16>, vector<32x128xbf16>, vector<8x128xf32> -> vector<8x128xf32>
    %164 = arith.addf %161, %163 : vector<8x128xf32>
    %165 = arith.negf %164 : vector<8x128xf32>
    %166 = math.exp %165 : vector<8x128xf32>
    %cst_46 = arith.constant 1.000000e+00 : f32
    %167 = vector.broadcast %cst_46 : f32 to vector<8x128xf32>
    %168 = arith.addf %167, %166 : vector<8x128xf32>
    %169 = arith.divf %167, %168 : vector<8x128xf32>
    %170 = math.tanh %164 : vector<8x128xf32>
    %171 = vector.extract_strided_slice %169 {offsets = [0, 32], sizes = [8, 32], strides = [1, 1]} : vector<8x128xf32> to vector<8x32xf32>
    %172 = arith.mulf %171, %152 : vector<8x32xf32>
    %173 = vector.extract_strided_slice %169 {offsets = [0, 0], sizes = [8, 32], strides = [1, 1]} : vector<8x128xf32> to vector<8x32xf32>
    %174 = vector.extract_strided_slice %170 {offsets = [0, 64], sizes = [8, 32], strides = [1, 1]} : vector<8x128xf32> to vector<8x32xf32>
    %175 = arith.mulf %173, %174 : vector<8x32xf32>
    %176 = arith.addf %172, %175 : vector<8x32xf32>
    %177 = vector.extract_strided_slice %169 {offsets = [0, 96], sizes = [8, 32], strides = [1, 1]} : vector<8x128xf32> to vector<8x32xf32>
    %178 = math.tanh %176 : vector<8x32xf32>
    %179 = arith.mulf %177, %178 : vector<8x32xf32>
    %180 = arith.index_cast %159 : i32 to index
    %c0_47 = arith.constant 0 : index
    %181 = vector.load %arg7[%180, %c0_47] : memref<64x32xf32, #tpu.memory_space<vmem>>, vector<8x32xf32>
    tpu.vector_store %arg7[%180, %c0_47], %179 {strides = array<i32>} : memref<64x32xf32, #tpu.memory_space<vmem>>, vector<8x32xf32>,
    %c7_i32 = arith.constant 7 : i32
    %c8_i32_48 = arith.constant 8 : i32
    %182 = arith.muli %c7_i32, %c8_i32_48 : i32
    %183 = tpu.assume_multiple %182, 8 : i32
    %184 = arith.index_cast %183 : i32 to index
    %c0_49 = arith.constant 0 : index
    %185 = vector.load %arg8[%184, %c0_49] : memref<64x128xf32, #tpu.memory_space<vmem>>, vector<8x128xf32>
    %186 = arith.truncf %179 : vector<8x32xf32> to vector<8x32xbf16>
    %cst_50 = arith.constant dense<0.000000e+00> : vector<8x128xf32>
    %187 = tpu.matmul %186, %3, %cst_50 {dimension_numbers = #tpu.dot_dimension_numbers<[1], [0], [0], [1], [0, 0, 1, 1], [], []>} : vector<8x32xbf16>, vector<32x128xbf16>, vector<8x128xf32> -> vector<8x128xf32>
    %188 = arith.addf %185, %187 : vector<8x128xf32>
    %189 = arith.negf %188 : vector<8x128xf32>
    %190 = math.exp %189 : vector<8x128xf32>
    %cst_51 = arith.constant 1.000000e+00 : f32
    %191 = vector.broadcast %cst_51 : f32 to vector<8x128xf32>
    %192 = arith.addf %191, %190 : vector<8x128xf32>
    %193 = arith.divf %191, %192 : vector<8x128xf32>
    %194 = math.tanh %188 : vector<8x128xf32>
    %195 = vector.extract_strided_slice %193 {offsets = [0, 32], sizes = [8, 32], strides = [1, 1]} : vector<8x128xf32> to vector<8x32xf32>
    %196 = arith.mulf %195, %176 : vector<8x32xf32>
    %197 = vector.extract_strided_slice %193 {offsets = [0, 0], sizes = [8, 32], strides = [1, 1]} : vector<8x128xf32> to vector<8x32xf32>
    %198 = vector.extract_strided_slice %194 {offsets = [0, 64], sizes = [8, 32], strides = [1, 1]} : vector<8x128xf32> to vector<8x32xf32>
    %199 = arith.mulf %197, %198 : vector<8x32xf32>
    %200 = arith.addf %196, %199 : vector<8x32xf32>
    %201 = vector.extract_strided_slice %193 {offsets = [0, 96], sizes = [8, 32], strides = [1, 1]} : vector<8x128xf32> to vector<8x32xf32>
    %202 = math.tanh %200 : vector<8x32xf32>
    %203 = arith.mulf %201, %202 : vector<8x32xf32>
    %204 = arith.index_cast %183 : i32 to index
    %c0_52 = arith.constant 0 : index
    %205 = vector.load %arg7[%204, %c0_52] : memref<64x32xf32, #tpu.memory_space<vmem>>, vector<8x32xf32>
    tpu.vector_store %arg7[%204, %c0_52], %203 {strides = array<i32>} : memref<64x32xf32, #tpu.memory_space<vmem>>, vector<8x32xf32>,
    %c8_i32_53 = arith.constant 8 : i32
    %c1 = arith.constant 1 : index
    %c0_54 = arith.constant 0 : index
    %c0_55 = arith.constant 0 : index
    %206 = vector.load %arg1[%c1, %c0_54, %c0_55] : memref<5x32x128xbf16, #tpu.memory_space<vmem>>, vector<1x32x128xbf16>
    %207 = vector.shape_cast %206 : vector<1x32x128xbf16> to vector<32x128xbf16>
    %c1_56 = arith.constant 1 : index
    %c0_57 = arith.constant 0 : index
    %c0_58 = arith.constant 0 : index
    %208 = vector.load %arg2[%c1_56, %c0_57, %c0_58] : memref<5x32x128xbf16, #tpu.memory_space<vmem>>, vector<1x32x128xbf16>
    %209 = vector.shape_cast %208 : vector<1x32x128xbf16> to vector<32x128xbf16>
    %c1_59 = arith.constant 1 : index
    %c0_60 = arith.constant 0 : index
    %c0_61 = arith.constant 0 : index
    %210 = vector.load %arg3[%c1_59, %c0_60, %c0_61] : memref<5x1x128xf32, #tpu.memory_space<vmem>>, vector<1x1x128xf32>
    %211 = vector.shape_cast %210 : vector<1x1x128xf32> to vector<1x128xf32>
    %c0_62 = arith.constant 0 : index
    %c0_63 = arith.constant 0 : index
    %212 = vector.load %arg7[%c0_62, %c0_63] : memref<64x32xf32, #tpu.memory_space<vmem>>, vector<64x32xf32>
    %213 = arith.truncf %212 : vector<64x32xf32> to vector<64x32xbf16>
    %cst_64 = arith.constant dense<0.000000e+00> : vector<64x128xf32>
    %214 = tpu.matmul %213, %207, %cst_64 {dimension_numbers = #tpu.dot_dimension_numbers<[1], [0], [0], [1], [0, 0, 1, 1], [], []>} : vector<64x32xbf16>, vector<32x128xbf16>, vector<64x128xf32> -> vector<64x128xf32>
    %215 = vector.broadcast %211 : vector<1x128xf32> to vector<64x128xf32>
    %216 = arith.addf %214, %215 : vector<64x128xf32>
    %c0_65 = arith.constant 0 : index
    %c0_66 = arith.constant 0 : index
    %217 = vector.load %arg8[%c0_65, %c0_66] : memref<64x128xf32, #tpu.memory_space<vmem>>, vector<64x128xf32>
    tpu.vector_store %arg8[%c0_65, %c0_66], %216 {strides = array<i32>} : memref<64x128xf32, #tpu.memory_space<vmem>>, vector<64x128xf32>,
    %cst_67 = arith.constant 0.000000e+00 : f32
    %218 = vector.broadcast %cst_67 : f32 to vector<8x32xf32>
    %cst_68 = arith.constant 0.000000e+00 : f32
    %219 = vector.broadcast %cst_68 : f32 to vector<8x32xf32>
    %c0_i32_69 = arith.constant 0 : i32
    %c8_i32_70 = arith.constant 8 : i32
    %220 = arith.muli %c0_i32_69, %c8_i32_70 : i32
    %221 = tpu.assume_multiple %220, 8 : i32
    %222 = arith.index_cast %221 : i32 to index
    %c0_71 = arith.constant 0 : index
    %223 = vector.load %arg8[%222, %c0_71] : memref<64x128xf32, #tpu.memory_space<vmem>>, vector<8x128xf32>
    %224 = arith.truncf %218 : vector<8x32xf32> to vector<8x32xbf16>
    %cst_72 = arith.constant dense<0.000000e+00> : vector<8x128xf32>
    %225 = tpu.matmul %224, %209, %cst_72 {dimension_numbers = #tpu.dot_dimension_numbers<[1], [0], [0], [1], [0, 0, 1, 1], [], []>} : vector<8x32xbf16>, vector<32x128xbf16>, vector<8x128xf32> -> vector<8x128xf32>
    %226 = arith.addf %223, %225 : vector<8x128xf32>
    %227 = arith.negf %226 : vector<8x128xf32>
    %228 = math.exp %227 : vector<8x128xf32>
    %cst_73 = arith.constant 1.000000e+00 : f32
    %229 = vector.broadcast %cst_73 : f32 to vector<8x128xf32>
    %230 = arith.addf %229, %228 : vector<8x128xf32>
    %231 = arith.divf %229, %230 : vector<8x128xf32>
    %232 = math.tanh %226 : vector<8x128xf32>
    %233 = vector.extract_strided_slice %231 {offsets = [0, 32], sizes = [8, 32], strides = [1, 1]} : vector<8x128xf32> to vector<8x32xf32>
    %234 = arith.mulf %233, %219 : vector<8x32xf32>
    %235 = vector.extract_strided_slice %231 {offsets = [0, 0], sizes = [8, 32], strides = [1, 1]} : vector<8x128xf32> to vector<8x32xf32>
    %236 = vector.extract_strided_slice %232 {offsets = [0, 64], sizes = [8, 32], strides = [1, 1]} : vector<8x128xf32> to vector<8x32xf32>
    %237 = arith.mulf %235, %236 : vector<8x32xf32>
    %238 = arith.addf %234, %237 : vector<8x32xf32>
    %239 = vector.extract_strided_slice %231 {offsets = [0, 96], sizes = [8, 32], strides = [1, 1]} : vector<8x128xf32> to vector<8x32xf32>
    %240 = math.tanh %238 : vector<8x32xf32>
    %241 = arith.mulf %239, %240 : vector<8x32xf32>
    %242 = arith.index_cast %221 : i32 to index
    %c0_74 = arith.constant 0 : index
    %243 = vector.load %arg7[%242, %c0_74] : memref<64x32xf32, #tpu.memory_space<vmem>>, vector<8x32xf32>
    tpu.vector_store %arg7[%242, %c0_74], %241 {strides = array<i32>} : memref<64x32xf32, #tpu.memory_space<vmem>>, vector<8x32xf32>,
    %c1_i32_75 = arith.constant 1 : i32
    %c8_i32_76 = arith.constant 8 : i32
    %244 = arith.muli %c1_i32_75, %c8_i32_76 : i32
    %245 = tpu.assume_multiple %244, 8 : i32
    %246 = arith.index_cast %245 : i32 to index
    %c0_77 = arith.constant 0 : index
    %247 = vector.load %arg8[%246, %c0_77] : memref<64x128xf32, #tpu.memory_space<vmem>>, vector<8x128xf32>
    %248 = arith.truncf %241 : vector<8x32xf32> to vector<8x32xbf16>
    %cst_78 = arith.constant dense<0.000000e+00> : vector<8x128xf32>
    %249 = tpu.matmul %248, %209, %cst_78 {dimension_numbers = #tpu.dot_dimension_numbers<[1], [0], [0], [1], [0, 0, 1, 1], [], []>} : vector<8x32xbf16>, vector<32x128xbf16>, vector<8x128xf32> -> vector<8x128xf32>
    %250 = arith.addf %247, %249 : vector<8x128xf32>
    %251 = arith.negf %250 : vector<8x128xf32>
    %252 = math.exp %251 : vector<8x128xf32>
    %cst_79 = arith.constant 1.000000e+00 : f32
    %253 = vector.broadcast %cst_79 : f32 to vector<8x128xf32>
    %254 = arith.addf %253, %252 : vector<8x128xf32>
    %255 = arith.divf %253, %254 : vector<8x128xf32>
    %256 = math.tanh %250 : vector<8x128xf32>
    %257 = vector.extract_strided_slice %255 {offsets = [0, 32], sizes = [8, 32], strides = [1, 1]} : vector<8x128xf32> to vector<8x32xf32>
    %258 = arith.mulf %257, %238 : vector<8x32xf32>
    %259 = vector.extract_strided_slice %255 {offsets = [0, 0], sizes = [8, 32], strides = [1, 1]} : vector<8x128xf32> to vector<8x32xf32>
    %260 = vector.extract_strided_slice %256 {offsets = [0, 64], sizes = [8, 32], strides = [1, 1]} : vector<8x128xf32> to vector<8x32xf32>
    %261 = arith.mulf %259, %260 : vector<8x32xf32>
    %262 = arith.addf %258, %261 : vector<8x32xf32>
    %263 = vector.extract_strided_slice %255 {offsets = [0, 96], sizes = [8, 32], strides = [1, 1]} : vector<8x128xf32> to vector<8x32xf32>
    %264 = math.tanh %262 : vector<8x32xf32>
    %265 = arith.mulf %263, %264 : vector<8x32xf32>
    %266 = arith.index_cast %245 : i32 to index
    %c0_80 = arith.constant 0 : index
    %267 = vector.load %arg7[%266, %c0_80] : memref<64x32xf32, #tpu.memory_space<vmem>>, vector<8x32xf32>
    tpu.vector_store %arg7[%266, %c0_80], %265 {strides = array<i32>} : memref<64x32xf32, #tpu.memory_space<vmem>>, vector<8x32xf32>,
    %c2_i32_81 = arith.constant 2 : i32
    %c8_i32_82 = arith.constant 8 : i32
    %268 = arith.muli %c2_i32_81, %c8_i32_82 : i32
    %269 = tpu.assume_multiple %268, 8 : i32
    %270 = arith.index_cast %269 : i32 to index
    %c0_83 = arith.constant 0 : index
    %271 = vector.load %arg8[%270, %c0_83] : memref<64x128xf32, #tpu.memory_space<vmem>>, vector<8x128xf32>
    %272 = arith.truncf %265 : vector<8x32xf32> to vector<8x32xbf16>
    %cst_84 = arith.constant dense<0.000000e+00> : vector<8x128xf32>
    %273 = tpu.matmul %272, %209, %cst_84 {dimension_numbers = #tpu.dot_dimension_numbers<[1], [0], [0], [1], [0, 0, 1, 1], [], []>} : vector<8x32xbf16>, vector<32x128xbf16>, vector<8x128xf32> -> vector<8x128xf32>
    %274 = arith.addf %271, %273 : vector<8x128xf32>
    %275 = arith.negf %274 : vector<8x128xf32>
    %276 = math.exp %275 : vector<8x128xf32>
    %cst_85 = arith.constant 1.000000e+00 : f32
    %277 = vector.broadcast %cst_85 : f32 to vector<8x128xf32>
    %278 = arith.addf %277, %276 : vector<8x128xf32>
    %279 = arith.divf %277, %278 : vector<8x128xf32>
    %280 = math.tanh %274 : vector<8x128xf32>
    %281 = vector.extract_strided_slice %279 {offsets = [0, 32], sizes = [8, 32], strides = [1, 1]} : vector<8x128xf32> to vector<8x32xf32>
    %282 = arith.mulf %281, %262 : vector<8x32xf32>
    %283 = vector.extract_strided_slice %279 {offsets = [0, 0], sizes = [8, 32], strides = [1, 1]} : vector<8x128xf32> to vector<8x32xf32>
    %284 = vector.extract_strided_slice %280 {offsets = [0, 64], sizes = [8, 32], strides = [1, 1]} : vector<8x128xf32> to vector<8x32xf32>
    %285 = arith.mulf %283, %284 : vector<8x32xf32>
    %286 = arith.addf %282, %285 : vector<8x32xf32>
    %287 = vector.extract_strided_slice %279 {offsets = [0, 96], sizes = [8, 32], strides = [1, 1]} : vector<8x128xf32> to vector<8x32xf32>
    %288 = math.tanh %286 : vector<8x32xf32>
    %289 = arith.mulf %287, %288 : vector<8x32xf32>
    %290 = arith.index_cast %269 : i32 to index
    %c0_86 = arith.constant 0 : index
    %291 = vector.load %arg7[%290, %c0_86] : memref<64x32xf32, #tpu.memory_space<vmem>>, vector<8x32xf32>
    tpu.vector_store %arg7[%290, %c0_86], %289 {strides = array<i32>} : memref<64x32xf32, #tpu.memory_space<vmem>>, vector<8x32xf32>,
    %c3_i32_87 = arith.constant 3 : i32
    %c8_i32_88 = arith.constant 8 : i32
    %292 = arith.muli %c3_i32_87, %c8_i32_88 : i32
    %293 = tpu.assume_multiple %292, 8 : i32
    %294 = arith.index_cast %293 : i32 to index
    %c0_89 = arith.constant 0 : index
    %295 = vector.load %arg8[%294, %c0_89] : memref<64x128xf32, #tpu.memory_space<vmem>>, vector<8x128xf32>
    %296 = arith.truncf %289 : vector<8x32xf32> to vector<8x32xbf16>
    %cst_90 = arith.constant dense<0.000000e+00> : vector<8x128xf32>
    %297 = tpu.matmul %296, %209, %cst_90 {dimension_numbers = #tpu.dot_dimension_numbers<[1], [0], [0], [1], [0, 0, 1, 1], [], []>} : vector<8x32xbf16>, vector<32x128xbf16>, vector<8x128xf32> -> vector<8x128xf32>
    %298 = arith.addf %295, %297 : vector<8x128xf32>
    %299 = arith.negf %298 : vector<8x128xf32>
    %300 = math.exp %299 : vector<8x128xf32>
    %cst_91 = arith.constant 1.000000e+00 : f32
    %301 = vector.broadcast %cst_91 : f32 to vector<8x128xf32>
    %302 = arith.addf %301, %300 : vector<8x128xf32>
    %303 = arith.divf %301, %302 : vector<8x128xf32>
    %304 = math.tanh %298 : vector<8x128xf32>
    %305 = vector.extract_strided_slice %303 {offsets = [0, 32], sizes = [8, 32], strides = [1, 1]} : vector<8x128xf32> to vector<8x32xf32>
    %306 = arith.mulf %305, %286 : vector<8x32xf32>
    %307 = vector.extract_strided_slice %303 {offsets = [0, 0], sizes = [8, 32], strides = [1, 1]} : vector<8x128xf32> to vector<8x32xf32>
    %308 = vector.extract_strided_slice %304 {offsets = [0, 64], sizes = [8, 32], strides = [1, 1]} : vector<8x128xf32> to vector<8x32xf32>
    %309 = arith.mulf %307, %308 : vector<8x32xf32>
    %310 = arith.addf %306, %309 : vector<8x32xf32>
    %311 = vector.extract_strided_slice %303 {offsets = [0, 96], sizes = [8, 32], strides = [1, 1]} : vector<8x128xf32> to vector<8x32xf32>
    %312 = math.tanh %310 : vector<8x32xf32>
    %313 = arith.mulf %311, %312 : vector<8x32xf32>
    %314 = arith.index_cast %293 : i32 to index
    %c0_92 = arith.constant 0 : index
    %315 = vector.load %arg7[%314, %c0_92] : memref<64x32xf32, #tpu.memory_space<vmem>>, vector<8x32xf32>
    tpu.vector_store %arg7[%314, %c0_92], %313 {strides = array<i32>} : memref<64x32xf32, #tpu.memory_space<vmem>>, vector<8x32xf32>,
    %c4_i32_93 = arith.constant 4 : i32
    %c8_i32_94 = arith.constant 8 : i32
    %316 = arith.muli %c4_i32_93, %c8_i32_94 : i32
    %317 = tpu.assume_multiple %316, 8 : i32
    %318 = arith.index_cast %317 : i32 to index
    %c0_95 = arith.constant 0 : index
    %319 = vector.load %arg8[%318, %c0_95] : memref<64x128xf32, #tpu.memory_space<vmem>>, vector<8x128xf32>
    %320 = arith.truncf %313 : vector<8x32xf32> to vector<8x32xbf16>
    %cst_96 = arith.constant dense<0.000000e+00> : vector<8x128xf32>
    %321 = tpu.matmul %320, %209, %cst_96 {dimension_numbers = #tpu.dot_dimension_numbers<[1], [0], [0], [1], [0, 0, 1, 1], [], []>} : vector<8x32xbf16>, vector<32x128xbf16>, vector<8x128xf32> -> vector<8x128xf32>
    %322 = arith.addf %319, %321 : vector<8x128xf32>
    %323 = arith.negf %322 : vector<8x128xf32>
    %324 = math.exp %323 : vector<8x128xf32>
    %cst_97 = arith.constant 1.000000e+00 : f32
    %325 = vector.broadcast %cst_97 : f32 to vector<8x128xf32>
    %326 = arith.addf %325, %324 : vector<8x128xf32>
    %327 = arith.divf %325, %326 : vector<8x128xf32>
    %328 = math.tanh %322 : vector<8x128xf32>
    %329 = vector.extract_strided_slice %327 {offsets = [0, 32], sizes = [8, 32], strides = [1, 1]} : vector<8x128xf32> to vector<8x32xf32>
    %330 = arith.mulf %329, %310 : vector<8x32xf32>
    %331 = vector.extract_strided_slice %327 {offsets = [0, 0], sizes = [8, 32], strides = [1, 1]} : vector<8x128xf32> to vector<8x32xf32>
    %332 = vector.extract_strided_slice %328 {offsets = [0, 64], sizes = [8, 32], strides = [1, 1]} : vector<8x128xf32> to vector<8x32xf32>
    %333 = arith.mulf %331, %332 : vector<8x32xf32>
    %334 = arith.addf %330, %333 : vector<8x32xf32>
    %335 = vector.extract_strided_slice %327 {offsets = [0, 96], sizes = [8, 32], strides = [1, 1]} : vector<8x128xf32> to vector<8x32xf32>
    %336 = math.tanh %334 : vector<8x32xf32>
    %337 = arith.mulf %335, %336 : vector<8x32xf32>
    %338 = arith.index_cast %317 : i32 to index
    %c0_98 = arith.constant 0 : index
    %339 = vector.load %arg7[%338, %c0_98] : memref<64x32xf32, #tpu.memory_space<vmem>>, vector<8x32xf32>
    tpu.vector_store %arg7[%338, %c0_98], %337 {strides = array<i32>} : memref<64x32xf32, #tpu.memory_space<vmem>>, vector<8x32xf32>,
    %c5_i32_99 = arith.constant 5 : i32
    %c8_i32_100 = arith.constant 8 : i32
    %340 = arith.muli %c5_i32_99, %c8_i32_100 : i32
    %341 = tpu.assume_multiple %340, 8 : i32
    %342 = arith.index_cast %341 : i32 to index
    %c0_101 = arith.constant 0 : index
    %343 = vector.load %arg8[%342, %c0_101] : memref<64x128xf32, #tpu.memory_space<vmem>>, vector<8x128xf32>
    %344 = arith.truncf %337 : vector<8x32xf32> to vector<8x32xbf16>
    %cst_102 = arith.constant dense<0.000000e+00> : vector<8x128xf32>
    %345 = tpu.matmul %344, %209, %cst_102 {dimension_numbers = #tpu.dot_dimension_numbers<[1], [0], [0], [1], [0, 0, 1, 1], [], []>} : vector<8x32xbf16>, vector<32x128xbf16>, vector<8x128xf32> -> vector<8x128xf32>
    %346 = arith.addf %343, %345 : vector<8x128xf32>
    %347 = arith.negf %346 : vector<8x128xf32>
    %348 = math.exp %347 : vector<8x128xf32>
    %cst_103 = arith.constant 1.000000e+00 : f32
    %349 = vector.broadcast %cst_103 : f32 to vector<8x128xf32>
    %350 = arith.addf %349, %348 : vector<8x128xf32>
    %351 = arith.divf %349, %350 : vector<8x128xf32>
    %352 = math.tanh %346 : vector<8x128xf32>
    %353 = vector.extract_strided_slice %351 {offsets = [0, 32], sizes = [8, 32], strides = [1, 1]} : vector<8x128xf32> to vector<8x32xf32>
    %354 = arith.mulf %353, %334 : vector<8x32xf32>
    %355 = vector.extract_strided_slice %351 {offsets = [0, 0], sizes = [8, 32], strides = [1, 1]} : vector<8x128xf32> to vector<8x32xf32>
    %356 = vector.extract_strided_slice %352 {offsets = [0, 64], sizes = [8, 32], strides = [1, 1]} : vector<8x128xf32> to vector<8x32xf32>
    %357 = arith.mulf %355, %356 : vector<8x32xf32>
    %358 = arith.addf %354, %357 : vector<8x32xf32>
    %359 = vector.extract_strided_slice %351 {offsets = [0, 96], sizes = [8, 32], strides = [1, 1]} : vector<8x128xf32> to vector<8x32xf32>
    %360 = math.tanh %358 : vector<8x32xf32>
    %361 = arith.mulf %359, %360 : vector<8x32xf32>
    %362 = arith.index_cast %341 : i32 to index
    %c0_104 = arith.constant 0 : index
    %363 = vector.load %arg7[%362, %c0_104] : memref<64x32xf32, #tpu.memory_space<vmem>>, vector<8x32xf32>
    tpu.vector_store %arg7[%362, %c0_104], %361 {strides = array<i32>} : memref<64x32xf32, #tpu.memory_space<vmem>>, vector<8x32xf32>,
    %c6_i32_105 = arith.constant 6 : i32
    %c8_i32_106 = arith.constant 8 : i32
    %364 = arith.muli %c6_i32_105, %c8_i32_106 : i32
    %365 = tpu.assume_multiple %364, 8 : i32
    %366 = arith.index_cast %365 : i32 to index
    %c0_107 = arith.constant 0 : index
    %367 = vector.load %arg8[%366, %c0_107] : memref<64x128xf32, #tpu.memory_space<vmem>>, vector<8x128xf32>
    %368 = arith.truncf %361 : vector<8x32xf32> to vector<8x32xbf16>
    %cst_108 = arith.constant dense<0.000000e+00> : vector<8x128xf32>
    %369 = tpu.matmul %368, %209, %cst_108 {dimension_numbers = #tpu.dot_dimension_numbers<[1], [0], [0], [1], [0, 0, 1, 1], [], []>} : vector<8x32xbf16>, vector<32x128xbf16>, vector<8x128xf32> -> vector<8x128xf32>
    %370 = arith.addf %367, %369 : vector<8x128xf32>
    %371 = arith.negf %370 : vector<8x128xf32>
    %372 = math.exp %371 : vector<8x128xf32>
    %cst_109 = arith.constant 1.000000e+00 : f32
    %373 = vector.broadcast %cst_109 : f32 to vector<8x128xf32>
    %374 = arith.addf %373, %372 : vector<8x128xf32>
    %375 = arith.divf %373, %374 : vector<8x128xf32>
    %376 = math.tanh %370 : vector<8x128xf32>
    %377 = vector.extract_strided_slice %375 {offsets = [0, 32], sizes = [8, 32], strides = [1, 1]} : vector<8x128xf32> to vector<8x32xf32>
    %378 = arith.mulf %377, %358 : vector<8x32xf32>
    %379 = vector.extract_strided_slice %375 {offsets = [0, 0], sizes = [8, 32], strides = [1, 1]} : vector<8x128xf32> to vector<8x32xf32>
    %380 = vector.extract_strided_slice %376 {offsets = [0, 64], sizes = [8, 32], strides = [1, 1]} : vector<8x128xf32> to vector<8x32xf32>
    %381 = arith.mulf %379, %380 : vector<8x32xf32>
    %382 = arith.addf %378, %381 : vector<8x32xf32>
    %383 = vector.extract_strided_slice %375 {offsets = [0, 96], sizes = [8, 32], strides = [1, 1]} : vector<8x128xf32> to vector<8x32xf32>
    %384 = math.tanh %382 : vector<8x32xf32>
    %385 = arith.mulf %383, %384 : vector<8x32xf32>
    %386 = arith.index_cast %365 : i32 to index
    %c0_110 = arith.constant 0 : index
    %387 = vector.load %arg7[%386, %c0_110] : memref<64x32xf32, #tpu.memory_space<vmem>>, vector<8x32xf32>
    tpu.vector_store %arg7[%386, %c0_110], %385 {strides = array<i32>} : memref<64x32xf32, #tpu.memory_space<vmem>>, vector<8x32xf32>,
    %c7_i32_111 = arith.constant 7 : i32
    %c8_i32_112 = arith.constant 8 : i32
    %388 = arith.muli %c7_i32_111, %c8_i32_112 : i32
    %389 = tpu.assume_multiple %388, 8 : i32
    %390 = arith.index_cast %389 : i32 to index
    %c0_113 = arith.constant 0 : index
    %391 = vector.load %arg8[%390, %c0_113] : memref<64x128xf32, #tpu.memory_space<vmem>>, vector<8x128xf32>
    %392 = arith.truncf %385 : vector<8x32xf32> to vector<8x32xbf16>
    %cst_114 = arith.constant dense<0.000000e+00> : vector<8x128xf32>
    %393 = tpu.matmul %392, %209, %cst_114 {dimension_numbers = #tpu.dot_dimension_numbers<[1], [0], [0], [1], [0, 0, 1, 1], [], []>} : vector<8x32xbf16>, vector<32x128xbf16>, vector<8x128xf32> -> vector<8x128xf32>
    %394 = arith.addf %391, %393 : vector<8x128xf32>
    %395 = arith.negf %394 : vector<8x128xf32>
    %396 = math.exp %395 : vector<8x128xf32>
    %cst_115 = arith.constant 1.000000e+00 : f32
    %397 = vector.broadcast %cst_115 : f32 to vector<8x128xf32>
    %398 = arith.addf %397, %396 : vector<8x128xf32>
    %399 = arith.divf %397, %398 : vector<8x128xf32>
    %400 = math.tanh %394 : vector<8x128xf32>
    %401 = vector.extract_strided_slice %399 {offsets = [0, 32], sizes = [8, 32], strides = [1, 1]} : vector<8x128xf32> to vector<8x32xf32>
    %402 = arith.mulf %401, %382 : vector<8x32xf32>
    %403 = vector.extract_strided_slice %399 {offsets = [0, 0], sizes = [8, 32], strides = [1, 1]} : vector<8x128xf32> to vector<8x32xf32>
    %404 = vector.extract_strided_slice %400 {offsets = [0, 64], sizes = [8, 32], strides = [1, 1]} : vector<8x128xf32> to vector<8x32xf32>
    %405 = arith.mulf %403, %404 : vector<8x32xf32>
    %406 = arith.addf %402, %405 : vector<8x32xf32>
    %407 = vector.extract_strided_slice %399 {offsets = [0, 96], sizes = [8, 32], strides = [1, 1]} : vector<8x128xf32> to vector<8x32xf32>
    %408 = math.tanh %406 : vector<8x32xf32>
    %409 = arith.mulf %407, %408 : vector<8x32xf32>
    %410 = arith.index_cast %389 : i32 to index
    %c0_116 = arith.constant 0 : index
    %411 = vector.load %arg7[%410, %c0_116] : memref<64x32xf32, #tpu.memory_space<vmem>>, vector<8x32xf32>
    tpu.vector_store %arg7[%410, %c0_116], %409 {strides = array<i32>} : memref<64x32xf32, #tpu.memory_space<vmem>>, vector<8x32xf32>,
    %c8_i32_117 = arith.constant 8 : i32
    %c2 = arith.constant 2 : index
    %c0_118 = arith.constant 0 : index
    %c0_119 = arith.constant 0 : index
    %412 = vector.load %arg1[%c2, %c0_118, %c0_119] : memref<5x32x128xbf16, #tpu.memory_space<vmem>>, vector<1x32x128xbf16>
    %413 = vector.shape_cast %412 : vector<1x32x128xbf16> to vector<32x128xbf16>
    %c2_120 = arith.constant 2 : index
    %c0_121 = arith.constant 0 : index
    %c0_122 = arith.constant 0 : index
    %414 = vector.load %arg2[%c2_120, %c0_121, %c0_122] : memref<5x32x128xbf16, #tpu.memory_space<vmem>>, vector<1x32x128xbf16>
    %415 = vector.shape_cast %414 : vector<1x32x128xbf16> to vector<32x128xbf16>
    %c2_123 = arith.constant 2 : index
    %c0_124 = arith.constant 0 : index
    %c0_125 = arith.constant 0 : index
    %416 = vector.load %arg3[%c2_123, %c0_124, %c0_125] : memref<5x1x128xf32, #tpu.memory_space<vmem>>, vector<1x1x128xf32>
    %417 = vector.shape_cast %416 : vector<1x1x128xf32> to vector<1x128xf32>
    %c0_126 = arith.constant 0 : index
    %c0_127 = arith.constant 0 : index
    %418 = vector.load %arg7[%c0_126, %c0_127] : memref<64x32xf32, #tpu.memory_space<vmem>>, vector<64x32xf32>
    %419 = arith.truncf %418 : vector<64x32xf32> to vector<64x32xbf16>
    %cst_128 = arith.constant dense<0.000000e+00> : vector<64x128xf32>
    %420 = tpu.matmul %419, %413, %cst_128 {dimension_numbers = #tpu.dot_dimension_numbers<[1], [0], [0], [1], [0, 0, 1, 1], [], []>} : vector<64x32xbf16>, vector<32x128xbf16>, vector<64x128xf32> -> vector<64x128xf32>
    %421 = vector.broadcast %417 : vector<1x128xf32> to vector<64x128xf32>
    %422 = arith.addf %420, %421 : vector<64x128xf32>
    %c0_129 = arith.constant 0 : index
    %c0_130 = arith.constant 0 : index
    %423 = vector.load %arg8[%c0_129, %c0_130] : memref<64x128xf32, #tpu.memory_space<vmem>>, vector<64x128xf32>
    tpu.vector_store %arg8[%c0_129, %c0_130], %422 {strides = array<i32>} : memref<64x128xf32, #tpu.memory_space<vmem>>, vector<64x128xf32>,
    %cst_131 = arith.constant 0.000000e+00 : f32
    %424 = vector.broadcast %cst_131 : f32 to vector<8x32xf32>
    %cst_132 = arith.constant 0.000000e+00 : f32
    %425 = vector.broadcast %cst_132 : f32 to vector<8x32xf32>
    %c0_i32_133 = arith.constant 0 : i32
    %c8_i32_134 = arith.constant 8 : i32
    %426 = arith.muli %c0_i32_133, %c8_i32_134 : i32
    %427 = tpu.assume_multiple %426, 8 : i32
    %428 = arith.index_cast %427 : i32 to index
    %c0_135 = arith.constant 0 : index
    %429 = vector.load %arg8[%428, %c0_135] : memref<64x128xf32, #tpu.memory_space<vmem>>, vector<8x128xf32>
    %430 = arith.truncf %424 : vector<8x32xf32> to vector<8x32xbf16>
    %cst_136 = arith.constant dense<0.000000e+00> : vector<8x128xf32>
    %431 = tpu.matmul %430, %415, %cst_136 {dimension_numbers = #tpu.dot_dimension_numbers<[1], [0], [0], [1], [0, 0, 1, 1], [], []>} : vector<8x32xbf16>, vector<32x128xbf16>, vector<8x128xf32> -> vector<8x128xf32>
    %432 = arith.addf %429, %431 : vector<8x128xf32>
    %433 = arith.negf %432 : vector<8x128xf32>
    %434 = math.exp %433 : vector<8x128xf32>
    %cst_137 = arith.constant 1.000000e+00 : f32
    %435 = vector.broadcast %cst_137 : f32 to vector<8x128xf32>
    %436 = arith.addf %435, %434 : vector<8x128xf32>
    %437 = arith.divf %435, %436 : vector<8x128xf32>
    %438 = math.tanh %432 : vector<8x128xf32>
    %439 = vector.extract_strided_slice %437 {offsets = [0, 32], sizes = [8, 32], strides = [1, 1]} : vector<8x128xf32> to vector<8x32xf32>
    %440 = arith.mulf %439, %425 : vector<8x32xf32>
    %441 = vector.extract_strided_slice %437 {offsets = [0, 0], sizes = [8, 32], strides = [1, 1]} : vector<8x128xf32> to vector<8x32xf32>
    %442 = vector.extract_strided_slice %438 {offsets = [0, 64], sizes = [8, 32], strides = [1, 1]} : vector<8x128xf32> to vector<8x32xf32>
    %443 = arith.mulf %441, %442 : vector<8x32xf32>
    %444 = arith.addf %440, %443 : vector<8x32xf32>
    %445 = vector.extract_strided_slice %437 {offsets = [0, 96], sizes = [8, 32], strides = [1, 1]} : vector<8x128xf32> to vector<8x32xf32>
    %446 = math.tanh %444 : vector<8x32xf32>
    %447 = arith.mulf %445, %446 : vector<8x32xf32>
    %448 = arith.index_cast %427 : i32 to index
    %c0_138 = arith.constant 0 : index
    %449 = vector.load %arg7[%448, %c0_138] : memref<64x32xf32, #tpu.memory_space<vmem>>, vector<8x32xf32>
    tpu.vector_store %arg7[%448, %c0_138], %447 {strides = array<i32>} : memref<64x32xf32, #tpu.memory_space<vmem>>, vector<8x32xf32>,
    %c1_i32_139 = arith.constant 1 : i32
    %c8_i32_140 = arith.constant 8 : i32
    %450 = arith.muli %c1_i32_139, %c8_i32_140 : i32
    %451 = tpu.assume_multiple %450, 8 : i32
    %452 = arith.index_cast %451 : i32 to index
    %c0_141 = arith.constant 0 : index
    %453 = vector.load %arg8[%452, %c0_141] : memref<64x128xf32, #tpu.memory_space<vmem>>, vector<8x128xf32>
    %454 = arith.truncf %447 : vector<8x32xf32> to vector<8x32xbf16>
    %cst_142 = arith.constant dense<0.000000e+00> : vector<8x128xf32>
    %455 = tpu.matmul %454, %415, %cst_142 {dimension_numbers = #tpu.dot_dimension_numbers<[1], [0], [0], [1], [0, 0, 1, 1], [], []>} : vector<8x32xbf16>, vector<32x128xbf16>, vector<8x128xf32> -> vector<8x128xf32>
    %456 = arith.addf %453, %455 : vector<8x128xf32>
    %457 = arith.negf %456 : vector<8x128xf32>
    %458 = math.exp %457 : vector<8x128xf32>
    %cst_143 = arith.constant 1.000000e+00 : f32
    %459 = vector.broadcast %cst_143 : f32 to vector<8x128xf32>
    %460 = arith.addf %459, %458 : vector<8x128xf32>
    %461 = arith.divf %459, %460 : vector<8x128xf32>
    %462 = math.tanh %456 : vector<8x128xf32>
    %463 = vector.extract_strided_slice %461 {offsets = [0, 32], sizes = [8, 32], strides = [1, 1]} : vector<8x128xf32> to vector<8x32xf32>
    %464 = arith.mulf %463, %444 : vector<8x32xf32>
    %465 = vector.extract_strided_slice %461 {offsets = [0, 0], sizes = [8, 32], strides = [1, 1]} : vector<8x128xf32> to vector<8x32xf32>
    %466 = vector.extract_strided_slice %462 {offsets = [0, 64], sizes = [8, 32], strides = [1, 1]} : vector<8x128xf32> to vector<8x32xf32>
    %467 = arith.mulf %465, %466 : vector<8x32xf32>
    %468 = arith.addf %464, %467 : vector<8x32xf32>
    %469 = vector.extract_strided_slice %461 {offsets = [0, 96], sizes = [8, 32], strides = [1, 1]} : vector<8x128xf32> to vector<8x32xf32>
    %470 = math.tanh %468 : vector<8x32xf32>
    %471 = arith.mulf %469, %470 : vector<8x32xf32>
    %472 = arith.index_cast %451 : i32 to index
    %c0_144 = arith.constant 0 : index
    %473 = vector.load %arg7[%472, %c0_144] : memref<64x32xf32, #tpu.memory_space<vmem>>, vector<8x32xf32>
    tpu.vector_store %arg7[%472, %c0_144], %471 {strides = array<i32>} : memref<64x32xf32, #tpu.memory_space<vmem>>, vector<8x32xf32>,
    %c2_i32_145 = arith.constant 2 : i32
    %c8_i32_146 = arith.constant 8 : i32
    %474 = arith.muli %c2_i32_145, %c8_i32_146 : i32
    %475 = tpu.assume_multiple %474, 8 : i32
    %476 = arith.index_cast %475 : i32 to index
    %c0_147 = arith.constant 0 : index
    %477 = vector.load %arg8[%476, %c0_147] : memref<64x128xf32, #tpu.memory_space<vmem>>, vector<8x128xf32>
    %478 = arith.truncf %471 : vector<8x32xf32> to vector<8x32xbf16>
    %cst_148 = arith.constant dense<0.000000e+00> : vector<8x128xf32>
    %479 = tpu.matmul %478, %415, %cst_148 {dimension_numbers = #tpu.dot_dimension_numbers<[1], [0], [0], [1], [0, 0, 1, 1], [], []>} : vector<8x32xbf16>, vector<32x128xbf16>, vector<8x128xf32> -> vector<8x128xf32>
    %480 = arith.addf %477, %479 : vector<8x128xf32>
    %481 = arith.negf %480 : vector<8x128xf32>
    %482 = math.exp %481 : vector<8x128xf32>
    %cst_149 = arith.constant 1.000000e+00 : f32
    %483 = vector.broadcast %cst_149 : f32 to vector<8x128xf32>
    %484 = arith.addf %483, %482 : vector<8x128xf32>
    %485 = arith.divf %483, %484 : vector<8x128xf32>
    %486 = math.tanh %480 : vector<8x128xf32>
    %487 = vector.extract_strided_slice %485 {offsets = [0, 32], sizes = [8, 32], strides = [1, 1]} : vector<8x128xf32> to vector<8x32xf32>
    %488 = arith.mulf %487, %468 : vector<8x32xf32>
    %489 = vector.extract_strided_slice %485 {offsets = [0, 0], sizes = [8, 32], strides = [1, 1]} : vector<8x128xf32> to vector<8x32xf32>
    %490 = vector.extract_strided_slice %486 {offsets = [0, 64], sizes = [8, 32], strides = [1, 1]} : vector<8x128xf32> to vector<8x32xf32>
    %491 = arith.mulf %489, %490 : vector<8x32xf32>
    %492 = arith.addf %488, %491 : vector<8x32xf32>
    %493 = vector.extract_strided_slice %485 {offsets = [0, 96], sizes = [8, 32], strides = [1, 1]} : vector<8x128xf32> to vector<8x32xf32>
    %494 = math.tanh %492 : vector<8x32xf32>
    %495 = arith.mulf %493, %494 : vector<8x32xf32>
    %496 = arith.index_cast %475 : i32 to index
    %c0_150 = arith.constant 0 : index
    %497 = vector.load %arg7[%496, %c0_150] : memref<64x32xf32, #tpu.memory_space<vmem>>, vector<8x32xf32>
    tpu.vector_store %arg7[%496, %c0_150], %495 {strides = array<i32>} : memref<64x32xf32, #tpu.memory_space<vmem>>, vector<8x32xf32>,
    %c3_i32_151 = arith.constant 3 : i32
    %c8_i32_152 = arith.constant 8 : i32
    %498 = arith.muli %c3_i32_151, %c8_i32_152 : i32
    %499 = tpu.assume_multiple %498, 8 : i32
    %500 = arith.index_cast %499 : i32 to index
    %c0_153 = arith.constant 0 : index
    %501 = vector.load %arg8[%500, %c0_153] : memref<64x128xf32, #tpu.memory_space<vmem>>, vector<8x128xf32>
    %502 = arith.truncf %495 : vector<8x32xf32> to vector<8x32xbf16>
    %cst_154 = arith.constant dense<0.000000e+00> : vector<8x128xf32>
    %503 = tpu.matmul %502, %415, %cst_154 {dimension_numbers = #tpu.dot_dimension_numbers<[1], [0], [0], [1], [0, 0, 1, 1], [], []>} : vector<8x32xbf16>, vector<32x128xbf16>, vector<8x128xf32> -> vector<8x128xf32>
    %504 = arith.addf %501, %503 : vector<8x128xf32>
    %505 = arith.negf %504 : vector<8x128xf32>
    %506 = math.exp %505 : vector<8x128xf32>
    %cst_155 = arith.constant 1.000000e+00 : f32
    %507 = vector.broadcast %cst_155 : f32 to vector<8x128xf32>
    %508 = arith.addf %507, %506 : vector<8x128xf32>
    %509 = arith.divf %507, %508 : vector<8x128xf32>
    %510 = math.tanh %504 : vector<8x128xf32>
    %511 = vector.extract_strided_slice %509 {offsets = [0, 32], sizes = [8, 32], strides = [1, 1]} : vector<8x128xf32> to vector<8x32xf32>
    %512 = arith.mulf %511, %492 : vector<8x32xf32>
    %513 = vector.extract_strided_slice %509 {offsets = [0, 0], sizes = [8, 32], strides = [1, 1]} : vector<8x128xf32> to vector<8x32xf32>
    %514 = vector.extract_strided_slice %510 {offsets = [0, 64], sizes = [8, 32], strides = [1, 1]} : vector<8x128xf32> to vector<8x32xf32>
    %515 = arith.mulf %513, %514 : vector<8x32xf32>
    %516 = arith.addf %512, %515 : vector<8x32xf32>
    %517 = vector.extract_strided_slice %509 {offsets = [0, 96], sizes = [8, 32], strides = [1, 1]} : vector<8x128xf32> to vector<8x32xf32>
    %518 = math.tanh %516 : vector<8x32xf32>
    %519 = arith.mulf %517, %518 : vector<8x32xf32>
    %520 = arith.index_cast %499 : i32 to index
    %c0_156 = arith.constant 0 : index
    %521 = vector.load %arg7[%520, %c0_156] : memref<64x32xf32, #tpu.memory_space<vmem>>, vector<8x32xf32>
    tpu.vector_store %arg7[%520, %c0_156], %519 {strides = array<i32>} : memref<64x32xf32, #tpu.memory_space<vmem>>, vector<8x32xf32>,
    %c4_i32_157 = arith.constant 4 : i32
    %c8_i32_158 = arith.constant 8 : i32
    %522 = arith.muli %c4_i32_157, %c8_i32_158 : i32
    %523 = tpu.assume_multiple %522, 8 : i32
    %524 = arith.index_cast %523 : i32 to index
    %c0_159 = arith.constant 0 : index
    %525 = vector.load %arg8[%524, %c0_159] : memref<64x128xf32, #tpu.memory_space<vmem>>, vector<8x128xf32>
    %526 = arith.truncf %519 : vector<8x32xf32> to vector<8x32xbf16>
    %cst_160 = arith.constant dense<0.000000e+00> : vector<8x128xf32>
    %527 = tpu.matmul %526, %415, %cst_160 {dimension_numbers = #tpu.dot_dimension_numbers<[1], [0], [0], [1], [0, 0, 1, 1], [], []>} : vector<8x32xbf16>, vector<32x128xbf16>, vector<8x128xf32> -> vector<8x128xf32>
    %528 = arith.addf %525, %527 : vector<8x128xf32>
    %529 = arith.negf %528 : vector<8x128xf32>
    %530 = math.exp %529 : vector<8x128xf32>
    %cst_161 = arith.constant 1.000000e+00 : f32
    %531 = vector.broadcast %cst_161 : f32 to vector<8x128xf32>
    %532 = arith.addf %531, %530 : vector<8x128xf32>
    %533 = arith.divf %531, %532 : vector<8x128xf32>
    %534 = math.tanh %528 : vector<8x128xf32>
    %535 = vector.extract_strided_slice %533 {offsets = [0, 32], sizes = [8, 32], strides = [1, 1]} : vector<8x128xf32> to vector<8x32xf32>
    %536 = arith.mulf %535, %516 : vector<8x32xf32>
    %537 = vector.extract_strided_slice %533 {offsets = [0, 0], sizes = [8, 32], strides = [1, 1]} : vector<8x128xf32> to vector<8x32xf32>
    %538 = vector.extract_strided_slice %534 {offsets = [0, 64], sizes = [8, 32], strides = [1, 1]} : vector<8x128xf32> to vector<8x32xf32>
    %539 = arith.mulf %537, %538 : vector<8x32xf32>
    %540 = arith.addf %536, %539 : vector<8x32xf32>
    %541 = vector.extract_strided_slice %533 {offsets = [0, 96], sizes = [8, 32], strides = [1, 1]} : vector<8x128xf32> to vector<8x32xf32>
    %542 = math.tanh %540 : vector<8x32xf32>
    %543 = arith.mulf %541, %542 : vector<8x32xf32>
    %544 = arith.index_cast %523 : i32 to index
    %c0_162 = arith.constant 0 : index
    %545 = vector.load %arg7[%544, %c0_162] : memref<64x32xf32, #tpu.memory_space<vmem>>, vector<8x32xf32>
    tpu.vector_store %arg7[%544, %c0_162], %543 {strides = array<i32>} : memref<64x32xf32, #tpu.memory_space<vmem>>, vector<8x32xf32>,
    %c5_i32_163 = arith.constant 5 : i32
    %c8_i32_164 = arith.constant 8 : i32
    %546 = arith.muli %c5_i32_163, %c8_i32_164 : i32
    %547 = tpu.assume_multiple %546, 8 : i32
    %548 = arith.index_cast %547 : i32 to index
    %c0_165 = arith.constant 0 : index
    %549 = vector.load %arg8[%548, %c0_165] : memref<64x128xf32, #tpu.memory_space<vmem>>, vector<8x128xf32>
    %550 = arith.truncf %543 : vector<8x32xf32> to vector<8x32xbf16>
    %cst_166 = arith.constant dense<0.000000e+00> : vector<8x128xf32>
    %551 = tpu.matmul %550, %415, %cst_166 {dimension_numbers = #tpu.dot_dimension_numbers<[1], [0], [0], [1], [0, 0, 1, 1], [], []>} : vector<8x32xbf16>, vector<32x128xbf16>, vector<8x128xf32> -> vector<8x128xf32>
    %552 = arith.addf %549, %551 : vector<8x128xf32>
    %553 = arith.negf %552 : vector<8x128xf32>
    %554 = math.exp %553 : vector<8x128xf32>
    %cst_167 = arith.constant 1.000000e+00 : f32
    %555 = vector.broadcast %cst_167 : f32 to vector<8x128xf32>
    %556 = arith.addf %555, %554 : vector<8x128xf32>
    %557 = arith.divf %555, %556 : vector<8x128xf32>
    %558 = math.tanh %552 : vector<8x128xf32>
    %559 = vector.extract_strided_slice %557 {offsets = [0, 32], sizes = [8, 32], strides = [1, 1]} : vector<8x128xf32> to vector<8x32xf32>
    %560 = arith.mulf %559, %540 : vector<8x32xf32>
    %561 = vector.extract_strided_slice %557 {offsets = [0, 0], sizes = [8, 32], strides = [1, 1]} : vector<8x128xf32> to vector<8x32xf32>
    %562 = vector.extract_strided_slice %558 {offsets = [0, 64], sizes = [8, 32], strides = [1, 1]} : vector<8x128xf32> to vector<8x32xf32>
    %563 = arith.mulf %561, %562 : vector<8x32xf32>
    %564 = arith.addf %560, %563 : vector<8x32xf32>
    %565 = vector.extract_strided_slice %557 {offsets = [0, 96], sizes = [8, 32], strides = [1, 1]} : vector<8x128xf32> to vector<8x32xf32>
    %566 = math.tanh %564 : vector<8x32xf32>
    %567 = arith.mulf %565, %566 : vector<8x32xf32>
    %568 = arith.index_cast %547 : i32 to index
    %c0_168 = arith.constant 0 : index
    %569 = vector.load %arg7[%568, %c0_168] : memref<64x32xf32, #tpu.memory_space<vmem>>, vector<8x32xf32>
    tpu.vector_store %arg7[%568, %c0_168], %567 {strides = array<i32>} : memref<64x32xf32, #tpu.memory_space<vmem>>, vector<8x32xf32>,
    %c6_i32_169 = arith.constant 6 : i32
    %c8_i32_170 = arith.constant 8 : i32
    %570 = arith.muli %c6_i32_169, %c8_i32_170 : i32
    %571 = tpu.assume_multiple %570, 8 : i32
    %572 = arith.index_cast %571 : i32 to index
    %c0_171 = arith.constant 0 : index
    %573 = vector.load %arg8[%572, %c0_171] : memref<64x128xf32, #tpu.memory_space<vmem>>, vector<8x128xf32>
    %574 = arith.truncf %567 : vector<8x32xf32> to vector<8x32xbf16>
    %cst_172 = arith.constant dense<0.000000e+00> : vector<8x128xf32>
    %575 = tpu.matmul %574, %415, %cst_172 {dimension_numbers = #tpu.dot_dimension_numbers<[1], [0], [0], [1], [0, 0, 1, 1], [], []>} : vector<8x32xbf16>, vector<32x128xbf16>, vector<8x128xf32> -> vector<8x128xf32>
    %576 = arith.addf %573, %575 : vector<8x128xf32>
    %577 = arith.negf %576 : vector<8x128xf32>
    %578 = math.exp %577 : vector<8x128xf32>
    %cst_173 = arith.constant 1.000000e+00 : f32
    %579 = vector.broadcast %cst_173 : f32 to vector<8x128xf32>
    %580 = arith.addf %579, %578 : vector<8x128xf32>
    %581 = arith.divf %579, %580 : vector<8x128xf32>
    %582 = math.tanh %576 : vector<8x128xf32>
    %583 = vector.extract_strided_slice %581 {offsets = [0, 32], sizes = [8, 32], strides = [1, 1]} : vector<8x128xf32> to vector<8x32xf32>
    %584 = arith.mulf %583, %564 : vector<8x32xf32>
    %585 = vector.extract_strided_slice %581 {offsets = [0, 0], sizes = [8, 32], strides = [1, 1]} : vector<8x128xf32> to vector<8x32xf32>
    %586 = vector.extract_strided_slice %582 {offsets = [0, 64], sizes = [8, 32], strides = [1, 1]} : vector<8x128xf32> to vector<8x32xf32>
    %587 = arith.mulf %585, %586 : vector<8x32xf32>
    %588 = arith.addf %584, %587 : vector<8x32xf32>
    %589 = vector.extract_strided_slice %581 {offsets = [0, 96], sizes = [8, 32], strides = [1, 1]} : vector<8x128xf32> to vector<8x32xf32>
    %590 = math.tanh %588 : vector<8x32xf32>
    %591 = arith.mulf %589, %590 : vector<8x32xf32>
    %592 = arith.index_cast %571 : i32 to index
    %c0_174 = arith.constant 0 : index
    %593 = vector.load %arg7[%592, %c0_174] : memref<64x32xf32, #tpu.memory_space<vmem>>, vector<8x32xf32>
    tpu.vector_store %arg7[%592, %c0_174], %591 {strides = array<i32>} : memref<64x32xf32, #tpu.memory_space<vmem>>, vector<8x32xf32>,
    %c7_i32_175 = arith.constant 7 : i32
    %c8_i32_176 = arith.constant 8 : i32
    %594 = arith.muli %c7_i32_175, %c8_i32_176 : i32
    %595 = tpu.assume_multiple %594, 8 : i32
    %596 = arith.index_cast %595 : i32 to index
    %c0_177 = arith.constant 0 : index
    %597 = vector.load %arg8[%596, %c0_177] : memref<64x128xf32, #tpu.memory_space<vmem>>, vector<8x128xf32>
    %598 = arith.truncf %591 : vector<8x32xf32> to vector<8x32xbf16>
    %cst_178 = arith.constant dense<0.000000e+00> : vector<8x128xf32>
    %599 = tpu.matmul %598, %415, %cst_178 {dimension_numbers = #tpu.dot_dimension_numbers<[1], [0], [0], [1], [0, 0, 1, 1], [], []>} : vector<8x32xbf16>, vector<32x128xbf16>, vector<8x128xf32> -> vector<8x128xf32>
    %600 = arith.addf %597, %599 : vector<8x128xf32>
    %601 = arith.negf %600 : vector<8x128xf32>
    %602 = math.exp %601 : vector<8x128xf32>
    %cst_179 = arith.constant 1.000000e+00 : f32
    %603 = vector.broadcast %cst_179 : f32 to vector<8x128xf32>
    %604 = arith.addf %603, %602 : vector<8x128xf32>
    %605 = arith.divf %603, %604 : vector<8x128xf32>
    %606 = math.tanh %600 : vector<8x128xf32>
    %607 = vector.extract_strided_slice %605 {offsets = [0, 32], sizes = [8, 32], strides = [1, 1]} : vector<8x128xf32> to vector<8x32xf32>
    %608 = arith.mulf %607, %588 : vector<8x32xf32>
    %609 = vector.extract_strided_slice %605 {offsets = [0, 0], sizes = [8, 32], strides = [1, 1]} : vector<8x128xf32> to vector<8x32xf32>
    %610 = vector.extract_strided_slice %606 {offsets = [0, 64], sizes = [8, 32], strides = [1, 1]} : vector<8x128xf32> to vector<8x32xf32>
    %611 = arith.mulf %609, %610 : vector<8x32xf32>
    %612 = arith.addf %608, %611 : vector<8x32xf32>
    %613 = vector.extract_strided_slice %605 {offsets = [0, 96], sizes = [8, 32], strides = [1, 1]} : vector<8x128xf32> to vector<8x32xf32>
    %614 = math.tanh %612 : vector<8x32xf32>
    %615 = arith.mulf %613, %614 : vector<8x32xf32>
    %616 = arith.index_cast %595 : i32 to index
    %c0_180 = arith.constant 0 : index
    %617 = vector.load %arg7[%616, %c0_180] : memref<64x32xf32, #tpu.memory_space<vmem>>, vector<8x32xf32>
    tpu.vector_store %arg7[%616, %c0_180], %615 {strides = array<i32>} : memref<64x32xf32, #tpu.memory_space<vmem>>, vector<8x32xf32>,
    %c8_i32_181 = arith.constant 8 : i32
    %c3 = arith.constant 3 : index
    %c0_182 = arith.constant 0 : index
    %c0_183 = arith.constant 0 : index
    %618 = vector.load %arg1[%c3, %c0_182, %c0_183] : memref<5x32x128xbf16, #tpu.memory_space<vmem>>, vector<1x32x128xbf16>
    %619 = vector.shape_cast %618 : vector<1x32x128xbf16> to vector<32x128xbf16>
    %c3_184 = arith.constant 3 : index
    %c0_185 = arith.constant 0 : index
    %c0_186 = arith.constant 0 : index
    %620 = vector.load %arg2[%c3_184, %c0_185, %c0_186] : memref<5x32x128xbf16, #tpu.memory_space<vmem>>, vector<1x32x128xbf16>
    %621 = vector.shape_cast %620 : vector<1x32x128xbf16> to vector<32x128xbf16>
    %c3_187 = arith.constant 3 : index
    %c0_188 = arith.constant 0 : index
    %c0_189 = arith.constant 0 : index
    %622 = vector.load %arg3[%c3_187, %c0_188, %c0_189] : memref<5x1x128xf32, #tpu.memory_space<vmem>>, vector<1x1x128xf32>
    %623 = vector.shape_cast %622 : vector<1x1x128xf32> to vector<1x128xf32>
    %c0_190 = arith.constant 0 : index
    %c0_191 = arith.constant 0 : index
    %624 = vector.load %arg7[%c0_190, %c0_191] : memref<64x32xf32, #tpu.memory_space<vmem>>, vector<64x32xf32>
    %625 = arith.truncf %624 : vector<64x32xf32> to vector<64x32xbf16>
    %cst_192 = arith.constant dense<0.000000e+00> : vector<64x128xf32>
    %626 = tpu.matmul %625, %619, %cst_192 {dimension_numbers = #tpu.dot_dimension_numbers<[1], [0], [0], [1], [0, 0, 1, 1], [], []>} : vector<64x32xbf16>, vector<32x128xbf16>, vector<64x128xf32> -> vector<64x128xf32>
    %627 = vector.broadcast %623 : vector<1x128xf32> to vector<64x128xf32>
    %628 = arith.addf %626, %627 : vector<64x128xf32>
    %c0_193 = arith.constant 0 : index
    %c0_194 = arith.constant 0 : index
    %629 = vector.load %arg8[%c0_193, %c0_194] : memref<64x128xf32, #tpu.memory_space<vmem>>, vector<64x128xf32>
    tpu.vector_store %arg8[%c0_193, %c0_194], %628 {strides = array<i32>} : memref<64x128xf32, #tpu.memory_space<vmem>>, vector<64x128xf32>,
    %cst_195 = arith.constant 0.000000e+00 : f32
    %630 = vector.broadcast %cst_195 : f32 to vector<8x32xf32>
    %cst_196 = arith.constant 0.000000e+00 : f32
    %631 = vector.broadcast %cst_196 : f32 to vector<8x32xf32>
    %c0_i32_197 = arith.constant 0 : i32
    %c8_i32_198 = arith.constant 8 : i32
    %632 = arith.muli %c0_i32_197, %c8_i32_198 : i32
    %633 = tpu.assume_multiple %632, 8 : i32
    %634 = arith.index_cast %633 : i32 to index
    %c0_199 = arith.constant 0 : index
    %635 = vector.load %arg8[%634, %c0_199] : memref<64x128xf32, #tpu.memory_space<vmem>>, vector<8x128xf32>
    %636 = arith.truncf %630 : vector<8x32xf32> to vector<8x32xbf16>
    %cst_200 = arith.constant dense<0.000000e+00> : vector<8x128xf32>
    %637 = tpu.matmul %636, %621, %cst_200 {dimension_numbers = #tpu.dot_dimension_numbers<[1], [0], [0], [1], [0, 0, 1, 1], [], []>} : vector<8x32xbf16>, vector<32x128xbf16>, vector<8x128xf32> -> vector<8x128xf32>
    %638 = arith.addf %635, %637 : vector<8x128xf32>
    %639 = arith.negf %638 : vector<8x128xf32>
    %640 = math.exp %639 : vector<8x128xf32>
    %cst_201 = arith.constant 1.000000e+00 : f32
    %641 = vector.broadcast %cst_201 : f32 to vector<8x128xf32>
    %642 = arith.addf %641, %640 : vector<8x128xf32>
    %643 = arith.divf %641, %642 : vector<8x128xf32>
    %644 = math.tanh %638 : vector<8x128xf32>
    %645 = vector.extract_strided_slice %643 {offsets = [0, 32], sizes = [8, 32], strides = [1, 1]} : vector<8x128xf32> to vector<8x32xf32>
    %646 = arith.mulf %645, %631 : vector<8x32xf32>
    %647 = vector.extract_strided_slice %643 {offsets = [0, 0], sizes = [8, 32], strides = [1, 1]} : vector<8x128xf32> to vector<8x32xf32>
    %648 = vector.extract_strided_slice %644 {offsets = [0, 64], sizes = [8, 32], strides = [1, 1]} : vector<8x128xf32> to vector<8x32xf32>
    %649 = arith.mulf %647, %648 : vector<8x32xf32>
    %650 = arith.addf %646, %649 : vector<8x32xf32>
    %651 = vector.extract_strided_slice %643 {offsets = [0, 96], sizes = [8, 32], strides = [1, 1]} : vector<8x128xf32> to vector<8x32xf32>
    %652 = math.tanh %650 : vector<8x32xf32>
    %653 = arith.mulf %651, %652 : vector<8x32xf32>
    %654 = arith.index_cast %633 : i32 to index
    %c0_202 = arith.constant 0 : index
    %655 = vector.load %arg7[%654, %c0_202] : memref<64x32xf32, #tpu.memory_space<vmem>>, vector<8x32xf32>
    tpu.vector_store %arg7[%654, %c0_202], %653 {strides = array<i32>} : memref<64x32xf32, #tpu.memory_space<vmem>>, vector<8x32xf32>,
    %c1_i32_203 = arith.constant 1 : i32
    %c8_i32_204 = arith.constant 8 : i32
    %656 = arith.muli %c1_i32_203, %c8_i32_204 : i32
    %657 = tpu.assume_multiple %656, 8 : i32
    %658 = arith.index_cast %657 : i32 to index
    %c0_205 = arith.constant 0 : index
    %659 = vector.load %arg8[%658, %c0_205] : memref<64x128xf32, #tpu.memory_space<vmem>>, vector<8x128xf32>
    %660 = arith.truncf %653 : vector<8x32xf32> to vector<8x32xbf16>
    %cst_206 = arith.constant dense<0.000000e+00> : vector<8x128xf32>
    %661 = tpu.matmul %660, %621, %cst_206 {dimension_numbers = #tpu.dot_dimension_numbers<[1], [0], [0], [1], [0, 0, 1, 1], [], []>} : vector<8x32xbf16>, vector<32x128xbf16>, vector<8x128xf32> -> vector<8x128xf32>
    %662 = arith.addf %659, %661 : vector<8x128xf32>
    %663 = arith.negf %662 : vector<8x128xf32>
    %664 = math.exp %663 : vector<8x128xf32>
    %cst_207 = arith.constant 1.000000e+00 : f32
    %665 = vector.broadcast %cst_207 : f32 to vector<8x128xf32>
    %666 = arith.addf %665, %664 : vector<8x128xf32>
    %667 = arith.divf %665, %666 : vector<8x128xf32>
    %668 = math.tanh %662 : vector<8x128xf32>
    %669 = vector.extract_strided_slice %667 {offsets = [0, 32], sizes = [8, 32], strides = [1, 1]} : vector<8x128xf32> to vector<8x32xf32>
    %670 = arith.mulf %669, %650 : vector<8x32xf32>
    %671 = vector.extract_strided_slice %667 {offsets = [0, 0], sizes = [8, 32], strides = [1, 1]} : vector<8x128xf32> to vector<8x32xf32>
    %672 = vector.extract_strided_slice %668 {offsets = [0, 64], sizes = [8, 32], strides = [1, 1]} : vector<8x128xf32> to vector<8x32xf32>
    %673 = arith.mulf %671, %672 : vector<8x32xf32>
    %674 = arith.addf %670, %673 : vector<8x32xf32>
    %675 = vector.extract_strided_slice %667 {offsets = [0, 96], sizes = [8, 32], strides = [1, 1]} : vector<8x128xf32> to vector<8x32xf32>
    %676 = math.tanh %674 : vector<8x32xf32>
    %677 = arith.mulf %675, %676 : vector<8x32xf32>
    %678 = arith.index_cast %657 : i32 to index
    %c0_208 = arith.constant 0 : index
    %679 = vector.load %arg7[%678, %c0_208] : memref<64x32xf32, #tpu.memory_space<vmem>>, vector<8x32xf32>
    tpu.vector_store %arg7[%678, %c0_208], %677 {strides = array<i32>} : memref<64x32xf32, #tpu.memory_space<vmem>>, vector<8x32xf32>,
    %c2_i32_209 = arith.constant 2 : i32
    %c8_i32_210 = arith.constant 8 : i32
    %680 = arith.muli %c2_i32_209, %c8_i32_210 : i32
    %681 = tpu.assume_multiple %680, 8 : i32
    %682 = arith.index_cast %681 : i32 to index
    %c0_211 = arith.constant 0 : index
    %683 = vector.load %arg8[%682, %c0_211] : memref<64x128xf32, #tpu.memory_space<vmem>>, vector<8x128xf32>
    %684 = arith.truncf %677 : vector<8x32xf32> to vector<8x32xbf16>
    %cst_212 = arith.constant dense<0.000000e+00> : vector<8x128xf32>
    %685 = tpu.matmul %684, %621, %cst_212 {dimension_numbers = #tpu.dot_dimension_numbers<[1], [0], [0], [1], [0, 0, 1, 1], [], []>} : vector<8x32xbf16>, vector<32x128xbf16>, vector<8x128xf32> -> vector<8x128xf32>
    %686 = arith.addf %683, %685 : vector<8x128xf32>
    %687 = arith.negf %686 : vector<8x128xf32>
    %688 = math.exp %687 : vector<8x128xf32>
    %cst_213 = arith.constant 1.000000e+00 : f32
    %689 = vector.broadcast %cst_213 : f32 to vector<8x128xf32>
    %690 = arith.addf %689, %688 : vector<8x128xf32>
    %691 = arith.divf %689, %690 : vector<8x128xf32>
    %692 = math.tanh %686 : vector<8x128xf32>
    %693 = vector.extract_strided_slice %691 {offsets = [0, 32], sizes = [8, 32], strides = [1, 1]} : vector<8x128xf32> to vector<8x32xf32>
    %694 = arith.mulf %693, %674 : vector<8x32xf32>
    %695 = vector.extract_strided_slice %691 {offsets = [0, 0], sizes = [8, 32], strides = [1, 1]} : vector<8x128xf32> to vector<8x32xf32>
    %696 = vector.extract_strided_slice %692 {offsets = [0, 64], sizes = [8, 32], strides = [1, 1]} : vector<8x128xf32> to vector<8x32xf32>
    %697 = arith.mulf %695, %696 : vector<8x32xf32>
    %698 = arith.addf %694, %697 : vector<8x32xf32>
    %699 = vector.extract_strided_slice %691 {offsets = [0, 96], sizes = [8, 32], strides = [1, 1]} : vector<8x128xf32> to vector<8x32xf32>
    %700 = math.tanh %698 : vector<8x32xf32>
    %701 = arith.mulf %699, %700 : vector<8x32xf32>
    %702 = arith.index_cast %681 : i32 to index
    %c0_214 = arith.constant 0 : index
    %703 = vector.load %arg7[%702, %c0_214] : memref<64x32xf32, #tpu.memory_space<vmem>>, vector<8x32xf32>
    tpu.vector_store %arg7[%702, %c0_214], %701 {strides = array<i32>} : memref<64x32xf32, #tpu.memory_space<vmem>>, vector<8x32xf32>,
    %c3_i32_215 = arith.constant 3 : i32
    %c8_i32_216 = arith.constant 8 : i32
    %704 = arith.muli %c3_i32_215, %c8_i32_216 : i32
    %705 = tpu.assume_multiple %704, 8 : i32
    %706 = arith.index_cast %705 : i32 to index
    %c0_217 = arith.constant 0 : index
    %707 = vector.load %arg8[%706, %c0_217] : memref<64x128xf32, #tpu.memory_space<vmem>>, vector<8x128xf32>
    %708 = arith.truncf %701 : vector<8x32xf32> to vector<8x32xbf16>
    %cst_218 = arith.constant dense<0.000000e+00> : vector<8x128xf32>
    %709 = tpu.matmul %708, %621, %cst_218 {dimension_numbers = #tpu.dot_dimension_numbers<[1], [0], [0], [1], [0, 0, 1, 1], [], []>} : vector<8x32xbf16>, vector<32x128xbf16>, vector<8x128xf32> -> vector<8x128xf32>
    %710 = arith.addf %707, %709 : vector<8x128xf32>
    %711 = arith.negf %710 : vector<8x128xf32>
    %712 = math.exp %711 : vector<8x128xf32>
    %cst_219 = arith.constant 1.000000e+00 : f32
    %713 = vector.broadcast %cst_219 : f32 to vector<8x128xf32>
    %714 = arith.addf %713, %712 : vector<8x128xf32>
    %715 = arith.divf %713, %714 : vector<8x128xf32>
    %716 = math.tanh %710 : vector<8x128xf32>
    %717 = vector.extract_strided_slice %715 {offsets = [0, 32], sizes = [8, 32], strides = [1, 1]} : vector<8x128xf32> to vector<8x32xf32>
    %718 = arith.mulf %717, %698 : vector<8x32xf32>
    %719 = vector.extract_strided_slice %715 {offsets = [0, 0], sizes = [8, 32], strides = [1, 1]} : vector<8x128xf32> to vector<8x32xf32>
    %720 = vector.extract_strided_slice %716 {offsets = [0, 64], sizes = [8, 32], strides = [1, 1]} : vector<8x128xf32> to vector<8x32xf32>
    %721 = arith.mulf %719, %720 : vector<8x32xf32>
    %722 = arith.addf %718, %721 : vector<8x32xf32>
    %723 = vector.extract_strided_slice %715 {offsets = [0, 96], sizes = [8, 32], strides = [1, 1]} : vector<8x128xf32> to vector<8x32xf32>
    %724 = math.tanh %722 : vector<8x32xf32>
    %725 = arith.mulf %723, %724 : vector<8x32xf32>
    %726 = arith.index_cast %705 : i32 to index
    %c0_220 = arith.constant 0 : index
    %727 = vector.load %arg7[%726, %c0_220] : memref<64x32xf32, #tpu.memory_space<vmem>>, vector<8x32xf32>
    tpu.vector_store %arg7[%726, %c0_220], %725 {strides = array<i32>} : memref<64x32xf32, #tpu.memory_space<vmem>>, vector<8x32xf32>,
    %c4_i32_221 = arith.constant 4 : i32
    %c8_i32_222 = arith.constant 8 : i32
    %728 = arith.muli %c4_i32_221, %c8_i32_222 : i32
    %729 = tpu.assume_multiple %728, 8 : i32
    %730 = arith.index_cast %729 : i32 to index
    %c0_223 = arith.constant 0 : index
    %731 = vector.load %arg8[%730, %c0_223] : memref<64x128xf32, #tpu.memory_space<vmem>>, vector<8x128xf32>
    %732 = arith.truncf %725 : vector<8x32xf32> to vector<8x32xbf16>
    %cst_224 = arith.constant dense<0.000000e+00> : vector<8x128xf32>
    %733 = tpu.matmul %732, %621, %cst_224 {dimension_numbers = #tpu.dot_dimension_numbers<[1], [0], [0], [1], [0, 0, 1, 1], [], []>} : vector<8x32xbf16>, vector<32x128xbf16>, vector<8x128xf32> -> vector<8x128xf32>
    %734 = arith.addf %731, %733 : vector<8x128xf32>
    %735 = arith.negf %734 : vector<8x128xf32>
    %736 = math.exp %735 : vector<8x128xf32>
    %cst_225 = arith.constant 1.000000e+00 : f32
    %737 = vector.broadcast %cst_225 : f32 to vector<8x128xf32>
    %738 = arith.addf %737, %736 : vector<8x128xf32>
    %739 = arith.divf %737, %738 : vector<8x128xf32>
    %740 = math.tanh %734 : vector<8x128xf32>
    %741 = vector.extract_strided_slice %739 {offsets = [0, 32], sizes = [8, 32], strides = [1, 1]} : vector<8x128xf32> to vector<8x32xf32>
    %742 = arith.mulf %741, %722 : vector<8x32xf32>
    %743 = vector.extract_strided_slice %739 {offsets = [0, 0], sizes = [8, 32], strides = [1, 1]} : vector<8x128xf32> to vector<8x32xf32>
    %744 = vector.extract_strided_slice %740 {offsets = [0, 64], sizes = [8, 32], strides = [1, 1]} : vector<8x128xf32> to vector<8x32xf32>
    %745 = arith.mulf %743, %744 : vector<8x32xf32>
    %746 = arith.addf %742, %745 : vector<8x32xf32>
    %747 = vector.extract_strided_slice %739 {offsets = [0, 96], sizes = [8, 32], strides = [1, 1]} : vector<8x128xf32> to vector<8x32xf32>
    %748 = math.tanh %746 : vector<8x32xf32>
    %749 = arith.mulf %747, %748 : vector<8x32xf32>
    %750 = arith.index_cast %729 : i32 to index
    %c0_226 = arith.constant 0 : index
    %751 = vector.load %arg7[%750, %c0_226] : memref<64x32xf32, #tpu.memory_space<vmem>>, vector<8x32xf32>
    tpu.vector_store %arg7[%750, %c0_226], %749 {strides = array<i32>} : memref<64x32xf32, #tpu.memory_space<vmem>>, vector<8x32xf32>,
    %c5_i32_227 = arith.constant 5 : i32
    %c8_i32_228 = arith.constant 8 : i32
    %752 = arith.muli %c5_i32_227, %c8_i32_228 : i32
    %753 = tpu.assume_multiple %752, 8 : i32
    %754 = arith.index_cast %753 : i32 to index
    %c0_229 = arith.constant 0 : index
    %755 = vector.load %arg8[%754, %c0_229] : memref<64x128xf32, #tpu.memory_space<vmem>>, vector<8x128xf32>
    %756 = arith.truncf %749 : vector<8x32xf32> to vector<8x32xbf16>
    %cst_230 = arith.constant dense<0.000000e+00> : vector<8x128xf32>
    %757 = tpu.matmul %756, %621, %cst_230 {dimension_numbers = #tpu.dot_dimension_numbers<[1], [0], [0], [1], [0, 0, 1, 1], [], []>} : vector<8x32xbf16>, vector<32x128xbf16>, vector<8x128xf32> -> vector<8x128xf32>
    %758 = arith.addf %755, %757 : vector<8x128xf32>
    %759 = arith.negf %758 : vector<8x128xf32>
    %760 = math.exp %759 : vector<8x128xf32>
    %cst_231 = arith.constant 1.000000e+00 : f32
    %761 = vector.broadcast %cst_231 : f32 to vector<8x128xf32>
    %762 = arith.addf %761, %760 : vector<8x128xf32>
    %763 = arith.divf %761, %762 : vector<8x128xf32>
    %764 = math.tanh %758 : vector<8x128xf32>
    %765 = vector.extract_strided_slice %763 {offsets = [0, 32], sizes = [8, 32], strides = [1, 1]} : vector<8x128xf32> to vector<8x32xf32>
    %766 = arith.mulf %765, %746 : vector<8x32xf32>
    %767 = vector.extract_strided_slice %763 {offsets = [0, 0], sizes = [8, 32], strides = [1, 1]} : vector<8x128xf32> to vector<8x32xf32>
    %768 = vector.extract_strided_slice %764 {offsets = [0, 64], sizes = [8, 32], strides = [1, 1]} : vector<8x128xf32> to vector<8x32xf32>
    %769 = arith.mulf %767, %768 : vector<8x32xf32>
    %770 = arith.addf %766, %769 : vector<8x32xf32>
    %771 = vector.extract_strided_slice %763 {offsets = [0, 96], sizes = [8, 32], strides = [1, 1]} : vector<8x128xf32> to vector<8x32xf32>
    %772 = math.tanh %770 : vector<8x32xf32>
    %773 = arith.mulf %771, %772 : vector<8x32xf32>
    %774 = arith.index_cast %753 : i32 to index
    %c0_232 = arith.constant 0 : index
    %775 = vector.load %arg7[%774, %c0_232] : memref<64x32xf32, #tpu.memory_space<vmem>>, vector<8x32xf32>
    tpu.vector_store %arg7[%774, %c0_232], %773 {strides = array<i32>} : memref<64x32xf32, #tpu.memory_space<vmem>>, vector<8x32xf32>,
    %c6_i32_233 = arith.constant 6 : i32
    %c8_i32_234 = arith.constant 8 : i32
    %776 = arith.muli %c6_i32_233, %c8_i32_234 : i32
    %777 = tpu.assume_multiple %776, 8 : i32
    %778 = arith.index_cast %777 : i32 to index
    %c0_235 = arith.constant 0 : index
    %779 = vector.load %arg8[%778, %c0_235] : memref<64x128xf32, #tpu.memory_space<vmem>>, vector<8x128xf32>
    %780 = arith.truncf %773 : vector<8x32xf32> to vector<8x32xbf16>
    %cst_236 = arith.constant dense<0.000000e+00> : vector<8x128xf32>
    %781 = tpu.matmul %780, %621, %cst_236 {dimension_numbers = #tpu.dot_dimension_numbers<[1], [0], [0], [1], [0, 0, 1, 1], [], []>} : vector<8x32xbf16>, vector<32x128xbf16>, vector<8x128xf32> -> vector<8x128xf32>
    %782 = arith.addf %779, %781 : vector<8x128xf32>
    %783 = arith.negf %782 : vector<8x128xf32>
    %784 = math.exp %783 : vector<8x128xf32>
    %cst_237 = arith.constant 1.000000e+00 : f32
    %785 = vector.broadcast %cst_237 : f32 to vector<8x128xf32>
    %786 = arith.addf %785, %784 : vector<8x128xf32>
    %787 = arith.divf %785, %786 : vector<8x128xf32>
    %788 = math.tanh %782 : vector<8x128xf32>
    %789 = vector.extract_strided_slice %787 {offsets = [0, 32], sizes = [8, 32], strides = [1, 1]} : vector<8x128xf32> to vector<8x32xf32>
    %790 = arith.mulf %789, %770 : vector<8x32xf32>
    %791 = vector.extract_strided_slice %787 {offsets = [0, 0], sizes = [8, 32], strides = [1, 1]} : vector<8x128xf32> to vector<8x32xf32>
    %792 = vector.extract_strided_slice %788 {offsets = [0, 64], sizes = [8, 32], strides = [1, 1]} : vector<8x128xf32> to vector<8x32xf32>
    %793 = arith.mulf %791, %792 : vector<8x32xf32>
    %794 = arith.addf %790, %793 : vector<8x32xf32>
    %795 = vector.extract_strided_slice %787 {offsets = [0, 96], sizes = [8, 32], strides = [1, 1]} : vector<8x128xf32> to vector<8x32xf32>
    %796 = math.tanh %794 : vector<8x32xf32>
    %797 = arith.mulf %795, %796 : vector<8x32xf32>
    %798 = arith.index_cast %777 : i32 to index
    %c0_238 = arith.constant 0 : index
    %799 = vector.load %arg7[%798, %c0_238] : memref<64x32xf32, #tpu.memory_space<vmem>>, vector<8x32xf32>
    tpu.vector_store %arg7[%798, %c0_238], %797 {strides = array<i32>} : memref<64x32xf32, #tpu.memory_space<vmem>>, vector<8x32xf32>,
    %c7_i32_239 = arith.constant 7 : i32
    %c8_i32_240 = arith.constant 8 : i32
    %800 = arith.muli %c7_i32_239, %c8_i32_240 : i32
    %801 = tpu.assume_multiple %800, 8 : i32
    %802 = arith.index_cast %801 : i32 to index
    %c0_241 = arith.constant 0 : index
    %803 = vector.load %arg8[%802, %c0_241] : memref<64x128xf32, #tpu.memory_space<vmem>>, vector<8x128xf32>
    %804 = arith.truncf %797 : vector<8x32xf32> to vector<8x32xbf16>
    %cst_242 = arith.constant dense<0.000000e+00> : vector<8x128xf32>
    %805 = tpu.matmul %804, %621, %cst_242 {dimension_numbers = #tpu.dot_dimension_numbers<[1], [0], [0], [1], [0, 0, 1, 1], [], []>} : vector<8x32xbf16>, vector<32x128xbf16>, vector<8x128xf32> -> vector<8x128xf32>
    %806 = arith.addf %803, %805 : vector<8x128xf32>
    %807 = arith.negf %806 : vector<8x128xf32>
    %808 = math.exp %807 : vector<8x128xf32>
    %cst_243 = arith.constant 1.000000e+00 : f32
    %809 = vector.broadcast %cst_243 : f32 to vector<8x128xf32>
    %810 = arith.addf %809, %808 : vector<8x128xf32>
    %811 = arith.divf %809, %810 : vector<8x128xf32>
    %812 = math.tanh %806 : vector<8x128xf32>
    %813 = vector.extract_strided_slice %811 {offsets = [0, 32], sizes = [8, 32], strides = [1, 1]} : vector<8x128xf32> to vector<8x32xf32>
    %814 = arith.mulf %813, %794 : vector<8x32xf32>
    %815 = vector.extract_strided_slice %811 {offsets = [0, 0], sizes = [8, 32], strides = [1, 1]} : vector<8x128xf32> to vector<8x32xf32>
    %816 = vector.extract_strided_slice %812 {offsets = [0, 64], sizes = [8, 32], strides = [1, 1]} : vector<8x128xf32> to vector<8x32xf32>
    %817 = arith.mulf %815, %816 : vector<8x32xf32>
    %818 = arith.addf %814, %817 : vector<8x32xf32>
    %819 = vector.extract_strided_slice %811 {offsets = [0, 96], sizes = [8, 32], strides = [1, 1]} : vector<8x128xf32> to vector<8x32xf32>
    %820 = math.tanh %818 : vector<8x32xf32>
    %821 = arith.mulf %819, %820 : vector<8x32xf32>
    %822 = arith.index_cast %801 : i32 to index
    %c0_244 = arith.constant 0 : index
    %823 = vector.load %arg7[%822, %c0_244] : memref<64x32xf32, #tpu.memory_space<vmem>>, vector<8x32xf32>
    tpu.vector_store %arg7[%822, %c0_244], %821 {strides = array<i32>} : memref<64x32xf32, #tpu.memory_space<vmem>>, vector<8x32xf32>,
    %c8_i32_245 = arith.constant 8 : i32
    %c4 = arith.constant 4 : index
    %c0_246 = arith.constant 0 : index
    %c0_247 = arith.constant 0 : index
    %824 = vector.load %arg1[%c4, %c0_246, %c0_247] : memref<5x32x128xbf16, #tpu.memory_space<vmem>>, vector<1x32x128xbf16>
    %825 = vector.shape_cast %824 : vector<1x32x128xbf16> to vector<32x128xbf16>
    %c4_248 = arith.constant 4 : index
    %c0_249 = arith.constant 0 : index
    %c0_250 = arith.constant 0 : index
    %826 = vector.load %arg2[%c4_248, %c0_249, %c0_250] : memref<5x32x128xbf16, #tpu.memory_space<vmem>>, vector<1x32x128xbf16>
    %827 = vector.shape_cast %826 : vector<1x32x128xbf16> to vector<32x128xbf16>
    %c4_251 = arith.constant 4 : index
    %c0_252 = arith.constant 0 : index
    %c0_253 = arith.constant 0 : index
    %828 = vector.load %arg3[%c4_251, %c0_252, %c0_253] : memref<5x1x128xf32, #tpu.memory_space<vmem>>, vector<1x1x128xf32>
    %829 = vector.shape_cast %828 : vector<1x1x128xf32> to vector<1x128xf32>
    %c0_254 = arith.constant 0 : index
    %c0_255 = arith.constant 0 : index
    %830 = vector.load %arg7[%c0_254, %c0_255] : memref<64x32xf32, #tpu.memory_space<vmem>>, vector<64x32xf32>
    %831 = arith.truncf %830 : vector<64x32xf32> to vector<64x32xbf16>
    %cst_256 = arith.constant dense<0.000000e+00> : vector<64x128xf32>
    %832 = tpu.matmul %831, %825, %cst_256 {dimension_numbers = #tpu.dot_dimension_numbers<[1], [0], [0], [1], [0, 0, 1, 1], [], []>} : vector<64x32xbf16>, vector<32x128xbf16>, vector<64x128xf32> -> vector<64x128xf32>
    %833 = vector.broadcast %829 : vector<1x128xf32> to vector<64x128xf32>
    %834 = arith.addf %832, %833 : vector<64x128xf32>
    %c0_257 = arith.constant 0 : index
    %c0_258 = arith.constant 0 : index
    %835 = vector.load %arg8[%c0_257, %c0_258] : memref<64x128xf32, #tpu.memory_space<vmem>>, vector<64x128xf32>
    tpu.vector_store %arg8[%c0_257, %c0_258], %834 {strides = array<i32>} : memref<64x128xf32, #tpu.memory_space<vmem>>, vector<64x128xf32>,
    %cst_259 = arith.constant 0.000000e+00 : f32
    %836 = vector.broadcast %cst_259 : f32 to vector<8x32xf32>
    %cst_260 = arith.constant 0.000000e+00 : f32
    %837 = vector.broadcast %cst_260 : f32 to vector<8x32xf32>
    %c0_i32_261 = arith.constant 0 : i32
    %c8_i32_262 = arith.constant 8 : i32
    %838 = arith.muli %c0_i32_261, %c8_i32_262 : i32
    %839 = tpu.assume_multiple %838, 8 : i32
    %840 = arith.index_cast %839 : i32 to index
    %c0_263 = arith.constant 0 : index
    %841 = vector.load %arg8[%840, %c0_263] : memref<64x128xf32, #tpu.memory_space<vmem>>, vector<8x128xf32>
    %842 = arith.truncf %836 : vector<8x32xf32> to vector<8x32xbf16>
    %cst_264 = arith.constant dense<0.000000e+00> : vector<8x128xf32>
    %843 = tpu.matmul %842, %827, %cst_264 {dimension_numbers = #tpu.dot_dimension_numbers<[1], [0], [0], [1], [0, 0, 1, 1], [], []>} : vector<8x32xbf16>, vector<32x128xbf16>, vector<8x128xf32> -> vector<8x128xf32>
    %844 = arith.addf %841, %843 : vector<8x128xf32>
    %845 = arith.negf %844 : vector<8x128xf32>
    %846 = math.exp %845 : vector<8x128xf32>
    %cst_265 = arith.constant 1.000000e+00 : f32
    %847 = vector.broadcast %cst_265 : f32 to vector<8x128xf32>
    %848 = arith.addf %847, %846 : vector<8x128xf32>
    %849 = arith.divf %847, %848 : vector<8x128xf32>
    %850 = math.tanh %844 : vector<8x128xf32>
    %851 = vector.extract_strided_slice %849 {offsets = [0, 32], sizes = [8, 32], strides = [1, 1]} : vector<8x128xf32> to vector<8x32xf32>
    %852 = arith.mulf %851, %837 : vector<8x32xf32>
    %853 = vector.extract_strided_slice %849 {offsets = [0, 0], sizes = [8, 32], strides = [1, 1]} : vector<8x128xf32> to vector<8x32xf32>
    %854 = vector.extract_strided_slice %850 {offsets = [0, 64], sizes = [8, 32], strides = [1, 1]} : vector<8x128xf32> to vector<8x32xf32>
    %855 = arith.mulf %853, %854 : vector<8x32xf32>
    %856 = arith.addf %852, %855 : vector<8x32xf32>
    %857 = vector.extract_strided_slice %849 {offsets = [0, 96], sizes = [8, 32], strides = [1, 1]} : vector<8x128xf32> to vector<8x32xf32>
    %858 = math.tanh %856 : vector<8x32xf32>
    %859 = arith.mulf %857, %858 : vector<8x32xf32>
    %c1_i32_266 = arith.constant 1 : i32
    %c8_i32_267 = arith.constant 8 : i32
    %860 = arith.muli %c1_i32_266, %c8_i32_267 : i32
    %861 = tpu.assume_multiple %860, 8 : i32
    %862 = arith.index_cast %861 : i32 to index
    %c0_268 = arith.constant 0 : index
    %863 = vector.load %arg8[%862, %c0_268] : memref<64x128xf32, #tpu.memory_space<vmem>>, vector<8x128xf32>
    %864 = arith.truncf %859 : vector<8x32xf32> to vector<8x32xbf16>
    %cst_269 = arith.constant dense<0.000000e+00> : vector<8x128xf32>
    %865 = tpu.matmul %864, %827, %cst_269 {dimension_numbers = #tpu.dot_dimension_numbers<[1], [0], [0], [1], [0, 0, 1, 1], [], []>} : vector<8x32xbf16>, vector<32x128xbf16>, vector<8x128xf32> -> vector<8x128xf32>
    %866 = arith.addf %863, %865 : vector<8x128xf32>
    %867 = arith.negf %866 : vector<8x128xf32>
    %868 = math.exp %867 : vector<8x128xf32>
    %cst_270 = arith.constant 1.000000e+00 : f32
    %869 = vector.broadcast %cst_270 : f32 to vector<8x128xf32>
    %870 = arith.addf %869, %868 : vector<8x128xf32>
    %871 = arith.divf %869, %870 : vector<8x128xf32>
    %872 = math.tanh %866 : vector<8x128xf32>
    %873 = vector.extract_strided_slice %871 {offsets = [0, 32], sizes = [8, 32], strides = [1, 1]} : vector<8x128xf32> to vector<8x32xf32>
    %874 = arith.mulf %873, %856 : vector<8x32xf32>
    %875 = vector.extract_strided_slice %871 {offsets = [0, 0], sizes = [8, 32], strides = [1, 1]} : vector<8x128xf32> to vector<8x32xf32>
    %876 = vector.extract_strided_slice %872 {offsets = [0, 64], sizes = [8, 32], strides = [1, 1]} : vector<8x128xf32> to vector<8x32xf32>
    %877 = arith.mulf %875, %876 : vector<8x32xf32>
    %878 = arith.addf %874, %877 : vector<8x32xf32>
    %879 = vector.extract_strided_slice %871 {offsets = [0, 96], sizes = [8, 32], strides = [1, 1]} : vector<8x128xf32> to vector<8x32xf32>
    %880 = math.tanh %878 : vector<8x32xf32>
    %881 = arith.mulf %879, %880 : vector<8x32xf32>
    %c2_i32_271 = arith.constant 2 : i32
    %c8_i32_272 = arith.constant 8 : i32
    %882 = arith.muli %c2_i32_271, %c8_i32_272 : i32
    %883 = tpu.assume_multiple %882, 8 : i32
    %884 = arith.index_cast %883 : i32 to index
    %c0_273 = arith.constant 0 : index
    %885 = vector.load %arg8[%884, %c0_273] : memref<64x128xf32, #tpu.memory_space<vmem>>, vector<8x128xf32>
    %886 = arith.truncf %881 : vector<8x32xf32> to vector<8x32xbf16>
    %cst_274 = arith.constant dense<0.000000e+00> : vector<8x128xf32>
    %887 = tpu.matmul %886, %827, %cst_274 {dimension_numbers = #tpu.dot_dimension_numbers<[1], [0], [0], [1], [0, 0, 1, 1], [], []>} : vector<8x32xbf16>, vector<32x128xbf16>, vector<8x128xf32> -> vector<8x128xf32>
    %888 = arith.addf %885, %887 : vector<8x128xf32>
    %889 = arith.negf %888 : vector<8x128xf32>
    %890 = math.exp %889 : vector<8x128xf32>
    %cst_275 = arith.constant 1.000000e+00 : f32
    %891 = vector.broadcast %cst_275 : f32 to vector<8x128xf32>
    %892 = arith.addf %891, %890 : vector<8x128xf32>
    %893 = arith.divf %891, %892 : vector<8x128xf32>
    %894 = math.tanh %888 : vector<8x128xf32>
    %895 = vector.extract_strided_slice %893 {offsets = [0, 32], sizes = [8, 32], strides = [1, 1]} : vector<8x128xf32> to vector<8x32xf32>
    %896 = arith.mulf %895, %878 : vector<8x32xf32>
    %897 = vector.extract_strided_slice %893 {offsets = [0, 0], sizes = [8, 32], strides = [1, 1]} : vector<8x128xf32> to vector<8x32xf32>
    %898 = vector.extract_strided_slice %894 {offsets = [0, 64], sizes = [8, 32], strides = [1, 1]} : vector<8x128xf32> to vector<8x32xf32>
    %899 = arith.mulf %897, %898 : vector<8x32xf32>
    %900 = arith.addf %896, %899 : vector<8x32xf32>
    %901 = vector.extract_strided_slice %893 {offsets = [0, 96], sizes = [8, 32], strides = [1, 1]} : vector<8x128xf32> to vector<8x32xf32>
    %902 = math.tanh %900 : vector<8x32xf32>
    %903 = arith.mulf %901, %902 : vector<8x32xf32>
    %c3_i32_276 = arith.constant 3 : i32
    %c8_i32_277 = arith.constant 8 : i32
    %904 = arith.muli %c3_i32_276, %c8_i32_277 : i32
    %905 = tpu.assume_multiple %904, 8 : i32
    %906 = arith.index_cast %905 : i32 to index
    %c0_278 = arith.constant 0 : index
    %907 = vector.load %arg8[%906, %c0_278] : memref<64x128xf32, #tpu.memory_space<vmem>>, vector<8x128xf32>
    %908 = arith.truncf %903 : vector<8x32xf32> to vector<8x32xbf16>
    %cst_279 = arith.constant dense<0.000000e+00> : vector<8x128xf32>
    %909 = tpu.matmul %908, %827, %cst_279 {dimension_numbers = #tpu.dot_dimension_numbers<[1], [0], [0], [1], [0, 0, 1, 1], [], []>} : vector<8x32xbf16>, vector<32x128xbf16>, vector<8x128xf32> -> vector<8x128xf32>
    %910 = arith.addf %907, %909 : vector<8x128xf32>
    %911 = arith.negf %910 : vector<8x128xf32>
    %912 = math.exp %911 : vector<8x128xf32>
    %cst_280 = arith.constant 1.000000e+00 : f32
    %913 = vector.broadcast %cst_280 : f32 to vector<8x128xf32>
    %914 = arith.addf %913, %912 : vector<8x128xf32>
    %915 = arith.divf %913, %914 : vector<8x128xf32>
    %916 = math.tanh %910 : vector<8x128xf32>
    %917 = vector.extract_strided_slice %915 {offsets = [0, 32], sizes = [8, 32], strides = [1, 1]} : vector<8x128xf32> to vector<8x32xf32>
    %918 = arith.mulf %917, %900 : vector<8x32xf32>
    %919 = vector.extract_strided_slice %915 {offsets = [0, 0], sizes = [8, 32], strides = [1, 1]} : vector<8x128xf32> to vector<8x32xf32>
    %920 = vector.extract_strided_slice %916 {offsets = [0, 64], sizes = [8, 32], strides = [1, 1]} : vector<8x128xf32> to vector<8x32xf32>
    %921 = arith.mulf %919, %920 : vector<8x32xf32>
    %922 = arith.addf %918, %921 : vector<8x32xf32>
    %923 = vector.extract_strided_slice %915 {offsets = [0, 96], sizes = [8, 32], strides = [1, 1]} : vector<8x128xf32> to vector<8x32xf32>
    %924 = math.tanh %922 : vector<8x32xf32>
    %925 = arith.mulf %923, %924 : vector<8x32xf32>
    %c4_i32_281 = arith.constant 4 : i32
    %c8_i32_282 = arith.constant 8 : i32
    %926 = arith.muli %c4_i32_281, %c8_i32_282 : i32
    %927 = tpu.assume_multiple %926, 8 : i32
    %928 = arith.index_cast %927 : i32 to index
    %c0_283 = arith.constant 0 : index
    %929 = vector.load %arg8[%928, %c0_283] : memref<64x128xf32, #tpu.memory_space<vmem>>, vector<8x128xf32>
    %930 = arith.truncf %925 : vector<8x32xf32> to vector<8x32xbf16>
    %cst_284 = arith.constant dense<0.000000e+00> : vector<8x128xf32>
    %931 = tpu.matmul %930, %827, %cst_284 {dimension_numbers = #tpu.dot_dimension_numbers<[1], [0], [0], [1], [0, 0, 1, 1], [], []>} : vector<8x32xbf16>, vector<32x128xbf16>, vector<8x128xf32> -> vector<8x128xf32>
    %932 = arith.addf %929, %931 : vector<8x128xf32>
    %933 = arith.negf %932 : vector<8x128xf32>
    %934 = math.exp %933 : vector<8x128xf32>
    %cst_285 = arith.constant 1.000000e+00 : f32
    %935 = vector.broadcast %cst_285 : f32 to vector<8x128xf32>
    %936 = arith.addf %935, %934 : vector<8x128xf32>
    %937 = arith.divf %935, %936 : vector<8x128xf32>
    %938 = math.tanh %932 : vector<8x128xf32>
    %939 = vector.extract_strided_slice %937 {offsets = [0, 32], sizes = [8, 32], strides = [1, 1]} : vector<8x128xf32> to vector<8x32xf32>
    %940 = arith.mulf %939, %922 : vector<8x32xf32>
    %941 = vector.extract_strided_slice %937 {offsets = [0, 0], sizes = [8, 32], strides = [1, 1]} : vector<8x128xf32> to vector<8x32xf32>
    %942 = vector.extract_strided_slice %938 {offsets = [0, 64], sizes = [8, 32], strides = [1, 1]} : vector<8x128xf32> to vector<8x32xf32>
    %943 = arith.mulf %941, %942 : vector<8x32xf32>
    %944 = arith.addf %940, %943 : vector<8x32xf32>
    %945 = vector.extract_strided_slice %937 {offsets = [0, 96], sizes = [8, 32], strides = [1, 1]} : vector<8x128xf32> to vector<8x32xf32>
    %946 = math.tanh %944 : vector<8x32xf32>
    %947 = arith.mulf %945, %946 : vector<8x32xf32>
    %c5_i32_286 = arith.constant 5 : i32
    %c8_i32_287 = arith.constant 8 : i32
    %948 = arith.muli %c5_i32_286, %c8_i32_287 : i32
    %949 = tpu.assume_multiple %948, 8 : i32
    %950 = arith.index_cast %949 : i32 to index
    %c0_288 = arith.constant 0 : index
    %951 = vector.load %arg8[%950, %c0_288] : memref<64x128xf32, #tpu.memory_space<vmem>>, vector<8x128xf32>
    %952 = arith.truncf %947 : vector<8x32xf32> to vector<8x32xbf16>
    %cst_289 = arith.constant dense<0.000000e+00> : vector<8x128xf32>
    %953 = tpu.matmul %952, %827, %cst_289 {dimension_numbers = #tpu.dot_dimension_numbers<[1], [0], [0], [1], [0, 0, 1, 1], [], []>} : vector<8x32xbf16>, vector<32x128xbf16>, vector<8x128xf32> -> vector<8x128xf32>
    %954 = arith.addf %951, %953 : vector<8x128xf32>
    %955 = arith.negf %954 : vector<8x128xf32>
    %956 = math.exp %955 : vector<8x128xf32>
    %cst_290 = arith.constant 1.000000e+00 : f32
    %957 = vector.broadcast %cst_290 : f32 to vector<8x128xf32>
    %958 = arith.addf %957, %956 : vector<8x128xf32>
    %959 = arith.divf %957, %958 : vector<8x128xf32>
    %960 = math.tanh %954 : vector<8x128xf32>
    %961 = vector.extract_strided_slice %959 {offsets = [0, 32], sizes = [8, 32], strides = [1, 1]} : vector<8x128xf32> to vector<8x32xf32>
    %962 = arith.mulf %961, %944 : vector<8x32xf32>
    %963 = vector.extract_strided_slice %959 {offsets = [0, 0], sizes = [8, 32], strides = [1, 1]} : vector<8x128xf32> to vector<8x32xf32>
    %964 = vector.extract_strided_slice %960 {offsets = [0, 64], sizes = [8, 32], strides = [1, 1]} : vector<8x128xf32> to vector<8x32xf32>
    %965 = arith.mulf %963, %964 : vector<8x32xf32>
    %966 = arith.addf %962, %965 : vector<8x32xf32>
    %967 = vector.extract_strided_slice %959 {offsets = [0, 96], sizes = [8, 32], strides = [1, 1]} : vector<8x128xf32> to vector<8x32xf32>
    %968 = math.tanh %966 : vector<8x32xf32>
    %969 = arith.mulf %967, %968 : vector<8x32xf32>
    %c6_i32_291 = arith.constant 6 : i32
    %c8_i32_292 = arith.constant 8 : i32
    %970 = arith.muli %c6_i32_291, %c8_i32_292 : i32
    %971 = tpu.assume_multiple %970, 8 : i32
    %972 = arith.index_cast %971 : i32 to index
    %c0_293 = arith.constant 0 : index
    %973 = vector.load %arg8[%972, %c0_293] : memref<64x128xf32, #tpu.memory_space<vmem>>, vector<8x128xf32>
    %974 = arith.truncf %969 : vector<8x32xf32> to vector<8x32xbf16>
    %cst_294 = arith.constant dense<0.000000e+00> : vector<8x128xf32>
    %975 = tpu.matmul %974, %827, %cst_294 {dimension_numbers = #tpu.dot_dimension_numbers<[1], [0], [0], [1], [0, 0, 1, 1], [], []>} : vector<8x32xbf16>, vector<32x128xbf16>, vector<8x128xf32> -> vector<8x128xf32>
    %976 = arith.addf %973, %975 : vector<8x128xf32>
    %977 = arith.negf %976 : vector<8x128xf32>
    %978 = math.exp %977 : vector<8x128xf32>
    %cst_295 = arith.constant 1.000000e+00 : f32
    %979 = vector.broadcast %cst_295 : f32 to vector<8x128xf32>
    %980 = arith.addf %979, %978 : vector<8x128xf32>
    %981 = arith.divf %979, %980 : vector<8x128xf32>
    %982 = math.tanh %976 : vector<8x128xf32>
    %983 = vector.extract_strided_slice %981 {offsets = [0, 32], sizes = [8, 32], strides = [1, 1]} : vector<8x128xf32> to vector<8x32xf32>
    %984 = arith.mulf %983, %966 : vector<8x32xf32>
    %985 = vector.extract_strided_slice %981 {offsets = [0, 0], sizes = [8, 32], strides = [1, 1]} : vector<8x128xf32> to vector<8x32xf32>
    %986 = vector.extract_strided_slice %982 {offsets = [0, 64], sizes = [8, 32], strides = [1, 1]} : vector<8x128xf32> to vector<8x32xf32>
    %987 = arith.mulf %985, %986 : vector<8x32xf32>
    %988 = arith.addf %984, %987 : vector<8x32xf32>
    %989 = vector.extract_strided_slice %981 {offsets = [0, 96], sizes = [8, 32], strides = [1, 1]} : vector<8x128xf32> to vector<8x32xf32>
    %990 = math.tanh %988 : vector<8x32xf32>
    %991 = arith.mulf %989, %990 : vector<8x32xf32>
    %c7_i32_296 = arith.constant 7 : i32
    %c8_i32_297 = arith.constant 8 : i32
    %992 = arith.muli %c7_i32_296, %c8_i32_297 : i32
    %993 = tpu.assume_multiple %992, 8 : i32
    %994 = arith.index_cast %993 : i32 to index
    %c0_298 = arith.constant 0 : index
    %995 = vector.load %arg8[%994, %c0_298] : memref<64x128xf32, #tpu.memory_space<vmem>>, vector<8x128xf32>
    %996 = arith.truncf %991 : vector<8x32xf32> to vector<8x32xbf16>
    %cst_299 = arith.constant dense<0.000000e+00> : vector<8x128xf32>
    %997 = tpu.matmul %996, %827, %cst_299 {dimension_numbers = #tpu.dot_dimension_numbers<[1], [0], [0], [1], [0, 0, 1, 1], [], []>} : vector<8x32xbf16>, vector<32x128xbf16>, vector<8x128xf32> -> vector<8x128xf32>
    %998 = arith.addf %995, %997 : vector<8x128xf32>
    %999 = arith.negf %998 : vector<8x128xf32>
    %1000 = math.exp %999 : vector<8x128xf32>
    %cst_300 = arith.constant 1.000000e+00 : f32
    %1001 = vector.broadcast %cst_300 : f32 to vector<8x128xf32>
    %1002 = arith.addf %1001, %1000 : vector<8x128xf32>
    %1003 = arith.divf %1001, %1002 : vector<8x128xf32>
    %1004 = math.tanh %998 : vector<8x128xf32>
    %1005 = vector.extract_strided_slice %1003 {offsets = [0, 32], sizes = [8, 32], strides = [1, 1]} : vector<8x128xf32> to vector<8x32xf32>
    %1006 = arith.mulf %1005, %988 : vector<8x32xf32>
    %1007 = vector.extract_strided_slice %1003 {offsets = [0, 0], sizes = [8, 32], strides = [1, 1]} : vector<8x128xf32> to vector<8x32xf32>
    %1008 = vector.extract_strided_slice %1004 {offsets = [0, 64], sizes = [8, 32], strides = [1, 1]} : vector<8x128xf32> to vector<8x32xf32>
    %1009 = arith.mulf %1007, %1008 : vector<8x32xf32>
    %1010 = arith.addf %1006, %1009 : vector<8x32xf32>
    %1011 = vector.extract_strided_slice %1003 {offsets = [0, 96], sizes = [8, 32], strides = [1, 1]} : vector<8x128xf32> to vector<8x32xf32>
    %1012 = math.tanh %1010 : vector<8x32xf32>
    %1013 = arith.mulf %1011, %1012 : vector<8x32xf32>
    %c8_i32_301 = arith.constant 8 : i32
    %cst_302 = arith.constant 5.000000e-01 : f32
    %1014 = vector.broadcast %cst_302 : f32 to vector<8x32xf32>
    %1015 = arith.mulf %1014, %1013 : vector<8x32xf32>
    %cst_303 = arith.constant 1.41421354 : f32
    %1016 = vector.broadcast %cst_303 : f32 to vector<8x32xf32>
    %1017 = arith.divf %1013, %1016 : vector<8x32xf32>
    %1018 = math.erf %1017 : vector<8x32xf32>
    %cst_304 = arith.constant 1.000000e+00 : f32
    %1019 = vector.broadcast %cst_304 : f32 to vector<8x32xf32>
    %1020 = arith.addf %1019, %1018 : vector<8x32xf32>
    %1021 = arith.mulf %1015, %1020 : vector<8x32xf32>
    %1022 = arith.truncf %1021 : vector<8x32xf32> to vector<8x32xbf16>
    %c0_305 = arith.constant 0 : index
    %c0_306 = arith.constant 0 : index
    %1023 = vector.load %arg4[%c0_305, %c0_306] : memref<32x128xbf16, #tpu.memory_space<vmem>>, vector<32x128xbf16>
    %cst_307 = arith.constant dense<0.000000e+00> : vector<8x128xf32>
    %1024 = tpu.matmul %1022, %1023, %cst_307 {dimension_numbers = #tpu.dot_dimension_numbers<[1], [0], [0], [1], [0, 0, 1, 1], [], []>} : vector<8x32xbf16>, vector<32x128xbf16>, vector<8x128xf32> -> vector<8x128xf32>
    %c0_308 = arith.constant 0 : index
    %c0_309 = arith.constant 0 : index
    %1025 = vector.load %arg5[%c0_308, %c0_309] : memref<1x128xf32, #tpu.memory_space<vmem>>, vector<1x128xf32>
    %1026 = vector.broadcast %1025 : vector<1x128xf32> to vector<8x128xf32>
    %1027 = arith.addf %1024, %1026 : vector<8x128xf32>
    %c0_310 = arith.constant 0 : index
    %c0_311 = arith.constant 0 : index
    %1028 = vector.load %arg6[%c0_310, %c0_311] : memref<8x128xf32, #tpu.memory_space<vmem>>, vector<8x128xf32>
    tpu.vector_store %arg6[%c0_310, %c0_311], %1027 {strides = array<i32>} : memref<8x128xf32, #tpu.memory_space<vmem>>, vector<8x128xf32>,
    return
  }
}

</mosaic_0001>

<llo_original>
// kernel: lstm_forward.1
$region0: #{lstm_forward.1}
  #allocation0 [shape = 'u32[]', space=smem, size = 0x4, offset = 0x4, fixed_abs, tag = 'smem constant byte address 0x4 - core index']
  #allocation1 [shape = 'u32[144,128]{1,0:T(1,128)}', space=vmem, size = 0x12000, scoped, tag = 'internal scratch']
  #allocation2 [shape = 'f32[64,32]{1,0:T(8,128)}', space=vmem, size = 0x8000, scoped, tag = 'scratch operand']
  #allocation3 [shape = 'f32[64,128]{1,0:T(8,128)}', space=vmem, size = 0x8000, scoped, tag = 'scratch operand']
  #allocation5 [shape = 's32[]', space=sflag, size = 0x4, offset = 0, fixed_abs, tag = 'sflag constant byte address 0x0 - dummy sync flag']
  %s0 = inlined_call_operand.vmem [shape: f32[64,32], index: 0, kind: input, shape index: {}]
  %s1 = inlined_call_operand.vmem [shape: bf16[5,32,128], index: 1, kind: input, shape index: {}]
  %s2 = inlined_call_operand.vmem [shape: bf16[5,32,128], index: 2, kind: input, shape index: {}]
  %s3 = inlined_call_operand.vmem [shape: f32[5,1,128], index: 3, kind: input, shape index: {}]
  %s4 = inlined_call_operand.vmem [shape: bf16[32,128], index: 4, kind: input, shape index: {}]
  %s5 = inlined_call_operand.vmem [shape: f32[1,128], index: 5, kind: input, shape index: {}]
  %s6 = inlined_call_operand.vmem [shape: f32[8,128], index: 6, kind: output, shape index: {}]
  %s7 = sld [smem:[#allocation0]]
  $region65: #{lstm_forward.1} parent=0
    _
  %s9 = ssub.s32 1, %s7
  %s10 = scalar_select 0, %s9, %s7
  // Predicated region
  $region2: #{lstm_forward.1} parent=0 // pred_check
    _
  $region3: #{lstm_forward.1} parent=0 // pred_check_branch
    %12 = sbr.rel (0) target = $region5
  $region4: #{lstm_forward.1} parent=0 // pred_region
    _
  $region5: #{lstm_forward.1} parent=0 // pred_fallthru
    _
  // Predicated region
  $region6: #{lstm_forward.1} parent=0 // pred_check
    _
  $region7: #{lstm_forward.1} parent=0 // pred_check_branch
    %14 = sbr.rel (0) target = $region9
  $region8: #{lstm_forward.1} parent=0 // pred_region
    _
  $region9: #{lstm_forward.1} parent=0 // pred_fallthru
    _
  // Predicated region
  $region10: #{lstm_forward.1} parent=0 // pred_check
    _
  $region11: #{lstm_forward.1} parent=0 // pred_check_branch
    %16 = sbr.rel (0) target = $region13
  $region12: #{lstm_forward.1} parent=0 // pred_region
    _
  $region13: #{lstm_forward.1} parent=0 // pred_fallthru
    _
  // Predicated region
  $region14: #{lstm_forward.1} parent=0 // pred_check
    _
  $region15: #{lstm_forward.1} parent=0 // pred_check_branch
    %18 = sbr.rel (0) target = $region17
  $region16: #{lstm_forward.1} parent=0 // pred_region
    _
  $region17: #{lstm_forward.1} parent=0 // pred_fallthru
    _
  // Predicated region
  $region18: #{lstm_forward.1} parent=0 // pred_check
    _
  $region19: #{lstm_forward.1} parent=0 // pred_check_branch
    %20 = sbr.rel (0) target = $region21
  $region20: #{lstm_forward.1} parent=0 // pred_region
    _
  $region21: #{lstm_forward.1} parent=0 // pred_fallthru
    _
  $region22: #{lstm_forward.1} parent=0
    #allocation4 [shape = 's32[1]{0}', space=sflag, size = 0x4, scoped, tag = 'scoped memory for lstm_forward.1']
    %p23 = scmp.lt.u32.totalorder 64, 8
    %p24 = pneg %p23
    // Predicated region
    $region23: #{lstm_forward.1} parent=22 // pred_check
      _
    $region24: #{lstm_forward.1} parent=22 // pred_check_branch
      %26 = sbr.rel (%p23) target = $region26
    $region25: #{lstm_forward.1} parent=22 // pred_region
      %s41 = sand.u32 64, 7
      %p42 = scmp.eq.s32.totalorder %s41, 0
      // Predicated region
      $region38: #{lstm_forward.1} parent=25 // pred_check
        %p43 = pneg %p42
      $region39: #{lstm_forward.1} parent=25 // pred_check_branch
        %45 = sbr.rel (%p43) target = $region41
      $region40: #{lstm_forward.1} parent=25 // pred_region
        loop: start=0, step=1, limit=1
        $region42: #{lstm_forward.1} parent=40 // loop_pre_header
          _
        $region43: #{lstm_forward.1} parent=40 // loop_header
          %s47 = sphi 0, %s51
          %p48 = scmp.ge.s32.totalorder %s47, 1
          %s52 = sphi %s0, %s0
          %s53 = sphi [#allocation2], [#allocation2]
        $region44: #{lstm_forward.1} parent=40 // loop_header_branch
          %50 = sbr.rel (%p48) target = $region48
        $region45: #{lstm_forward.1} parent=40 // loop_body
          %v54 = vld [vmem:[%s52] sm:$0xff]
          %55 = vst [vmem:[%s53] sm:$0xff] %v54
          %v56 = vld [vmem:[%s52 + $0x8] sm:$0xff]
          %57 = vst [vmem:[%s53 + $0x8] sm:$0xff] %v56
          %v58 = vld [vmem:[%s52 + $0x10] sm:$0xff]
          %59 = vst [vmem:[%s53 + $0x10] sm:$0xff] %v58
          %v60 = vld [vmem:[%s52 + $0x18] sm:$0xff]
          %61 = vst [vmem:[%s53 + $0x18] sm:$0xff] %v60
          %v62 = vld [vmem:[%s52 + $0x20] sm:$0xff]
          %63 = vst [vmem:[%s53 + $0x20] sm:$0xff] %v62
          %v64 = vld [vmem:[%s52 + $0x28] sm:$0xff]
          %65 = vst [vmem:[%s53 + $0x28] sm:$0xff] %v64
          %v66 = vld [vmem:[%s52 + $0x30] sm:$0xff]
          %67 = vst [vmem:[%s53 + $0x30] sm:$0xff] %v66
          %v68 = vld [vmem:[%s52 + $0x38] sm:$0xff]
          %69 = vst [vmem:[%s53 + $0x38] sm:$0xff] %v68
        $region46: #{lstm_forward.1} parent=40 // loop_footer
          %s51 = sadd.s32 1, %s47
        $region47: #{lstm_forward.1} parent=40 // loop_footer_branch
          %46 = sbr.rel target = $region43
        $region48: #{lstm_forward.1} parent=40 // loop_exit
          _
      $region41: #{lstm_forward.1} parent=25 // pred_fallthru
        _
      %p70 = pneg %p42
      // Predicated region
      $region49: #{lstm_forward.1} parent=25 // pred_check
        _
      $region50: #{lstm_forward.1} parent=25 // pred_check_branch
        %72 = sbr.rel (%p42) target = $region52
      $region51: #{lstm_forward.1} parent=25 // pred_region
        %s73 = sand.u32 64, 7
      $region52: #{lstm_forward.1} parent=25 // pred_fallthru
        _
    $region26: #{lstm_forward.1} parent=22 // pred_fallthru
      _
    // Predicated region
    $region27: #{lstm_forward.1} parent=22 // pred_check
      %p27 = pneg %p23
    $region28: #{lstm_forward.1} parent=22 // pred_check_branch
      %29 = sbr.rel (%p27) target = $region30
    $region29: #{lstm_forward.1} parent=22 // pred_region
      %s30 = sshllo.u32 0, 64
      loop: start=0, step=1, limit=1
      $region31: #{lstm_forward.1} parent=29 // loop_pre_header
        _
      $region32: #{lstm_forward.1} parent=29 // loop_header
        %s32 = sphi 0, %s36
        %p33 = scmp.ge.s32.totalorder %s32, 1
        %s37 = sphi %s0, %s0
        %s38 = sphi [#allocation2], [#allocation2]
      $region33: #{lstm_forward.1} parent=29 // loop_header_branch
        %35 = sbr.rel (%p33) target = $region37
      $region34: #{lstm_forward.1} parent=29 // loop_body
        %v39 = vld [vmem:[%s37] sm:%s30]
        %40 = vst [vmem:[%s38] sm:%s30] %v39
      $region35: #{lstm_forward.1} parent=29 // loop_footer
        %s36 = sadd.s32 1, %s32
      $region36: #{lstm_forward.1} parent=29 // loop_footer_branch
        %31 = sbr.rel target = $region32
      $region37: #{lstm_forward.1} parent=29 // loop_exit
        _
    $region30: #{lstm_forward.1} parent=22 // pred_fallthru
      _
    // Predicated region
    $region53: #{lstm_forward.1} parent=22 // pred_check
      _
    $region54: #{lstm_forward.1} parent=22 // pred_check_branch
      %76 = sbr.rel (0) target = $region56
    $region55: #{lstm_forward.1} parent=22 // pred_region
      %77 = vsyncadd [#allocation4], 1024
    $region56: #{lstm_forward.1} parent=22 // pred_fallthru
      _
    %s78 = smul.u32 64, 1
    %s79 = sshll.u32 %s78, 4
    %80 = dma.done [#allocation4], %s79
  %v81 = vld [vmem:[%s1] sm:$0xf]
  %v82 = vld [vmem:[%s1 + $0x4] sm:$0xf]
  %v83 = vld [vmem:[%s1 + $0x8] sm:$0xf]
  %v84 = vld [vmem:[%s1 + $0xc] sm:$0xf]
  %v85 = vld [vmem:[%s2] sm:$0xf]
  %v86 = vld [vmem:[%s2 + $0x4] sm:$0xf]
  %v87 = vld [vmem:[%s2 + $0x8] sm:$0xf]
  %v88 = vld [vmem:[%s2 + $0xc] sm:$0xf]
  %v89 = vld [vmem:[%s3] sm:$0x1]
  %v90 = vld [vmem:[#allocation2] sm:$0xff]
  %v91 = vld [vmem:[#allocation2 + $0x8] sm:$0xff]
  %v92 = vld [vmem:[#allocation2 + $0x10] sm:$0xff]
  %v93 = vld [vmem:[#allocation2 + $0x18] sm:$0xff]
  %v94 = vld [vmem:[#allocation2 + $0x20] sm:$0xff]
  %v95 = vld [vmem:[#allocation2 + $0x28] sm:$0xff]
  %v96 = vld [vmem:[#allocation2 + $0x30] sm:$0xff]
  %v97 = vld [vmem:[#allocation2 + $0x38] sm:$0xff]
  %v98 = vpack.c.bf16 %v91, %v90
  %v99 = vpack.c.bf16 %v93, %v92
  %v100 = vpack.c.bf16 %v95, %v94
  %v101 = vpack.c.bf16 %v97, %v96
  %v103 = vlaneseq
  %v104 = vshrl.u32 %v103, 7
  %v105 = vsub.s32 0, %v104
  %v106 = vrot.slane %v89, %v105
  %v112 = vunpack.c.l.b16 %v81
  %v113 = vunpack.c.l.b16 %v82
  %v114 = vunpack.c.l.b16 %v83
  %v115 = vunpack.c.l.b16 %v84
  %v116 = vpack.c.b16 %v113, %v112
  %v117 = vpack.c.b16 %v115, %v114
  %vm120 = vcmask 261120
  %v122 = vsel %vm120, %v98, 0
  %v125 = vsel %vm120, %v99, 0
  %v128 = vsel %vm120, %v100, 0
  %v131 = vsel %vm120, %v101, 0
  %133 = vmatprep.subr.bf16.mxu0 0
  %134 = vmatpush1.bf16.msra.mxu0 %v116
  %135 = vmatprep.subr.bf16.mxu0 0
  %136 = vmatpush1.bf16.msra.mxu0 %v117
  %137 = vmatprep.subr.bf16.mxu0 0
  %138 = vmatpush1.bf16.msra.mxu0 0
  %139 = vmatprep.subr.bf16.mxu0 0
  %140 = vmatpush1.bf16.msra.mxu0 0
  %141 = vmatprep.subr.bf16.mxu0 0
  %142 = vmatpush1.bf16.msra.mxu0 0
  %143 = vmatprep.subr.bf16.mxu0 0
  %144 = vmatpush1.bf16.msra.mxu0 0
  %145 = vmatprep.subr.bf16.mxu0 0
  %146 = vmatpush1.bf16.msra.mxu0 0
  %147 = vmatprep.subr.bf16.mxu0 0
  %148 = vmatpush1.bf16.msra.mxu0 0
  %149 = vmatprep.subr.bf16.mxu0 0
  %150 = vmatpush1.bf16.msra.mxu0 0
  %151 = vmatprep.subr.bf16.mxu0 0
  %152 = vmatpush1.bf16.msra.mxu0 0
  %153 = vmatprep.subr.bf16.mxu0 0
  %154 = vmatpush1.bf16.msra.mxu0 0
  %155 = vmatprep.subr.bf16.mxu0 0
  %156 = vmatpush1.bf16.msra.mxu0 0
  %157 = vmatprep.subr.bf16.mxu0 0
  %158 = vmatpush1.bf16.msra.mxu0 0
  %159 = vmatprep.subr.bf16.mxu0 0
  %160 = vmatpush1.bf16.msra.mxu0 0
  %161 = vmatprep.subr.bf16.mxu0 0
  %162 = vmatpush1.bf16.msra.mxu0 0
  %163 = vmatprep.subr.bf16.mxu0 0
  %164 = vmatpush1.bf16.msra.mxu0 0
  %165 = vmatprep.mubr.bf16.mxu0 0
  %166 = vmatmul.mubr.bf16.gmra.mrb[0].mxu0 %v122
  %v167 = vpop.f32.mrb[0].mxu0
  %v168 = vadd.f32 %v106, %v167
  %v169 = vpop.f32.mrb[0].mxu0
  %v170 = vpop.f32.mrb[0].mxu0
  %v171 = vadd.f32 %v106, %v170
  %v172 = vpop.f32.mrb[0].mxu0
  %173 = vmatprep.mubr.bf16.mxu0 0
  %174 = vmatmul.mubr.bf16.gmra.mrb[0].mxu0 %v125
  %v175 = vpop.f32.mrb[0].mxu0
  %v176 = vadd.f32 %v106, %v175
  %v177 = vpop.f32.mrb[0].mxu0
  %v178 = vpop.f32.mrb[0].mxu0
  %v179 = vadd.f32 %v106, %v178
  %v180 = vpop.f32.mrb[0].mxu0
  %181 = vmatprep.mubr.bf16.mxu0 0
  %182 = vmatmul.mubr.bf16.gmra.mrb[0].mxu0 %v128
  %v183 = vpop.f32.mrb[0].mxu0
  %v184 = vadd.f32 %v106, %v183
  %v185 = vpop.f32.mrb[0].mxu0
  %v186 = vpop.f32.mrb[0].mxu0
  %v187 = vadd.f32 %v106, %v186
  %v188 = vpop.f32.mrb[0].mxu0
  %189 = vmatprep.mubr.bf16.mxu0 0
  %190 = vmatmul.mubr.bf16.gmra.mrb[0].mxu0 %v131
  %v191 = vpop.f32.mrb[0].mxu0
  %v192 = vadd.f32 %v106, %v191
  %v193 = vpop.f32.mrb[0].mxu0
  %v194 = vpop.f32.mrb[0].mxu0
  %v195 = vadd.f32 %v106, %v194
  %v196 = vpop.f32.mrb[0].mxu0
  %197 = vdwg.mxu0
  %198 = vst [vmem:[#allocation3] sm:$0xff] %v168
  %199 = vst [vmem:[#allocation3 + $0x8] sm:$0xff] %v171
  %200 = vst [vmem:[#allocation3 + $0x10] sm:$0xff] %v176
  %201 = vst [vmem:[#allocation3 + $0x18] sm:$0xff] %v179
  %202 = vst [vmem:[#allocation3 + $0x20] sm:$0xff] %v184
  %203 = vst [vmem:[#allocation3 + $0x28] sm:$0xff] %v187
  %204 = vst [vmem:[#allocation3 + $0x30] sm:$0xff] %v192
  %205 = vst [vmem:[#allocation3 + $0x38] sm:$0xff] %v195
  %v206 = vld [vmem:[#allocation3] sm:$0xff]
  %v211 = vunpack.c.l.b16 %v85
  %v212 = vunpack.c.l.b16 %v86
  %v213 = vunpack.c.l.b16 %v87
  %v214 = vunpack.c.l.b16 %v88
  %v215 = vpack.c.b16 %v212, %v211
  %v216 = vpack.c.b16 %v214, %v213
  %v220 = vsel %vm120, 0, 0
  %222 = vmatprep.subr.bf16.mxu0 0
  %223 = vmatpush1.bf16.msra.mxu0 %v215
  %224 = vmatprep.subr.bf16.mxu0 0
  %225 = vmatpush1.bf16.msra.mxu0 %v216
  %226 = vmatprep.subr.bf16.mxu0 0
  %227 = vmatpush1.bf16.msra.mxu0 0
  %228 = vmatprep.subr.bf16.mxu0 0
  %229 = vmatpush1.bf16.msra.mxu0 0
  %230 = vmatprep.subr.bf16.mxu0 0
  %231 = vmatpush1.bf16.msra.mxu0 0
  %232 = vmatprep.subr.bf16.mxu0 0
  %233 = vmatpush1.bf16.msra.mxu0 0
  %234 = vmatprep.subr.bf16.mxu0 0
  %235 = vmatpush1.bf16.msra.mxu0 0
  %236 = vmatprep.subr.bf16.mxu0 0
  %237 = vmatpush1.bf16.msra.mxu0 0
  %238 = vmatprep.subr.bf16.mxu0 0
  %239 = vmatpush1.bf16.msra.mxu0 0
  %240 = vmatprep.subr.bf16.mxu0 0
  %241 = vmatpush1.bf16.msra.mxu0 0
  %242 = vmatprep.subr.bf16.mxu0 0
  %243 = vmatpush1.bf16.msra.mxu0 0
  %244 = vmatprep.subr.bf16.mxu0 0
  %245 = vmatpush1.bf16.msra.mxu0 0
  %246 = vmatprep.subr.bf16.mxu0 0
  %247 = vmatpush1.bf16.msra.mxu0 0
  %248 = vmatprep.subr.bf16.mxu0 0
  %249 = vmatpush1.bf16.msra.mxu0 0
  %250 = vmatprep.subr.bf16.mxu0 0
  %251 = vmatpush1.bf16.msra.mxu0 0
  %252 = vmatprep.subr.bf16.mxu0 0
  %253 = vmatpush1.bf16.msra.mxu0 0
  %254 = vmatprep.mubr.bf16.mxu0 0
  %255 = vmatmul.mubr.bf16.gmra.mrb[0].mxu0 %v220
  %v256 = vpop.f32.mrb[0].mxu0
  %v257 = vadd.f32 0.0, %v256
  %v258 = vpop.f32.mrb[0].mxu0
  %v259 = vpop.f32.mrb[0].mxu0
  %v260 = vpop.f32.mrb[0].mxu0
  %261 = vdwg.mxu0
  %v262 = vadd.f32 %v206, %v257
  %v263 = vxor.u32 %v262, 2147483648
  %v264 = vmul.f32 %v263, 1.442695
  %v265 = vpow.pop %v264
  %v266 = vadd.f32 %v265, 1.0
  %v267 = vrcp.pop %v266
  %v268 = vmul.f32 1.0, %v267
  %v269 = vtanh.pop %v262
  %v270 = vmul.f32 %v268, 0.0
  %272 = vrot.lane.b32.xlu0 %v269, 64
  %v273 = vpop.permute.xlu0 %272
  %v275 = vmul.f32 %v268, %v273
  %277 = vrot.lane.b32.xlu0 %v275, 32
  %v278 = vpop.permute.xlu0 %277
  %v280 = vadd.f32 %v270, %v278
  %v281 = vtanh.pop %v280
  %283 = vrot.lane.b32.xlu0 %v281, 64
  %v284 = vpop.permute.xlu0 %283
  %v286 = vmul.f32 %v268, %v284
  %288 = vrot.lane.b32.xlu0 %v286, 32
  %v289 = vpop.permute.xlu0 %288
  %291 = vst.msk [vmem:[#allocation2] sm:$0xff] %vm120, %v289
  %s292 = scalar_lea.vmem [#allocation3], 8
  %v293 = vld [vmem:[%s292] sm:$0xff]
  %v294 = vpack.c.bf16 %v286, %v286
  %296 = vrot.lane.b32.xlu0 %v294, 32
  %v297 = vpop.permute.xlu0 %296
  %v299 = vsel %vm120, %v297, 0
  %301 = vmatprep.subr.bf16.mxu0 0
  %302 = vmatpush1.bf16.msra.mxu0 %v215
  %303 = vmatprep.subr.bf16.mxu0 0
  %304 = vmatpush1.bf16.msra.mxu0 %v216
  %305 = vmatprep.subr.bf16.mxu0 0
  %306 = vmatpush1.bf16.msra.mxu0 0
  %307 = vmatprep.subr.bf16.mxu0 0
  %308 = vmatpush1.bf16.msra.mxu0 0
  %309 = vmatprep.subr.bf16.mxu0 0
  %310 = vmatpush1.bf16.msra.mxu0 0
  %311 = vmatprep.subr.bf16.mxu0 0
  %312 = vmatpush1.bf16.msra.mxu0 0
  %313 = vmatprep.subr.bf16.mxu0 0
  %314 = vmatpush1.bf16.msra.mxu0 0
  %315 = vmatprep.subr.bf16.mxu0 0
  %316 = vmatpush1.bf16.msra.mxu0 0
  %317 = vmatprep.subr.bf16.mxu0 0
  %318 = vmatpush1.bf16.msra.mxu0 0
  %319 = vmatprep.subr.bf16.mxu0 0
  %320 = vmatpush1.bf16.msra.mxu0 0
  %321 = vmatprep.subr.bf16.mxu0 0
  %322 = vmatpush1.bf16.msra.mxu0 0
  %323 = vmatprep.subr.bf16.mxu0 0
  %324 = vmatpush1.bf16.msra.mxu0 0
  %325 = vmatprep.subr.bf16.mxu0 0
  %326 = vmatpush1.bf16.msra.mxu0 0
  %327 = vmatprep.subr.bf16.mxu0 0
  %328 = vmatpush1.bf16.msra.mxu0 0
  %329 = vmatprep.subr.bf16.mxu0 0
  %330 = vmatpush1.bf16.msra.mxu0 0
  %331 = vmatprep.subr.bf16.mxu0 0
  %332 = vmatpush1.bf16.msra.mxu0 0
  %333 = vmatprep.mubr.bf16.mxu0 0
  %334 = vmatmul.mubr.bf16.gmra.mrb[0].mxu0 %v299
  %v335 = vpop.f32.mrb[0].mxu0
  %v336 = vadd.f32 0.0, %v335
  %v337 = vpop.f32.mrb[0].mxu0
  %v338 = vpop.f32.mrb[0].mxu0
  %v339 = vpop.f32.mrb[0].mxu0
  %340 = vdwg.mxu0
  %v341 = vadd.f32 %v293, %v336
  %v342 = vxor.u32 %v341, 2147483648
  %v343 = vmul.f32 %v342, 1.442695
  %v344 = vpow.pop %v343
  %v345 = vadd.f32 %v344, 1.0
  %v346 = vrcp.pop %v345
  %v347 = vmul.f32 1.0, %v346
  %v348 = vtanh.pop %v341
  %v349 = vmul.f32 %v347, %v280
  %351 = vrot.lane.b32.xlu0 %v348, 64
  %v352 = vpop.permute.xlu0 %351
  %v354 = vmul.f32 %v347, %v352
  %356 = vrot.lane.b32.xlu0 %v354, 32
  %v357 = vpop.permute.xlu0 %356
  %v359 = vadd.f32 %v349, %v357
  %v360 = vtanh.pop %v359
  %362 = vrot.lane.b32.xlu0 %v360, 64
  %v363 = vpop.permute.xlu0 %362
  %v365 = vmul.f32 %v347, %v363
  %367 = vrot.lane.b32.xlu0 %v365, 32
  %v368 = vpop.permute.xlu0 %367
  %s370 = scalar_lea.vmem [#allocation2], 8
  %371 = vst.msk [vmem:[%s370] sm:$0xff] %vm120, %v368
  %s372 = scalar_lea.vmem [#allocation3], 16
  %v373 = vld [vmem:[%s372] sm:$0xff]
  %v374 = vpack.c.bf16 %v365, %v365
  %376 = vrot.lane.b32.xlu0 %v374, 32
  %v377 = vpop.permute.xlu0 %376
  %v379 = vsel %vm120, %v377, 0
  %381 = vmatprep.subr.bf16.mxu0 0
  %382 = vmatpush1.bf16.msra.mxu0 %v215
  %383 = vmatprep.subr.bf16.mxu0 0
  %384 = vmatpush1.bf16.msra.mxu0 %v216
  %385 = vmatprep.subr.bf16.mxu0 0
  %386 = vmatpush1.bf16.msra.mxu0 0
  %387 = vmatprep.subr.bf16.mxu0 0
  %388 = vmatpush1.bf16.msra.mxu0 0
  %389 = vmatprep.subr.bf16.mxu0 0
  %390 = vmatpush1.bf16.msra.mxu0 0
  %391 = vmatprep.subr.bf16.mxu0 0
  %392 = vmatpush1.bf16.msra.mxu0 0
  %393 = vmatprep.subr.bf16.mxu0 0
  %394 = vmatpush1.bf16.msra.mxu0 0
  %395 = vmatprep.subr.bf16.mxu0 0
  %396 = vmatpush1.bf16.msra.mxu0 0
  %397 = vmatprep.subr.bf16.mxu0 0
  %398 = vmatpush1.bf16.msra.mxu0 0
  %399 = vmatprep.subr.bf16.mxu0 0
  %400 = vmatpush1.bf16.msra.mxu0 0
  %401 = vmatprep.subr.bf16.mxu0 0
  %402 = vmatpush1.bf16.msra.mxu0 0
  %403 = vmatprep.subr.bf16.mxu0 0
  %404 = vmatpush1.bf16.msra.mxu0 0
  %405 = vmatprep.subr.bf16.mxu0 0
  %406 = vmatpush1.bf16.msra.mxu0 0
  %407 = vmatprep.subr.bf16.mxu0 0
  %408 = vmatpush1.bf16.msra.mxu0 0
  %409 = vmatprep.subr.bf16.mxu0 0
  %410 = vmatpush1.bf16.msra.mxu0 0
  %411 = vmatprep.subr.bf16.mxu0 0
  %412 = vmatpush1.bf16.msra.mxu0 0
  %413 = vmatprep.mubr.bf16.mxu0 0
  %414 = vmatmul.mubr.bf16.gmra.mrb[0].mxu0 %v379
  %v415 = vpop.f32.mrb[0].mxu0
  %v416 = vadd.f32 0.0, %v415
  %v417 = vpop.f32.mrb[0].mxu0
  %v418 = vpop.f32.mrb[0].mxu0
  %v419 = vpop.f32.mrb[0].mxu0
  %420 = vdwg.mxu0
  %v421 = vadd.f32 %v373, %v416
  %v422 = vxor.u32 %v421, 2147483648
  %v423 = vmul.f32 %v422, 1.442695
  %v424 = vpow.pop %v423
  %v425 = vadd.f32 %v424, 1.0
  %v426 = vrcp.pop %v425
  %v427 = vmul.f32 1.0, %v426
  %v428 = vtanh.pop %v421
  %v429 = vmul.f32 %v427, %v359
  %431 = vrot.lane.b32.xlu0 %v428, 64
  %v432 = vpop.permute.xlu0 %431
  %v434 = vmul.f32 %v427, %v432
  %436 = vrot.lane.b32.xlu0 %v434, 32
  %v437 = vpop.permute.xlu0 %436
  %v439 = vadd.f32 %v429, %v437
  %v440 = vtanh.pop %v439
  %442 = vrot.lane.b32.xlu0 %v440, 64
  %v443 = vpop.permute.xlu0 %442
  %v445 = vmul.f32 %v427, %v443
  %447 = vrot.lane.b32.xlu0 %v445, 32
  %v448 = vpop.permute.xlu0 %447
  %s450 = scalar_lea.vmem [#allocation2], 16
  %451 = vst.msk [vmem:[%s450] sm:$0xff] %vm120, %v448
  %s452 = scalar_lea.vmem [#allocation3], 24
  %v453 = vld [vmem:[%s452] sm:$0xff]
  %v454 = vpack.c.bf16 %v445, %v445
  %456 = vrot.lane.b32.xlu0 %v454, 32
  %v457 = vpop.permute.xlu0 %456
  %v459 = vsel %vm120, %v457, 0
  %461 = vmatprep.subr.bf16.mxu0 0
  %462 = vmatpush1.bf16.msra.mxu0 %v215
  %463 = vmatprep.subr.bf16.mxu0 0
  %464 = vmatpush1.bf16.msra.mxu0 %v216
  %465 = vmatprep.subr.bf16.mxu0 0
  %466 = vmatpush1.bf16.msra.mxu0 0
  %467 = vmatprep.subr.bf16.mxu0 0
  %468 = vmatpush1.bf16.msra.mxu0 0
  %469 = vmatprep.subr.bf16.mxu0 0
  %470 = vmatpush1.bf16.msra.mxu0 0
  %471 = vmatprep.subr.bf16.mxu0 0
  %472 = vmatpush1.bf16.msra.mxu0 0
  %473 = vmatprep.subr.bf16.mxu0 0
  %474 = vmatpush1.bf16.msra.mxu0 0
  %475 = vmatprep.subr.bf16.mxu0 0
  %476 = vmatpush1.bf16.msra.mxu0 0
  %477 = vmatprep.subr.bf16.mxu0 0
  %478 = vmatpush1.bf16.msra.mxu0 0
  %479 = vmatprep.subr.bf16.mxu0 0
  %480 = vmatpush1.bf16.msra.mxu0 0
  %481 = vmatprep.subr.bf16.mxu0 0
  %482 = vmatpush1.bf16.msra.mxu0 0
  %483 = vmatprep.subr.bf16.mxu0 0
  %484 = vmatpush1.bf16.msra.mxu0 0
  %485 = vmatprep.subr.bf16.mxu0 0
  %486 = vmatpush1.bf16.msra.mxu0 0
  %487 = vmatprep.subr.bf16.mxu0 0
  %488 = vmatpush1.bf16.msra.mxu0 0
  %489 = vmatprep.subr.bf16.mxu0 0
  %490 = vmatpush1.bf16.msra.mxu0 0
  %491 = vmatprep.subr.bf16.mxu0 0
  %492 = vmatpush1.bf16.msra.mxu0 0
  %493 = vmatprep.mubr.bf16.mxu0 0
  %494 = vmatmul.mubr.bf16.gmra.mrb[0].mxu0 %v459
  %v495 = vpop.f32.mrb[0].mxu0
  %v496 = vadd.f32 0.0, %v495
  %v497 = vpop.f32.mrb[0].mxu0
  %v498 = vpop.f32.mrb[0].mxu0
  %v499 = vpop.f32.mrb[0].mxu0
  %500 = vdwg.mxu0
  %v501 = vadd.f32 %v453, %v496
  %v502 = vxor.u32 %v501, 2147483648
  %v503 = vmul.f32 %v502, 1.442695
  %v504 = vpow.pop %v503
  %v505 = vadd.f32 %v504, 1.0
  %v506 = vrcp.pop %v505
  %v507 = vmul.f32 1.0, %v506
  %v508 = vtanh.pop %v501
  %v509 = vmul.f32 %v507, %v439
  %511 = vrot.lane.b32.xlu0 %v508, 64
  %v512 = vpop.permute.xlu0 %511
  %v514 = vmul.f32 %v507, %v512
  %516 = vrot.lane.b32.xlu0 %v514, 32
  %v517 = vpop.permute.xlu0 %516
  %v519 = vadd.f32 %v509, %v517
  %v520 = vtanh.pop %v519
  %522 = vrot.lane.b32.xlu0 %v520, 64
  %v523 = vpop.permute.xlu0 %522
  %v525 = vmul.f32 %v507, %v523
  %527 = vrot.lane.b32.xlu0 %v525, 32
  %v528 = vpop.permute.xlu0 %527
  %s530 = scalar_lea.vmem [#allocation2], 24
  %531 = vst.msk [vmem:[%s530] sm:$0xff] %vm120, %v528
  %s532 = scalar_lea.vmem [#allocation3], 32
  %v533 = vld [vmem:[%s532] sm:$0xff]
  %v534 = vpack.c.bf16 %v525, %v525
  %536 = vrot.lane.b32.xlu0 %v534, 32
  %v537 = vpop.permute.xlu0 %536
  %v539 = vsel %vm120, %v537, 0
  %541 = vmatprep.subr.bf16.mxu0 0
  %542 = vmatpush1.bf16.msra.mxu0 %v215
  %543 = vmatprep.subr.bf16.mxu0 0
  %544 = vmatpush1.bf16.msra.mxu0 %v216
  %545 = vmatprep.subr.bf16.mxu0 0
  %546 = vmatpush1.bf16.msra.mxu0 0
  %547 = vmatprep.subr.bf16.mxu0 0
  %548 = vmatpush1.bf16.msra.mxu0 0
  %549 = vmatprep.subr.bf16.mxu0 0
  %550 = vmatpush1.bf16.msra.mxu0 0
  %551 = vmatprep.subr.bf16.mxu0 0
  %552 = vmatpush1.bf16.msra.mxu0 0
  %553 = vmatprep.subr.bf16.mxu0 0
  %554 = vmatpush1.bf16.msra.mxu0 0
  %555 = vmatprep.subr.bf16.mxu0 0
  %556 = vmatpush1.bf16.msra.mxu0 0
  %557 = vmatprep.subr.bf16.mxu0 0
  %558 = vmatpush1.bf16.msra.mxu0 0
  %559 = vmatprep.subr.bf16.mxu0 0
  %560 = vmatpush1.bf16.msra.mxu0 0
  %561 = vmatprep.subr.bf16.mxu0 0
  %562 = vmatpush1.bf16.msra.mxu0 0
  %563 = vmatprep.subr.bf16.mxu0 0
  %564 = vmatpush1.bf16.msra.mxu0 0
  %565 = vmatprep.subr.bf16.mxu0 0
  %566 = vmatpush1.bf16.msra.mxu0 0
  %567 = vmatprep.subr.bf16.mxu0 0
  %568 = vmatpush1.bf16.msra.mxu0 0
  %569 = vmatprep.subr.bf16.mxu0 0
  %570 = vmatpush1.bf16.msra.mxu0 0
  %571 = vmatprep.subr.bf16.mxu0 0
  %572 = vmatpush1.bf16.msra.mxu0 0
  %573 = vmatprep.mubr.bf16.mxu0 0
  %574 = vmatmul.mubr.bf16.gmra.mrb[0].mxu0 %v539
  %v575 = vpop.f32.mrb[0].mxu0
  %v576 = vadd.f32 0.0, %v575
  %v577 = vpop.f32.mrb[0].mxu0
  %v578 = vpop.f32.mrb[0].mxu0
  %v579 = vpop.f32.mrb[0].mxu0
  %580 = vdwg.mxu0
  %v581 = vadd.f32 %v533, %v576
  %v582 = vxor.u32 %v581, 2147483648
  %v583 = vmul.f32 %v582, 1.442695
  %v584 = vpow.pop %v583
  %v585 = vadd.f32 %v584, 1.0
  %v586 = vrcp.pop %v585
  %v587 = vmul.f32 1.0, %v586
  %v588 = vtanh.pop %v581
  %v589 = vmul.f32 %v587, %v519
  %591 = vrot.lane.b32.xlu0 %v588, 64
  %v592 = vpop.permute.xlu0 %591
  %v594 = vmul.f32 %v587, %v592
  %596 = vrot.lane.b32.xlu0 %v594, 32
  %v597 = vpop.permute.xlu0 %596
  %v599 = vadd.f32 %v589, %v597
  %v600 = vtanh.pop %v599
  %602 = vrot.lane.b32.xlu0 %v600, 64
  %v603 = vpop.permute.xlu0 %602
  %v605 = vmul.f32 %v587, %v603
  %607 = vrot.lane.b32.xlu0 %v605, 32
  %v608 = vpop.permute.xlu0 %607
  %s610 = scalar_lea.vmem [#allocation2], 32
  %611 = vst.msk [vmem:[%s610] sm:$0xff] %vm120, %v608
  %s612 = scalar_lea.vmem [#allocation3], 40
  %v613 = vld [vmem:[%s612] sm:$0xff]
  %v614 = vpack.c.bf16 %v605, %v605
  %616 = vrot.lane.b32.xlu0 %v614, 32
  %v617 = vpop.permute.xlu0 %616
  %v619 = vsel %vm120, %v617, 0
  %621 = vmatprep.subr.bf16.mxu0 0
  %622 = vmatpush1.bf16.msra.mxu0 %v215
  %623 = vmatprep.subr.bf16.mxu0 0
  %624 = vmatpush1.bf16.msra.mxu0 %v216
  %625 = vmatprep.subr.bf16.mxu0 0
  %626 = vmatpush1.bf16.msra.mxu0 0
  %627 = vmatprep.subr.bf16.mxu0 0
  %628 = vmatpush1.bf16.msra.mxu0 0
  %629 = vmatprep.subr.bf16.mxu0 0
  %630 = vmatpush1.bf16.msra.mxu0 0
  %631 = vmatprep.subr.bf16.mxu0 0
  %632 = vmatpush1.bf16.msra.mxu0 0
  %633 = vmatprep.subr.bf16.mxu0 0
  %634 = vmatpush1.bf16.msra.mxu0 0
  %635 = vmatprep.subr.bf16.mxu0 0
  %636 = vmatpush1.bf16.msra.mxu0 0
  %637 = vmatprep.subr.bf16.mxu0 0
  %638 = vmatpush1.bf16.msra.mxu0 0
  %639 = vmatprep.subr.bf16.mxu0 0
  %640 = vmatpush1.bf16.msra.mxu0 0
  %641 = vmatprep.subr.bf16.mxu0 0
  %642 = vmatpush1.bf16.msra.mxu0 0
  %643 = vmatprep.subr.bf16.mxu0 0
  %644 = vmatpush1.bf16.msra.mxu0 0
  %645 = vmatprep.subr.bf16.mxu0 0
  %646 = vmatpush1.bf16.msra.mxu0 0
  %647 = vmatprep.subr.bf16.mxu0 0
  %648 = vmatpush1.bf16.msra.mxu0 0
  %649 = vmatprep.subr.bf16.mxu0 0
  %650 = vmatpush1.bf16.msra.mxu0 0
  %651 = vmatprep.subr.bf16.mxu0 0
  %652 = vmatpush1.bf16.msra.mxu0 0
  %653 = vmatprep.mubr.bf16.mxu0 0
  %654 = vmatmul.mubr.bf16.gmra.mrb[0].mxu0 %v619
  %v655 = vpop.f32.mrb[0].mxu0
  %v656 = vadd.f32 0.0, %v655
  %v657 = vpop.f32.mrb[0].mxu0
  %v658 = vpop.f32.mrb[0].mxu0
  %v659 = vpop.f32.mrb[0].mxu0
  %660 = vdwg.mxu0
  %v661 = vadd.f32 %v613, %v656
  %v662 = vxor.u32 %v661, 2147483648
  %v663 = vmul.f32 %v662, 1.442695
  %v664 = vpow.pop %v663
  %v665 = vadd.f32 %v664, 1.0
  %v666 = vrcp.pop %v665
  %v667 = vmul.f32 1.0, %v666
  %v668 = vtanh.pop %v661
  %v669 = vmul.f32 %v667, %v599
  %671 = vrot.lane.b32.xlu0 %v668, 64
  %v672 = vpop.permute.xlu0 %671
  %v674 = vmul.f32 %v667, %v672
  %676 = vrot.lane.b32.xlu0 %v674, 32
  %v677 = vpop.permute.xlu0 %676
  %v679 = vadd.f32 %v669, %v677
  %v680 = vtanh.pop %v679
  %682 = vrot.lane.b32.xlu0 %v680, 64
  %v683 = vpop.permute.xlu0 %682
  %v685 = vmul.f32 %v667, %v683
  %687 = vrot.lane.b32.xlu0 %v685, 32
  %v688 = vpop.permute.xlu0 %687
  %s690 = scalar_lea.vmem [#allocation2], 40
  %691 = vst.msk [vmem:[%s690] sm:$0xff] %vm120, %v688
  %s692 = scalar_lea.vmem [#allocation3], 48
  %v693 = vld [vmem:[%s692] sm:$0xff]
  %v694 = vpack.c.bf16 %v685, %v685
  %696 = vrot.lane.b32.xlu0 %v694, 32
  %v697 = vpop.permute.xlu0 %696
  %v699 = vsel %vm120, %v697, 0
  %701 = vmatprep.subr.bf16.mxu0 0
  %702 = vmatpush1.bf16.msra.mxu0 %v215
  %703 = vmatprep.subr.bf16.mxu0 0
  %704 = vmatpush1.bf16.msra.mxu0 %v216
  %705 = vmatprep.subr.bf16.mxu0 0
  %706 = vmatpush1.bf16.msra.mxu0 0
  %707 = vmatprep.subr.bf16.mxu0 0
  %708 = vmatpush1.bf16.msra.mxu0 0
  %709 = vmatprep.subr.bf16.mxu0 0
  %710 = vmatpush1.bf16.msra.mxu0 0
  %711 = vmatprep.subr.bf16.mxu0 0
  %712 = vmatpush1.bf16.msra.mxu0 0
  %713 = vmatprep.subr.bf16.mxu0 0
  %714 = vmatpush1.bf16.msra.mxu0 0
  %715 = vmatprep.subr.bf16.mxu0 0
  %716 = vmatpush1.bf16.msra.mxu0 0
  %717 = vmatprep.subr.bf16.mxu0 0
  %718 = vmatpush1.bf16.msra.mxu0 0
  %719 = vmatprep.subr.bf16.mxu0 0
  %720 = vmatpush1.bf16.msra.mxu0 0
  %721 = vmatprep.subr.bf16.mxu0 0
  %722 = vmatpush1.bf16.msra.mxu0 0
  %723 = vmatprep.subr.bf16.mxu0 0
  %724 = vmatpush1.bf16.msra.mxu0 0
  %725 = vmatprep.subr.bf16.mxu0 0
  %726 = vmatpush1.bf16.msra.mxu0 0
  %727 = vmatprep.subr.bf16.mxu0 0
  %728 = vmatpush1.bf16.msra.mxu0 0
  %729 = vmatprep.subr.bf16.mxu0 0
  %730 = vmatpush1.bf16.msra.mxu0 0
  %731 = vmatprep.subr.bf16.mxu0 0
  %732 = vmatpush1.bf16.msra.mxu0 0
  %733 = vmatprep.mubr.bf16.mxu0 0
  %734 = vmatmul.mubr.bf16.gmra.mrb[0].mxu0 %v699
  %v735 = vpop.f32.mrb[0].mxu0
  %v736 = vadd.f32 0.0, %v735
  %v737 = vpop.f32.mrb[0].mxu0
  %v738 = vpop.f32.mrb[0].mxu0
  %v739 = vpop.f32.mrb[0].mxu0
  %740 = vdwg.mxu0
  %v741 = vadd.f32 %v693, %v736
  %v742 = vxor.u32 %v741, 2147483648
  %v743 = vmul.f32 %v742, 1.442695
  %v744 = vpow.pop %v743
  %v745 = vadd.f32 %v744, 1.0
  %v746 = vrcp.pop %v745
  %v747 = vmul.f32 1.0, %v746
  %v748 = vtanh.pop %v741
  %v749 = vmul.f32 %v747, %v679
  %751 = vrot.lane.b32.xlu0 %v748, 64
  %v752 = vpop.permute.xlu0 %751
  %v754 = vmul.f32 %v747, %v752
  %756 = vrot.lane.b32.xlu0 %v754, 32
  %v757 = vpop.permute.xlu0 %756
  %v759 = vadd.f32 %v749, %v757
  %v760 = vtanh.pop %v759
  %762 = vrot.lane.b32.xlu0 %v760, 64
  %v763 = vpop.permute.xlu0 %762
  %v765 = vmul.f32 %v747, %v763
  %767 = vrot.lane.b32.xlu0 %v765, 32
  %v768 = vpop.permute.xlu0 %767
  %s770 = scalar_lea.vmem [#allocation2], 48
  %771 = vst.msk [vmem:[%s770] sm:$0xff] %vm120, %v768
  %s772 = scalar_lea.vmem [#allocation3], 56
  %v773 = vld [vmem:[%s772] sm:$0xff]
  %v774 = vpack.c.bf16 %v765, %v765
  %776 = vrot.lane.b32.xlu0 %v774, 32
  %v777 = vpop.permute.xlu0 %776
  %v779 = vsel %vm120, %v777, 0
  %781 = vmatprep.subr.bf16.mxu0 0
  %782 = vmatpush1.bf16.msra.mxu0 %v215
  %783 = vmatprep.subr.bf16.mxu0 0
  %784 = vmatpush1.bf16.msra.mxu0 %v216
  %785 = vmatprep.subr.bf16.mxu0 0
  %786 = vmatpush1.bf16.msra.mxu0 0
  %787 = vmatprep.subr.bf16.mxu0 0
  %788 = vmatpush1.bf16.msra.mxu0 0
  %789 = vmatprep.subr.bf16.mxu0 0
  %790 = vmatpush1.bf16.msra.mxu0 0
  %791 = vmatprep.subr.bf16.mxu0 0
  %792 = vmatpush1.bf16.msra.mxu0 0
  %793 = vmatprep.subr.bf16.mxu0 0
  %794 = vmatpush1.bf16.msra.mxu0 0
  %795 = vmatprep.subr.bf16.mxu0 0
  %796 = vmatpush1.bf16.msra.mxu0 0
  %797 = vmatprep.subr.bf16.mxu0 0
  %798 = vmatpush1.bf16.msra.mxu0 0
  %799 = vmatprep.subr.bf16.mxu0 0
  %800 = vmatpush1.bf16.msra.mxu0 0
  %801 = vmatprep.subr.bf16.mxu0 0
  %802 = vmatpush1.bf16.msra.mxu0 0
  %803 = vmatprep.subr.bf16.mxu0 0
  %804 = vmatpush1.bf16.msra.mxu0 0
  %805 = vmatprep.subr.bf16.mxu0 0
  %806 = vmatpush1.bf16.msra.mxu0 0
  %807 = vmatprep.subr.bf16.mxu0 0
  %808 = vmatpush1.bf16.msra.mxu0 0
  %809 = vmatprep.subr.bf16.mxu0 0
  %810 = vmatpush1.bf16.msra.mxu0 0
  %811 = vmatprep.subr.bf16.mxu0 0
  %812 = vmatpush1.bf16.msra.mxu0 0
  %813 = vmatprep.mubr.bf16.mxu0 0
  %814 = vmatmul.mubr.bf16.gmra.mrb[0].mxu0 %v779
  %v815 = vpop.f32.mrb[0].mxu0
  %v816 = vadd.f32 0.0, %v815
  %v817 = vpop.f32.mrb[0].mxu0
  %v818 = vpop.f32.mrb[0].mxu0
  %v819 = vpop.f32.mrb[0].mxu0
  %820 = vdwg.mxu0
  %v821 = vadd.f32 %v773, %v816
  %v822 = vxor.u32 %v821, 2147483648
  %v823 = vmul.f32 %v822, 1.442695
  %v824 = vpow.pop %v823
  %v825 = vadd.f32 %v824, 1.0
  %v826 = vrcp.pop %v825
  %v827 = vmul.f32 1.0, %v826
  %v828 = vtanh.pop %v821
  %v829 = vmul.f32 %v827, %v759
  %831 = vrot.lane.b32.xlu0 %v828, 64
  %v832 = vpop.permute.xlu0 %831
  %v834 = vmul.f32 %v827, %v832
  %836 = vrot.lane.b32.xlu0 %v834, 32
  %v837 = vpop.permute.xlu0 %836
  %v839 = vadd.f32 %v829, %v837
  %v840 = vtanh.pop %v839
  %842 = vrot.lane.b32.xlu0 %v840, 64
  %v843 = vpop.permute.xlu0 %842
  %v845 = vmul.f32 %v827, %v843
  %847 = vrot.lane.b32.xlu0 %v845, 32
  %v848 = vpop.permute.xlu0 %847
  %s850 = scalar_lea.vmem [#allocation2], 56
  %851 = vst.msk [vmem:[%s850] sm:$0xff] %vm120, %v848
  %s852 = scalar_lea.vmem %s1, 16
  %v853 = vld [vmem:[%s852] sm:$0xf]
  %v854 = vld [vmem:[%s852 + $0x4] sm:$0xf]
  %v855 = vld [vmem:[%s852 + $0x8] sm:$0xf]
  %v856 = vld [vmem:[%s852 + $0xc] sm:$0xf]
  %s857 = scalar_lea.vmem %s2, 16
  %v858 = vld [vmem:[%s857] sm:$0xf]
  %v859 = vld [vmem:[%s857 + $0x4] sm:$0xf]
  %v860 = vld [vmem:[%s857 + $0x8] sm:$0xf]
  %v861 = vld [vmem:[%s857 + $0xc] sm:$0xf]
  %s862 = scalar_lea.vmem %s3, 1
  %v863 = vld [vmem:[%s862] sm:$0x1]
  %v864 = vld [vmem:[#allocation2] sm:$0xff]
  %v865 = vld [vmem:[#allocation2 + $0x8] sm:$0xff]
  %v866 = vld [vmem:[#allocation2 + $0x10] sm:$0xff]
  %v867 = vld [vmem:[#allocation2 + $0x18] sm:$0xff]
  %v868 = vld [vmem:[#allocation2 + $0x20] sm:$0xff]
  %v869 = vld [vmem:[#allocation2 + $0x28] sm:$0xff]
  %v870 = vld [vmem:[#allocation2 + $0x30] sm:$0xff]
  %v871 = vld [vmem:[#allocation2 + $0x38] sm:$0xff]
  %v872 = vpack.c.bf16 %v865, %v864
  %v873 = vpack.c.bf16 %v867, %v866
  %v874 = vpack.c.bf16 %v869, %v868
  %v875 = vpack.c.bf16 %v871, %v870
  %v877 = vlaneseq
  %v878 = vshrl.u32 %v877, 7
  %v879 = vsub.s32 0, %v878
  %v880 = vrot.slane %v863, %v879
  %v886 = vunpack.c.l.b16 %v853
  %v887 = vunpack.c.l.b16 %v854
  %v888 = vunpack.c.l.b16 %v855
  %v889 = vunpack.c.l.b16 %v856
  %v890 = vpack.c.b16 %v887, %v886
  %v891 = vpack.c.b16 %v889, %v888
  %v895 = vsel %vm120, %v872, 0
  %v898 = vsel %vm120, %v873, 0
  %v901 = vsel %vm120, %v874, 0
  %v904 = vsel %vm120, %v875, 0
  %906 = vmatprep.subr.bf16.mxu0 0
  %907 = vmatpush1.bf16.msra.mxu0 %v890
  %908 = vmatprep.subr.bf16.mxu0 0
  %909 = vmatpush1.bf16.msra.mxu0 %v891
  %910 = vmatprep.subr.bf16.mxu0 0
  %911 = vmatpush1.bf16.msra.mxu0 0
  %912 = vmatprep.subr.bf16.mxu0 0
  %913 = vmatpush1.bf16.msra.mxu0 0
  %914 = vmatprep.subr.bf16.mxu0 0
  %915 = vmatpush1.bf16.msra.mxu0 0
  %916 = vmatprep.subr.bf16.mxu0 0
  %917 = vmatpush1.bf16.msra.mxu0 0
  %918 = vmatprep.subr.bf16.mxu0 0
  %919 = vmatpush1.bf16.msra.mxu0 0
  %920 = vmatprep.subr.bf16.mxu0 0
  %921 = vmatpush1.bf16.msra.mxu0 0
  %922 = vmatprep.subr.bf16.mxu0 0
  %923 = vmatpush1.bf16.msra.mxu0 0
  %924 = vmatprep.subr.bf16.mxu0 0
  %925 = vmatpush1.bf16.msra.mxu0 0
  %926 = vmatprep.subr.bf16.mxu0 0
  %927 = vmatpush1.bf16.msra.mxu0 0
  %928 = vmatprep.subr.bf16.mxu0 0
  %929 = vmatpush1.bf16.msra.mxu0 0
  %930 = vmatprep.subr.bf16.mxu0 0
  %931 = vmatpush1.bf16.msra.mxu0 0
  %932 = vmatprep.subr.bf16.mxu0 0
  %933 = vmatpush1.bf16.msra.mxu0 0
  %934 = vmatprep.subr.bf16.mxu0 0
  %935 = vmatpush1.bf16.msra.mxu0 0
  %936 = vmatprep.subr.bf16.mxu0 0
  %937 = vmatpush1.bf16.msra.mxu0 0
  %938 = vmatprep.mubr.bf16.mxu0 0
  %939 = vmatmul.mubr.bf16.gmra.mrb[0].mxu0 %v895
  %v940 = vpop.f32.mrb[0].mxu0
  %v941 = vadd.f32 %v880, %v940
  %v942 = vpop.f32.mrb[0].mxu0
  %v943 = vpop.f32.mrb[0].mxu0
  %v944 = vadd.f32 %v880, %v943
  %v945 = vpop.f32.mrb[0].mxu0
  %946 = vmatprep.mubr.bf16.mxu0 0
  %947 = vmatmul.mubr.bf16.gmra.mrb[0].mxu0 %v898
  %v948 = vpop.f32.mrb[0].mxu0
  %v949 = vadd.f32 %v880, %v948
  %v950 = vpop.f32.mrb[0].mxu0
  %v951 = vpop.f32.mrb[0].mxu0
  %v952 = vadd.f32 %v880, %v951
  %v953 = vpop.f32.mrb[0].mxu0
  %954 = vmatprep.mubr.bf16.mxu0 0
  %955 = vmatmul.mubr.bf16.gmra.mrb[0].mxu0 %v901
  %v956 = vpop.f32.mrb[0].mxu0
  %v957 = vadd.f32 %v880, %v956
  %v958 = vpop.f32.mrb[0].mxu0
  %v959 = vpop.f32.mrb[0].mxu0
  %v960 = vadd.f32 %v880, %v959
  %v961 = vpop.f32.mrb[0].mxu0
  %962 = vmatprep.mubr.bf16.mxu0 0
  %963 = vmatmul.mubr.bf16.gmra.mrb[0].mxu0 %v904
  %v964 = vpop.f32.mrb[0].mxu0
  %v965 = vadd.f32 %v880, %v964
  %v966 = vpop.f32.mrb[0].mxu0
  %v967 = vpop.f32.mrb[0].mxu0
  %v968 = vadd.f32 %v880, %v967
  %v969 = vpop.f32.mrb[0].mxu0
  %970 = vdwg.mxu0
  %971 = vst [vmem:[#allocation3] sm:$0xff] %v941
  %972 = vst [vmem:[#allocation3 + $0x8] sm:$0xff] %v944
  %973 = vst [vmem:[#allocation3 + $0x10] sm:$0xff] %v949
  %974 = vst [vmem:[#allocation3 + $0x18] sm:$0xff] %v952
  %975 = vst [vmem:[#allocation3 + $0x20] sm:$0xff] %v957
  %976 = vst [vmem:[#allocation3 + $0x28] sm:$0xff] %v960
  %977 = vst [vmem:[#allocation3 + $0x30] sm:$0xff] %v965
  %978 = vst [vmem:[#allocation3 + $0x38] sm:$0xff] %v968
  %v979 = vld [vmem:[#allocation3] sm:$0xff]
  %v984 = vunpack.c.l.b16 %v858
  %v985 = vunpack.c.l.b16 %v859
  %v986 = vunpack.c.l.b16 %v860
  %v987 = vunpack.c.l.b16 %v861
  %v988 = vpack.c.b16 %v985, %v984
  %v989 = vpack.c.b16 %v987, %v986
  %992 = vmatprep.subr.bf16.mxu0 0
  %993 = vmatpush1.bf16.msra.mxu0 %v988
  %994 = vmatprep.subr.bf16.mxu0 0
  %995 = vmatpush1.bf16.msra.mxu0 %v989
  %996 = vmatprep.subr.bf16.mxu0 0
  %997 = vmatpush1.bf16.msra.mxu0 0
  %998 = vmatprep.subr.bf16.mxu0 0
  %999 = vmatpush1.bf16.msra.mxu0 0
  %1000 = vmatprep.subr.bf16.mxu0 0
  %1001 = vmatpush1.bf16.msra.mxu0 0
  %1002 = vmatprep.subr.bf16.mxu0 0
  %1003 = vmatpush1.bf16.msra.mxu0 0
  %1004 = vmatprep.subr.bf16.mxu0 0
  %1005 = vmatpush1.bf16.msra.mxu0 0
  %1006 = vmatprep.subr.bf16.mxu0 0
  %1007 = vmatpush1.bf16.msra.mxu0 0
  %1008 = vmatprep.subr.bf16.mxu0 0
  %1009 = vmatpush1.bf16.msra.mxu0 0
  %1010 = vmatprep.subr.bf16.mxu0 0
  %1011 = vmatpush1.bf16.msra.mxu0 0
  %1012 = vmatprep.subr.bf16.mxu0 0
  %1013 = vmatpush1.bf16.msra.mxu0 0
  %1014 = vmatprep.subr.bf16.mxu0 0
  %1015 = vmatpush1.bf16.msra.mxu0 0
  %1016 = vmatprep.subr.bf16.mxu0 0
  %1017 = vmatpush1.bf16.msra.mxu0 0
  %1018 = vmatprep.subr.bf16.mxu0 0
  %1019 = vmatpush1.bf16.msra.mxu0 0
  %1020 = vmatprep.subr.bf16.mxu0 0
  %1021 = vmatpush1.bf16.msra.mxu0 0
  %1022 = vmatprep.subr.bf16.mxu0 0
  %1023 = vmatpush1.bf16.msra.mxu0 0
  %1024 = vmatprep.mubr.bf16.mxu0 0
  %1025 = vmatmul.mubr.bf16.gmra.mrb[0].mxu0 %v220
  %v1026 = vpop.f32.mrb[0].mxu0
  %v1027 = vadd.f32 0.0, %v1026
  %v1028 = vpop.f32.mrb[0].mxu0
  %v1029 = vpop.f32.mrb[0].mxu0
  %v1030 = vpop.f32.mrb[0].mxu0
  %1031 = vdwg.mxu0
  %v1032 = vadd.f32 %v979, %v1027
  %v1033 = vxor.u32 %v1032, 2147483648
  %v1034 = vmul.f32 %v1033, 1.442695
  %v1035 = vpow.pop %v1034
  %v1036 = vadd.f32 %v1035, 1.0
  %v1037 = vrcp.pop %v1036
  %v1038 = vmul.f32 1.0, %v1037
  %v1039 = vtanh.pop %v1032
  %v1040 = vmul.f32 %v1038, 0.0
  %1042 = vrot.lane.b32.xlu0 %v1039, 64
  %v1043 = vpop.permute.xlu0 %1042
  %v1045 = vmul.f32 %v1038, %v1043
  %1047 = vrot.lane.b32.xlu0 %v1045, 32
  %v1048 = vpop.permute.xlu0 %1047
  %v1050 = vadd.f32 %v1040, %v1048
  %v1051 = vtanh.pop %v1050
  %1053 = vrot.lane.b32.xlu0 %v1051, 64
  %v1054 = vpop.permute.xlu0 %1053
  %v1056 = vmul.f32 %v1038, %v1054
  %1058 = vrot.lane.b32.xlu0 %v1056, 32
  %v1059 = vpop.permute.xlu0 %1058
  %1061 = vst.msk [vmem:[#allocation2] sm:$0xff] %vm120, %v1059
  %v1062 = vld [vmem:[%s292] sm:$0xff]
  %v1063 = vpack.c.bf16 %v1056, %v1056
  %1065 = vrot.lane.b32.xlu0 %v1063, 32
  %v1066 = vpop.permute.xlu0 %1065
  %v1068 = vsel %vm120, %v1066, 0
  %1070 = vmatprep.subr.bf16.mxu0 0
  %1071 = vmatpush1.bf16.msra.mxu0 %v988
  %1072 = vmatprep.subr.bf16.mxu0 0
  %1073 = vmatpush1.bf16.msra.mxu0 %v989
  %1074 = vmatprep.subr.bf16.mxu0 0
  %1075 = vmatpush1.bf16.msra.mxu0 0
  %1076 = vmatprep.subr.bf16.mxu0 0
  %1077 = vmatpush1.bf16.msra.mxu0 0
  %1078 = vmatprep.subr.bf16.mxu0 0
  %1079 = vmatpush1.bf16.msra.mxu0 0
  %1080 = vmatprep.subr.bf16.mxu0 0
  %1081 = vmatpush1.bf16.msra.mxu0 0
  %1082 = vmatprep.subr.bf16.mxu0 0
  %1083 = vmatpush1.bf16.msra.mxu0 0
  %1084 = vmatprep.subr.bf16.mxu0 0
  %1085 = vmatpush1.bf16.msra.mxu0 0
  %1086 = vmatprep.subr.bf16.mxu0 0
  %1087 = vmatpush1.bf16.msra.mxu0 0
  %1088 = vmatprep.subr.bf16.mxu0 0
  %1089 = vmatpush1.bf16.msra.mxu0 0
  %1090 = vmatprep.subr.bf16.mxu0 0
  %1091 = vmatpush1.bf16.msra.mxu0 0
  %1092 = vmatprep.subr.bf16.mxu0 0
  %1093 = vmatpush1.bf16.msra.mxu0 0
  %1094 = vmatprep.subr.bf16.mxu0 0
  %1095 = vmatpush1.bf16.msra.mxu0 0
  %1096 = vmatprep.subr.bf16.mxu0 0
  %1097 = vmatpush1.bf16.msra.mxu0 0
  %1098 = vmatprep.subr.bf16.mxu0 0
  %1099 = vmatpush1.bf16.msra.mxu0 0
  %1100 = vmatprep.subr.bf16.mxu0 0
  %1101 = vmatpush1.bf16.msra.mxu0 0
  %1102 = vmatprep.mubr.bf16.mxu0 0
  %1103 = vmatmul.mubr.bf16.gmra.mrb[0].mxu0 %v1068
  %v1104 = vpop.f32.mrb[0].mxu0
  %v1105 = vadd.f32 0.0, %v1104
  %v1106 = vpop.f32.mrb[0].mxu0
  %v1107 = vpop.f32.mrb[0].mxu0
  %v1108 = vpop.f32.mrb[0].mxu0
  %1109 = vdwg.mxu0
  %v1110 = vadd.f32 %v1062, %v1105
  %v1111 = vxor.u32 %v1110, 2147483648
  %v1112 = vmul.f32 %v1111, 1.442695
  %v1113 = vpow.pop %v1112
  %v1114 = vadd.f32 %v1113, 1.0
  %v1115 = vrcp.pop %v1114
  %v1116 = vmul.f32 1.0, %v1115
  %v1117 = vtanh.pop %v1110
  %v1118 = vmul.f32 %v1116, %v1050
  %1120 = vrot.lane.b32.xlu0 %v1117, 64
  %v1121 = vpop.permute.xlu0 %1120
  %v1123 = vmul.f32 %v1116, %v1121
  %1125 = vrot.lane.b32.xlu0 %v1123, 32
  %v1126 = vpop.permute.xlu0 %1125
  %v1128 = vadd.f32 %v1118, %v1126
  %v1129 = vtanh.pop %v1128
  %1131 = vrot.lane.b32.xlu0 %v1129, 64
  %v1132 = vpop.permute.xlu0 %1131
  %v1134 = vmul.f32 %v1116, %v1132
  %1136 = vrot.lane.b32.xlu0 %v1134, 32
  %v1137 = vpop.permute.xlu0 %1136
  %1139 = vst.msk [vmem:[%s370] sm:$0xff] %vm120, %v1137
  %v1140 = vld [vmem:[%s372] sm:$0xff]
  %v1141 = vpack.c.bf16 %v1134, %v1134
  %1143 = vrot.lane.b32.xlu0 %v1141, 32
  %v1144 = vpop.permute.xlu0 %1143
  %v1146 = vsel %vm120, %v1144, 0
  %1148 = vmatprep.subr.bf16.mxu0 0
  %1149 = vmatpush1.bf16.msra.mxu0 %v988
  %1150 = vmatprep.subr.bf16.mxu0 0
  %1151 = vmatpush1.bf16.msra.mxu0 %v989
  %1152 = vmatprep.subr.bf16.mxu0 0
  %1153 = vmatpush1.bf16.msra.mxu0 0
  %1154 = vmatprep.subr.bf16.mxu0 0
  %1155 = vmatpush1.bf16.msra.mxu0 0
  %1156 = vmatprep.subr.bf16.mxu0 0
  %1157 = vmatpush1.bf16.msra.mxu0 0
  %1158 = vmatprep.subr.bf16.mxu0 0
  %1159 = vmatpush1.bf16.msra.mxu0 0
  %1160 = vmatprep.subr.bf16.mxu0 0
  %1161 = vmatpush1.bf16.msra.mxu0 0
  %1162 = vmatprep.subr.bf16.mxu0 0
  %1163 = vmatpush1.bf16.msra.mxu0 0
  %1164 = vmatprep.subr.bf16.mxu0 0
  %1165 = vmatpush1.bf16.msra.mxu0 0
  %1166 = vmatprep.subr.bf16.mxu0 0
  %1167 = vmatpush1.bf16.msra.mxu0 0
  %1168 = vmatprep.subr.bf16.mxu0 0
  %1169 = vmatpush1.bf16.msra.mxu0 0
  %1170 = vmatprep.subr.bf16.mxu0 0
  %1171 = vmatpush1.bf16.msra.mxu0 0
  %1172 = vmatprep.subr.bf16.mxu0 0
  %1173 = vmatpush1.bf16.msra.mxu0 0
  %1174 = vmatprep.subr.bf16.mxu0 0
  %1175 = vmatpush1.bf16.msra.mxu0 0
  %1176 = vmatprep.subr.bf16.mxu0 0
  %1177 = vmatpush1.bf16.msra.mxu0 0
  %1178 = vmatprep.subr.bf16.mxu0 0
  %1179 = vmatpush1.bf16.msra.mxu0 0
  %1180 = vmatprep.mubr.bf16.mxu0 0
  %1181 = vmatmul.mubr.bf16.gmra.mrb[0].mxu0 %v1146
  %v1182 = vpop.f32.mrb[0].mxu0
  %v1183 = vadd.f32 0.0, %v1182
  %v1184 = vpop.f32.mrb[0].mxu0
  %v1185 = vpop.f32.mrb[0].mxu0
  %v1186 = vpop.f32.mrb[0].mxu0
  %1187 = vdwg.mxu0
  %v1188 = vadd.f32 %v1140, %v1183
  %v1189 = vxor.u32 %v1188, 2147483648
  %v1190 = vmul.f32 %v1189, 1.442695
  %v1191 = vpow.pop %v1190
  %v1192 = vadd.f32 %v1191, 1.0
  %v1193 = vrcp.pop %v1192
  %v1194 = vmul.f32 1.0, %v1193
  %v1195 = vtanh.pop %v1188
  %v1196 = vmul.f32 %v1194, %v1128
  %1198 = vrot.lane.b32.xlu0 %v1195, 64
  %v1199 = vpop.permute.xlu0 %1198
  %v1201 = vmul.f32 %v1194, %v1199
  %1203 = vrot.lane.b32.xlu0 %v1201, 32
  %v1204 = vpop.permute.xlu0 %1203
  %v1206 = vadd.f32 %v1196, %v1204
  %v1207 = vtanh.pop %v1206
  %1209 = vrot.lane.b32.xlu0 %v1207, 64
  %v1210 = vpop.permute.xlu0 %1209
  %v1212 = vmul.f32 %v1194, %v1210
  %1214 = vrot.lane.b32.xlu0 %v1212, 32
  %v1215 = vpop.permute.xlu0 %1214
  %1217 = vst.msk [vmem:[%s450] sm:$0xff] %vm120, %v1215
  %v1218 = vld [vmem:[%s452] sm:$0xff]
  %v1219 = vpack.c.bf16 %v1212, %v1212
  %1221 = vrot.lane.b32.xlu0 %v1219, 32
  %v1222 = vpop.permute.xlu0 %1221
  %v1224 = vsel %vm120, %v1222, 0
  %1226 = vmatprep.subr.bf16.mxu0 0
  %1227 = vmatpush1.bf16.msra.mxu0 %v988
  %1228 = vmatprep.subr.bf16.mxu0 0
  %1229 = vmatpush1.bf16.msra.mxu0 %v989
  %1230 = vmatprep.subr.bf16.mxu0 0
  %1231 = vmatpush1.bf16.msra.mxu0 0
  %1232 = vmatprep.subr.bf16.mxu0 0
  %1233 = vmatpush1.bf16.msra.mxu0 0
  %1234 = vmatprep.subr.bf16.mxu0 0
  %1235 = vmatpush1.bf16.msra.mxu0 0
  %1236 = vmatprep.subr.bf16.mxu0 0
  %1237 = vmatpush1.bf16.msra.mxu0 0
  %1238 = vmatprep.subr.bf16.mxu0 0
  %1239 = vmatpush1.bf16.msra.mxu0 0
  %1240 = vmatprep.subr.bf16.mxu0 0
  %1241 = vmatpush1.bf16.msra.mxu0 0
  %1242 = vmatprep.subr.bf16.mxu0 0
  %1243 = vmatpush1.bf16.msra.mxu0 0
  %1244 = vmatprep.subr.bf16.mxu0 0
  %1245 = vmatpush1.bf16.msra.mxu0 0
  %1246 = vmatprep.subr.bf16.mxu0 0
  %1247 = vmatpush1.bf16.msra.mxu0 0
  %1248 = vmatprep.subr.bf16.mxu0 0
  %1249 = vmatpush1.bf16.msra.mxu0 0
  %1250 = vmatprep.subr.bf16.mxu0 0
  %1251 = vmatpush1.bf16.msra.mxu0 0
  %1252 = vmatprep.subr.bf16.mxu0 0
  %1253 = vmatpush1.bf16.msra.mxu0 0
  %1254 = vmatprep.subr.bf16.mxu0 0
  %1255 = vmatpush1.bf16.msra.mxu0 0
  %1256 = vmatprep.subr.bf16.mxu0 0
  %1257 = vmatpush1.bf16.msra.mxu0 0
  %1258 = vmatprep.mubr.bf16.mxu0 0
  %1259 = vmatmul.mubr.bf16.gmra.mrb[0].mxu0 %v1224
  %v1260 = vpop.f32.mrb[0].mxu0
  %v1261 = vadd.f32 0.0, %v1260
  %v1262 = vpop.f32.mrb[0].mxu0
  %v1263 = vpop.f32.mrb[0].mxu0
  %v1264 = vpop.f32.mrb[0].mxu0
  %1265 = vdwg.mxu0
  %v1266 = vadd.f32 %v1218, %v1261
  %v1267 = vxor.u32 %v1266, 2147483648
  %v1268 = vmul.f32 %v1267, 1.442695
  %v1269 = vpow.pop %v1268
  %v1270 = vadd.f32 %v1269, 1.0
  %v1271 = vrcp.pop %v1270
  %v1272 = vmul.f32 1.0, %v1271
  %v1273 = vtanh.pop %v1266
  %v1274 = vmul.f32 %v1272, %v1206
  %1276 = vrot.lane.b32.xlu0 %v1273, 64
  %v1277 = vpop.permute.xlu0 %1276
  %v1279 = vmul.f32 %v1272, %v1277
  %1281 = vrot.lane.b32.xlu0 %v1279, 32
  %v1282 = vpop.permute.xlu0 %1281
  %v1284 = vadd.f32 %v1274, %v1282
  %v1285 = vtanh.pop %v1284
  %1287 = vrot.lane.b32.xlu0 %v1285, 64
  %v1288 = vpop.permute.xlu0 %1287
  %v1290 = vmul.f32 %v1272, %v1288
  %1292 = vrot.lane.b32.xlu0 %v1290, 32
  %v1293 = vpop.permute.xlu0 %1292
  %1295 = vst.msk [vmem:[%s530] sm:$0xff] %vm120, %v1293
  %v1296 = vld [vmem:[%s532] sm:$0xff]
  %v1297 = vpack.c.bf16 %v1290, %v1290
  %1299 = vrot.lane.b32.xlu0 %v1297, 32
  %v1300 = vpop.permute.xlu0 %1299
  %v1302 = vsel %vm120, %v1300, 0
  %1304 = vmatprep.subr.bf16.mxu0 0
  %1305 = vmatpush1.bf16.msra.mxu0 %v988
  %1306 = vmatprep.subr.bf16.mxu0 0
  %1307 = vmatpush1.bf16.msra.mxu0 %v989
  %1308 = vmatprep.subr.bf16.mxu0 0
  %1309 = vmatpush1.bf16.msra.mxu0 0
  %1310 = vmatprep.subr.bf16.mxu0 0
  %1311 = vmatpush1.bf16.msra.mxu0 0
  %1312 = vmatprep.subr.bf16.mxu0 0
  %1313 = vmatpush1.bf16.msra.mxu0 0
  %1314 = vmatprep.subr.bf16.mxu0 0
  %1315 = vmatpush1.bf16.msra.mxu0 0
  %1316 = vmatprep.subr.bf16.mxu0 0
  %1317 = vmatpush1.bf16.msra.mxu0 0
  %1318 = vmatprep.subr.bf16.mxu0 0
  %1319 = vmatpush1.bf16.msra.mxu0 0
  %1320 = vmatprep.subr.bf16.mxu0 0
  %1321 = vmatpush1.bf16.msra.mxu0 0
  %1322 = vmatprep.subr.bf16.mxu0 0
  %1323 = vmatpush1.bf16.msra.mxu0 0
  %1324 = vmatprep.subr.bf16.mxu0 0
  %1325 = vmatpush1.bf16.msra.mxu0 0
  %1326 = vmatprep.subr.bf16.mxu0 0
  %1327 = vmatpush1.bf16.msra.mxu0 0
  %1328 = vmatprep.subr.bf16.mxu0 0
  %1329 = vmatpush1.bf16.msra.mxu0 0
  %1330 = vmatprep.subr.bf16.mxu0 0
  %1331 = vmatpush1.bf16.msra.mxu0 0
  %1332 = vmatprep.subr.bf16.mxu0 0
  %1333 = vmatpush1.bf16.msra.mxu0 0
  %1334 = vmatprep.subr.bf16.mxu0 0
  %1335 = vmatpush1.bf16.msra.mxu0 0
  %1336 = vmatprep.mubr.bf16.mxu0 0
  %1337 = vmatmul.mubr.bf16.gmra.mrb[0].mxu0 %v1302
  %v1338 = vpop.f32.mrb[0].mxu0
  %v1339 = vadd.f32 0.0, %v1338
  %v1340 = vpop.f32.mrb[0].mxu0
  %v1341 = vpop.f32.mrb[0].mxu0
  %v1342 = vpop.f32.mrb[0].mxu0
  %1343 = vdwg.mxu0
  %v1344 = vadd.f32 %v1296, %v1339
  %v1345 = vxor.u32 %v1344, 2147483648
  %v1346 = vmul.f32 %v1345, 1.442695
  %v1347 = vpow.pop %v1346
  %v1348 = vadd.f32 %v1347, 1.0
  %v1349 = vrcp.pop %v1348
  %v1350 = vmul.f32 1.0, %v1349
  %v1351 = vtanh.pop %v1344
  %v1352 = vmul.f32 %v1350, %v1284
  %1354 = vrot.lane.b32.xlu0 %v1351, 64
  %v1355 = vpop.permute.xlu0 %1354
  %v1357 = vmul.f32 %v1350, %v1355
  %1359 = vrot.lane.b32.xlu0 %v1357, 32
  %v1360 = vpop.permute.xlu0 %1359
  %v1362 = vadd.f32 %v1352, %v1360
  %v1363 = vtanh.pop %v1362
  %1365 = vrot.lane.b32.xlu0 %v1363, 64
  %v1366 = vpop.permute.xlu0 %1365
  %v1368 = vmul.f32 %v1350, %v1366
  %1370 = vrot.lane.b32.xlu0 %v1368, 32
  %v1371 = vpop.permute.xlu0 %1370
  %1373 = vst.msk [vmem:[%s610] sm:$0xff] %vm120, %v1371
  %v1374 = vld [vmem:[%s612] sm:$0xff]
  %v1375 = vpack.c.bf16 %v1368, %v1368
  %1377 = vrot.lane.b32.xlu0 %v1375, 32
  %v1378 = vpop.permute.xlu0 %1377
  %v1380 = vsel %vm120, %v1378, 0
  %1382 = vmatprep.subr.bf16.mxu0 0
  %1383 = vmatpush1.bf16.msra.mxu0 %v988
  %1384 = vmatprep.subr.bf16.mxu0 0
  %1385 = vmatpush1.bf16.msra.mxu0 %v989
  %1386 = vmatprep.subr.bf16.mxu0 0
  %1387 = vmatpush1.bf16.msra.mxu0 0
  %1388 = vmatprep.subr.bf16.mxu0 0
  %1389 = vmatpush1.bf16.msra.mxu0 0
  %1390 = vmatprep.subr.bf16.mxu0 0
  %1391 = vmatpush1.bf16.msra.mxu0 0
  %1392 = vmatprep.subr.bf16.mxu0 0
  %1393 = vmatpush1.bf16.msra.mxu0 0
  %1394 = vmatprep.subr.bf16.mxu0 0
  %1395 = vmatpush1.bf16.msra.mxu0 0
  %1396 = vmatprep.subr.bf16.mxu0 0
  %1397 = vmatpush1.bf16.msra.mxu0 0
  %1398 = vmatprep.subr.bf16.mxu0 0
  %1399 = vmatpush1.bf16.msra.mxu0 0
  %1400 = vmatprep.subr.bf16.mxu0 0
  %1401 = vmatpush1.bf16.msra.mxu0 0
  %1402 = vmatprep.subr.bf16.mxu0 0
  %1403 = vmatpush1.bf16.msra.mxu0 0
  %1404 = vmatprep.subr.bf16.mxu0 0
  %1405 = vmatpush1.bf16.msra.mxu0 0
  %1406 = vmatprep.subr.bf16.mxu0 0
  %1407 = vmatpush1.bf16.msra.mxu0 0
  %1408 = vmatprep.subr.bf16.mxu0 0
  %1409 = vmatpush1.bf16.msra.mxu0 0
  %1410 = vmatprep.subr.bf16.mxu0 0
  %1411 = vmatpush1.bf16.msra.mxu0 0
  %1412 = vmatprep.subr.bf16.mxu0 0
  %1413 = vmatpush1.bf16.msra.mxu0 0
  %1414 = vmatprep.mubr.bf16.mxu0 0
  %1415 = vmatmul.mubr.bf16.gmra.mrb[0].mxu0 %v1380
  %v1416 = vpop.f32.mrb[0].mxu0
  %v1417 = vadd.f32 0.0, %v1416
  %v1418 = vpop.f32.mrb[0].mxu0
  %v1419 = vpop.f32.mrb[0].mxu0
  %v1420 = vpop.f32.mrb[0].mxu0
  %1421 = vdwg.mxu0
  %v1422 = vadd.f32 %v1374, %v1417
  %v1423 = vxor.u32 %v1422, 2147483648
  %v1424 = vmul.f32 %v1423, 1.442695
  %v1425 = vpow.pop %v1424
  %v1426 = vadd.f32 %v1425, 1.0
  %v1427 = vrcp.pop %v1426
  %v1428 = vmul.f32 1.0, %v1427
  %v1429 = vtanh.pop %v1422
  %v1430 = vmul.f32 %v1428, %v1362
  %1432 = vrot.lane.b32.xlu0 %v1429, 64
  %v1433 = vpop.permute.xlu0 %1432
  %v1435 = vmul.f32 %v1428, %v1433
  %1437 = vrot.lane.b32.xlu0 %v1435, 32
  %v1438 = vpop.permute.xlu0 %1437
  %v1440 = vadd.f32 %v1430, %v1438
  %v1441 = vtanh.pop %v1440
  %1443 = vrot.lane.b32.xlu0 %v1441, 64
  %v1444 = vpop.permute.xlu0 %1443
  %v1446 = vmul.f32 %v1428, %v1444
  %1448 = vrot.lane.b32.xlu0 %v1446, 32
  %v1449 = vpop.permute.xlu0 %1448
  %1451 = vst.msk [vmem:[%s690] sm:$0xff] %vm120, %v1449
  %v1452 = vld [vmem:[%s692] sm:$0xff]
  %v1453 = vpack.c.bf16 %v1446, %v1446
  %1455 = vrot.lane.b32.xlu0 %v1453, 32
  %v1456 = vpop.permute.xlu0 %1455
  %v1458 = vsel %vm120, %v1456, 0
  %1460 = vmatprep.subr.bf16.mxu0 0
  %1461 = vmatpush1.bf16.msra.mxu0 %v988
  %1462 = vmatprep.subr.bf16.mxu0 0
  %1463 = vmatpush1.bf16.msra.mxu0 %v989
  %1464 = vmatprep.subr.bf16.mxu0 0
  %1465 = vmatpush1.bf16.msra.mxu0 0
  %1466 = vmatprep.subr.bf16.mxu0 0
  %1467 = vmatpush1.bf16.msra.mxu0 0
  %1468 = vmatprep.subr.bf16.mxu0 0
  %1469 = vmatpush1.bf16.msra.mxu0 0
  %1470 = vmatprep.subr.bf16.mxu0 0
  %1471 = vmatpush1.bf16.msra.mxu0 0
  %1472 = vmatprep.subr.bf16.mxu0 0
  %1473 = vmatpush1.bf16.msra.mxu0 0
  %1474 = vmatprep.subr.bf16.mxu0 0
  %1475 = vmatpush1.bf16.msra.mxu0 0
  %1476 = vmatprep.subr.bf16.mxu0 0
  %1477 = vmatpush1.bf16.msra.mxu0 0
  %1478 = vmatprep.subr.bf16.mxu0 0
  %1479 = vmatpush1.bf16.msra.mxu0 0
  %1480 = vmatprep.subr.bf16.mxu0 0
  %1481 = vmatpush1.bf16.msra.mxu0 0
  %1482 = vmatprep.subr.bf16.mxu0 0
  %1483 = vmatpush1.bf16.msra.mxu0 0
  %1484 = vmatprep.subr.bf16.mxu0 0
  %1485 = vmatpush1.bf16.msra.mxu0 0
  %1486 = vmatprep.subr.bf16.mxu0 0
  %1487 = vmatpush1.bf16.msra.mxu0 0
  %1488 = vmatprep.subr.bf16.mxu0 0
  %1489 = vmatpush1.bf16.msra.mxu0 0
  %1490 = vmatprep.subr.bf16.mxu0 0
  %1491 = vmatpush1.bf16.msra.mxu0 0
  %1492 = vmatprep.mubr.bf16.mxu0 0
  %1493 = vmatmul.mubr.bf16.gmra.mrb[0].mxu0 %v1458
  %v1494 = vpop.f32.mrb[0].mxu0
  %v1495 = vadd.f32 0.0, %v1494
  %v1496 = vpop.f32.mrb[0].mxu0
  %v1497 = vpop.f32.mrb[0].mxu0
  %v1498 = vpop.f32.mrb[0].mxu0
  %1499 = vdwg.mxu0
  %v1500 = vadd.f32 %v1452, %v1495
  %v1501 = vxor.u32 %v1500, 2147483648
  %v1502 = vmul.f32 %v1501, 1.442695
  %v1503 = vpow.pop %v1502
  %v1504 = vadd.f32 %v1503, 1.0
  %v1505 = vrcp.pop %v1504
  %v1506 = vmul.f32 1.0, %v1505
  %v1507 = vtanh.pop %v1500
  %v1508 = vmul.f32 %v1506, %v1440
  %1510 = vrot.lane.b32.xlu0 %v1507, 64
  %v1511 = vpop.permute.xlu0 %1510
  %v1513 = vmul.f32 %v1506, %v1511
  %1515 = vrot.lane.b32.xlu0 %v1513, 32
  %v1516 = vpop.permute.xlu0 %1515
  %v1518 = vadd.f32 %v1508, %v1516
  %v1519 = vtanh.pop %v1518
  %1521 = vrot.lane.b32.xlu0 %v1519, 64
  %v1522 = vpop.permute.xlu0 %1521
  %v1524 = vmul.f32 %v1506, %v1522
  %1526 = vrot.lane.b32.xlu0 %v1524, 32
  %v1527 = vpop.permute.xlu0 %1526
  %1529 = vst.msk [vmem:[%s770] sm:$0xff] %vm120, %v1527
  %v1530 = vld [vmem:[%s772] sm:$0xff]
  %v1531 = vpack.c.bf16 %v1524, %v1524
  %1533 = vrot.lane.b32.xlu0 %v1531, 32
  %v1534 = vpop.permute.xlu0 %1533
  %v1536 = vsel %vm120, %v1534, 0
  %1538 = vmatprep.subr.bf16.mxu0 0
  %1539 = vmatpush1.bf16.msra.mxu0 %v988
  %1540 = vmatprep.subr.bf16.mxu0 0
  %1541 = vmatpush1.bf16.msra.mxu0 %v989
  %1542 = vmatprep.subr.bf16.mxu0 0
  %1543 = vmatpush1.bf16.msra.mxu0 0
  %1544 = vmatprep.subr.bf16.mxu0 0
  %1545 = vmatpush1.bf16.msra.mxu0 0
  %1546 = vmatprep.subr.bf16.mxu0 0
  %1547 = vmatpush1.bf16.msra.mxu0 0
  %1548 = vmatprep.subr.bf16.mxu0 0
  %1549 = vmatpush1.bf16.msra.mxu0 0
  %1550 = vmatprep.subr.bf16.mxu0 0
  %1551 = vmatpush1.bf16.msra.mxu0 0
  %1552 = vmatprep.subr.bf16.mxu0 0
  %1553 = vmatpush1.bf16.msra.mxu0 0
  %1554 = vmatprep.subr.bf16.mxu0 0
  %1555 = vmatpush1.bf16.msra.mxu0 0
  %1556 = vmatprep.subr.bf16.mxu0 0
  %1557 = vmatpush1.bf16.msra.mxu0 0
  %1558 = vmatprep.subr.bf16.mxu0 0
  %1559 = vmatpush1.bf16.msra.mxu0 0
  %1560 = vmatprep.subr.bf16.mxu0 0
  %1561 = vmatpush1.bf16.msra.mxu0 0
  %1562 = vmatprep.subr.bf16.mxu0 0
  %1563 = vmatpush1.bf16.msra.mxu0 0
  %1564 = vmatprep.subr.bf16.mxu0 0
  %1565 = vmatpush1.bf16.msra.mxu0 0
  %1566 = vmatprep.subr.bf16.mxu0 0
  %1567 = vmatpush1.bf16.msra.mxu0 0
  %1568 = vmatprep.subr.bf16.mxu0 0
  %1569 = vmatpush1.bf16.msra.mxu0 0
  %1570 = vmatprep.mubr.bf16.mxu0 0
  %1571 = vmatmul.mubr.bf16.gmra.mrb[0].mxu0 %v1536
  %v1572 = vpop.f32.mrb[0].mxu0
  %v1573 = vadd.f32 0.0, %v1572
  %v1574 = vpop.f32.mrb[0].mxu0
  %v1575 = vpop.f32.mrb[0].mxu0
  %v1576 = vpop.f32.mrb[0].mxu0
  %1577 = vdwg.mxu0
  %v1578 = vadd.f32 %v1530, %v1573
  %v1579 = vxor.u32 %v1578, 2147483648
  %v1580 = vmul.f32 %v1579, 1.442695
  %v1581 = vpow.pop %v1580
  %v1582 = vadd.f32 %v1581, 1.0
  %v1583 = vrcp.pop %v1582
  %v1584 = vmul.f32 1.0, %v1583
  %v1585 = vtanh.pop %v1578
  %v1586 = vmul.f32 %v1584, %v1518
  %1588 = vrot.lane.b32.xlu0 %v1585, 64
  %v1589 = vpop.permute.xlu0 %1588
  %v1591 = vmul.f32 %v1584, %v1589
  %1593 = vrot.lane.b32.xlu0 %v1591, 32
  %v1594 = vpop.permute.xlu0 %1593
  %v1596 = vadd.f32 %v1586, %v1594
  %v1597 = vtanh.pop %v1596
  %1599 = vrot.lane.b32.xlu0 %v1597, 64
  %v1600 = vpop.permute.xlu0 %1599
  %v1602 = vmul.f32 %v1584, %v1600
  %1604 = vrot.lane.b32.xlu0 %v1602, 32
  %v1605 = vpop.permute.xlu0 %1604
  %1607 = vst.msk [vmem:[%s850] sm:$0xff] %vm120, %v1605
  %s1608 = scalar_lea.vmem %s1, 32
  %v1609 = vld [vmem:[%s1608] sm:$0xf]
  %v1610 = vld [vmem:[%s1608 + $0x4] sm:$0xf]
  %v1611 = vld [vmem:[%s1608 + $0x8] sm:$0xf]
  %v1612 = vld [vmem:[%s1608 + $0xc] sm:$0xf]
  %s1613 = scalar_lea.vmem %s2, 32
  %v1614 = vld [vmem:[%s1613] sm:$0xf]
  %v1615 = vld [vmem:[%s1613 + $0x4] sm:$0xf]
  %v1616 = vld [vmem:[%s1613 + $0x8] sm:$0xf]
  %v1617 = vld [vmem:[%s1613 + $0xc] sm:$0xf]
  %s1618 = scalar_lea.vmem %s3, 2
  %v1619 = vld [vmem:[%s1618] sm:$0x1]
  %v1620 = vld [vmem:[#allocation2] sm:$0xff]
  %v1621 = vld [vmem:[#allocation2 + $0x8] sm:$0xff]
  %v1622 = vld [vmem:[#allocation2 + $0x10] sm:$0xff]
  %v1623 = vld [vmem:[#allocation2 + $0x18] sm:$0xff]
  %v1624 = vld [vmem:[#allocation2 + $0x20] sm:$0xff]
  %v1625 = vld [vmem:[#allocation2 + $0x28] sm:$0xff]
  %v1626 = vld [vmem:[#allocation2 + $0x30] sm:$0xff]
  %v1627 = vld [vmem:[#allocation2 + $0x38] sm:$0xff]
  %v1628 = vpack.c.bf16 %v1621, %v1620
  %v1629 = vpack.c.bf16 %v1623, %v1622
  %v1630 = vpack.c.bf16 %v1625, %v1624
  %v1631 = vpack.c.bf16 %v1627, %v1626
  %v1633 = vlaneseq
  %v1634 = vshrl.u32 %v1633, 7
  %v1635 = vsub.s32 0, %v1634
  %v1636 = vrot.slane %v1619, %v1635
  %v1642 = vunpack.c.l.b16 %v1609
  %v1643 = vunpack.c.l.b16 %v1610
  %v1644 = vunpack.c.l.b16 %v1611
  %v1645 = vunpack.c.l.b16 %v1612
  %v1646 = vpack.c.b16 %v1643, %v1642
  %v1647 = vpack.c.b16 %v1645, %v1644
  %v1651 = vsel %vm120, %v1628, 0
  %v1654 = vsel %vm120, %v1629, 0
  %v1657 = vsel %vm120, %v1630, 0
  %v1660 = vsel %vm120, %v1631, 0
  %1662 = vmatprep.subr.bf16.mxu0 0
  %1663 = vmatpush1.bf16.msra.mxu0 %v1646
  %1664 = vmatprep.subr.bf16.mxu0 0
  %1665 = vmatpush1.bf16.msra.mxu0 %v1647
  %1666 = vmatprep.subr.bf16.mxu0 0
  %1667 = vmatpush1.bf16.msra.mxu0 0
  %1668 = vmatprep.subr.bf16.mxu0 0
  %1669 = vmatpush1.bf16.msra.mxu0 0
  %1670 = vmatprep.subr.bf16.mxu0 0
  %1671 = vmatpush1.bf16.msra.mxu0 0
  %1672 = vmatprep.subr.bf16.mxu0 0
  %1673 = vmatpush1.bf16.msra.mxu0 0
  %1674 = vmatprep.subr.bf16.mxu0 0
  %1675 = vmatpush1.bf16.msra.mxu0 0
  %1676 = vmatprep.subr.bf16.mxu0 0
  %1677 = vmatpush1.bf16.msra.mxu0 0
  %1678 = vmatprep.subr.bf16.mxu0 0
  %1679 = vmatpush1.bf16.msra.mxu0 0
  %1680 = vmatprep.subr.bf16.mxu0 0
  %1681 = vmatpush1.bf16.msra.mxu0 0
  %1682 = vmatprep.subr.bf16.mxu0 0
  %1683 = vmatpush1.bf16.msra.mxu0 0
  %1684 = vmatprep.subr.bf16.mxu0 0
  %1685 = vmatpush1.bf16.msra.mxu0 0
  %1686 = vmatprep.subr.bf16.mxu0 0
  %1687 = vmatpush1.bf16.msra.mxu0 0
  %1688 = vmatprep.subr.bf16.mxu0 0
  %1689 = vmatpush1.bf16.msra.mxu0 0
  %1690 = vmatprep.subr.bf16.mxu0 0
  %1691 = vmatpush1.bf16.msra.mxu0 0
  %1692 = vmatprep.subr.bf16.mxu0 0
  %1693 = vmatpush1.bf16.msra.mxu0 0
  %1694 = vmatprep.mubr.bf16.mxu0 0
  %1695 = vmatmul.mubr.bf16.gmra.mrb[0].mxu0 %v1651
  %v1696 = vpop.f32.mrb[0].mxu0
  %v1697 = vadd.f32 %v1636, %v1696
  %v1698 = vpop.f32.mrb[0].mxu0
  %v1699 = vpop.f32.mrb[0].mxu0
  %v1700 = vadd.f32 %v1636, %v1699
  %v1701 = vpop.f32.mrb[0].mxu0
  %1702 = vmatprep.mubr.bf16.mxu0 0
  %1703 = vmatmul.mubr.bf16.gmra.mrb[0].mxu0 %v1654
  %v1704 = vpop.f32.mrb[0].mxu0
  %v1705 = vadd.f32 %v1636, %v1704
  %v1706 = vpop.f32.mrb[0].mxu0
  %v1707 = vpop.f32.mrb[0].mxu0
  %v1708 = vadd.f32 %v1636, %v1707
  %v1709 = vpop.f32.mrb[0].mxu0
  %1710 = vmatprep.mubr.bf16.mxu0 0
  %1711 = vmatmul.mubr.bf16.gmra.mrb[0].mxu0 %v1657
  %v1712 = vpop.f32.mrb[0].mxu0
  %v1713 = vadd.f32 %v1636, %v1712
  %v1714 = vpop.f32.mrb[0].mxu0
  %v1715 = vpop.f32.mrb[0].mxu0
  %v1716 = vadd.f32 %v1636, %v1715
  %v1717 = vpop.f32.mrb[0].mxu0
  %1718 = vmatprep.mubr.bf16.mxu0 0
  %1719 = vmatmul.mubr.bf16.gmra.mrb[0].mxu0 %v1660
  %v1720 = vpop.f32.mrb[0].mxu0
  %v1721 = vadd.f32 %v1636, %v1720
  %v1722 = vpop.f32.mrb[0].mxu0
  %v1723 = vpop.f32.mrb[0].mxu0
  %v1724 = vadd.f32 %v1636, %v1723
  %v1725 = vpop.f32.mrb[0].mxu0
  %1726 = vdwg.mxu0
  %1727 = vst [vmem:[#allocation3] sm:$0xff] %v1697
  %1728 = vst [vmem:[#allocation3 + $0x8] sm:$0xff] %v1700
  %1729 = vst [vmem:[#allocation3 + $0x10] sm:$0xff] %v1705
  %1730 = vst [vmem:[#allocation3 + $0x18] sm:$0xff] %v1708
  %1731 = vst [vmem:[#allocation3 + $0x20] sm:$0xff] %v1713
  %1732 = vst [vmem:[#allocation3 + $0x28] sm:$0xff] %v1716
  %1733 = vst [vmem:[#allocation3 + $0x30] sm:$0xff] %v1721
  %1734 = vst [vmem:[#allocation3 + $0x38] sm:$0xff] %v1724
  %v1735 = vld [vmem:[#allocation3] sm:$0xff]
  %v1740 = vunpack.c.l.b16 %v1614
  %v1741 = vunpack.c.l.b16 %v1615
  %v1742 = vunpack.c.l.b16 %v1616
  %v1743 = vunpack.c.l.b16 %v1617
  %v1744 = vpack.c.b16 %v1741, %v1740
  %v1745 = vpack.c.b16 %v1743, %v1742
  %1748 = vmatprep.subr.bf16.mxu0 0
  %1749 = vmatpush1.bf16.msra.mxu0 %v1744
  %1750 = vmatprep.subr.bf16.mxu0 0
  %1751 = vmatpush1.bf16.msra.mxu0 %v1745
  %1752 = vmatprep.subr.bf16.mxu0 0
  %1753 = vmatpush1.bf16.msra.mxu0 0
  %1754 = vmatprep.subr.bf16.mxu0 0
  %1755 = vmatpush1.bf16.msra.mxu0 0
  %1756 = vmatprep.subr.bf16.mxu0 0
  %1757 = vmatpush1.bf16.msra.mxu0 0
  %1758 = vmatprep.subr.bf16.mxu0 0
  %1759 = vmatpush1.bf16.msra.mxu0 0
  %1760 = vmatprep.subr.bf16.mxu0 0
  %1761 = vmatpush1.bf16.msra.mxu0 0
  %1762 = vmatprep.subr.bf16.mxu0 0
  %1763 = vmatpush1.bf16.msra.mxu0 0
  %1764 = vmatprep.subr.bf16.mxu0 0
  %1765 = vmatpush1.bf16.msra.mxu0 0
  %1766 = vmatprep.subr.bf16.mxu0 0
  %1767 = vmatpush1.bf16.msra.mxu0 0
  %1768 = vmatprep.subr.bf16.mxu0 0
  %1769 = vmatpush1.bf16.msra.mxu0 0
  %1770 = vmatprep.subr.bf16.mxu0 0
  %1771 = vmatpush1.bf16.msra.mxu0 0
  %1772 = vmatprep.subr.bf16.mxu0 0
  %1773 = vmatpush1.bf16.msra.mxu0 0
  %1774 = vmatprep.subr.bf16.mxu0 0
  %1775 = vmatpush1.bf16.msra.mxu0 0
  %1776 = vmatprep.subr.bf16.mxu0 0
  %1777 = vmatpush1.bf16.msra.mxu0 0
  %1778 = vmatprep.subr.bf16.mxu0 0
  %1779 = vmatpush1.bf16.msra.mxu0 0
  %1780 = vmatprep.mubr.bf16.mxu0 0
  %1781 = vmatmul.mubr.bf16.gmra.mrb[0].mxu0 %v220
  %v1782 = vpop.f32.mrb[0].mxu0
  %v1783 = vadd.f32 0.0, %v1782
  %v1784 = vpop.f32.mrb[0].mxu0
  %v1785 = vpop.f32.mrb[0].mxu0
  %v1786 = vpop.f32.mrb[0].mxu0
  %1787 = vdwg.mxu0
  %v1788 = vadd.f32 %v1735, %v1783
  %v1789 = vxor.u32 %v1788, 2147483648
  %v1790 = vmul.f32 %v1789, 1.442695
  %v1791 = vpow.pop %v1790
  %v1792 = vadd.f32 %v1791, 1.0
  %v1793 = vrcp.pop %v1792
  %v1794 = vmul.f32 1.0, %v1793
  %v1795 = vtanh.pop %v1788
  %v1796 = vmul.f32 %v1794, 0.0
  %1798 = vrot.lane.b32.xlu0 %v1795, 64
  %v1799 = vpop.permute.xlu0 %1798
  %v1801 = vmul.f32 %v1794, %v1799
  %1803 = vrot.lane.b32.xlu0 %v1801, 32
  %v1804 = vpop.permute.xlu0 %1803
  %v1806 = vadd.f32 %v1796, %v1804
  %v1807 = vtanh.pop %v1806
  %1809 = vrot.lane.b32.xlu0 %v1807, 64
  %v1810 = vpop.permute.xlu0 %1809
  %v1812 = vmul.f32 %v1794, %v1810
  %1814 = vrot.lane.b32.xlu0 %v1812, 32
  %v1815 = vpop.permute.xlu0 %1814
  %1817 = vst.msk [vmem:[#allocation2] sm:$0xff] %vm120, %v1815
  %v1818 = vld [vmem:[%s292] sm:$0xff]
  %v1819 = vpack.c.bf16 %v1812, %v1812
  %1821 = vrot.lane.b32.xlu0 %v1819, 32
  %v1822 = vpop.permute.xlu0 %1821
  %v1824 = vsel %vm120, %v1822, 0
  %1826 = vmatprep.subr.bf16.mxu0 0
  %1827 = vmatpush1.bf16.msra.mxu0 %v1744
  %1828 = vmatprep.subr.bf16.mxu0 0
  %1829 = vmatpush1.bf16.msra.mxu0 %v1745
  %1830 = vmatprep.subr.bf16.mxu0 0
  %1831 = vmatpush1.bf16.msra.mxu0 0
  %1832 = vmatprep.subr.bf16.mxu0 0
  %1833 = vmatpush1.bf16.msra.mxu0 0
  %1834 = vmatprep.subr.bf16.mxu0 0
  %1835 = vmatpush1.bf16.msra.mxu0 0
  %1836 = vmatprep.subr.bf16.mxu0 0
  %1837 = vmatpush1.bf16.msra.mxu0 0
  %1838 = vmatprep.subr.bf16.mxu0 0
  %1839 = vmatpush1.bf16.msra.mxu0 0
  %1840 = vmatprep.subr.bf16.mxu0 0
  %1841 = vmatpush1.bf16.msra.mxu0 0
  %1842 = vmatprep.subr.bf16.mxu0 0
  %1843 = vmatpush1.bf16.msra.mxu0 0
  %1844 = vmatprep.subr.bf16.mxu0 0
  %1845 = vmatpush1.bf16.msra.mxu0 0
  %1846 = vmatprep.subr.bf16.mxu0 0
  %1847 = vmatpush1.bf16.msra.mxu0 0
  %1848 = vmatprep.subr.bf16.mxu0 0
  %1849 = vmatpush1.bf16.msra.mxu0 0
  %1850 = vmatprep.subr.bf16.mxu0 0
  %1851 = vmatpush1.bf16.msra.mxu0 0
  %1852 = vmatprep.subr.bf16.mxu0 0
  %1853 = vmatpush1.bf16.msra.mxu0 0
  %1854 = vmatprep.subr.bf16.mxu0 0
  %1855 = vmatpush1.bf16.msra.mxu0 0
  %1856 = vmatprep.subr.bf16.mxu0 0
  %1857 = vmatpush1.bf16.msra.mxu0 0
  %1858 = vmatprep.mubr.bf16.mxu0 0
  %1859 = vmatmul.mubr.bf16.gmra.mrb[0].mxu0 %v1824
  %v1860 = vpop.f32.mrb[0].mxu0
  %v1861 = vadd.f32 0.0, %v1860
  %v1862 = vpop.f32.mrb[0].mxu0
  %v1863 = vpop.f32.mrb[0].mxu0
  %v1864 = vpop.f32.mrb[0].mxu0
  %1865 = vdwg.mxu0
  %v1866 = vadd.f32 %v1818, %v1861
  %v1867 = vxor.u32 %v1866, 2147483648
  %v1868 = vmul.f32 %v1867, 1.442695
  %v1869 = vpow.pop %v1868
  %v1870 = vadd.f32 %v1869, 1.0
  %v1871 = vrcp.pop %v1870
  %v1872 = vmul.f32 1.0, %v1871
  %v1873 = vtanh.pop %v1866
  %v1874 = vmul.f32 %v1872, %v1806
  %1876 = vrot.lane.b32.xlu0 %v1873, 64
  %v1877 = vpop.permute.xlu0 %1876
  %v1879 = vmul.f32 %v1872, %v1877
  %1881 = vrot.lane.b32.xlu0 %v1879, 32
  %v1882 = vpop.permute.xlu0 %1881
  %v1884 = vadd.f32 %v1874, %v1882
  %v1885 = vtanh.pop %v1884
  %1887 = vrot.lane.b32.xlu0 %v1885, 64
  %v1888 = vpop.permute.xlu0 %1887
  %v1890 = vmul.f32 %v1872, %v1888
  %1892 = vrot.lane.b32.xlu0 %v1890, 32
  %v1893 = vpop.permute.xlu0 %1892
  %1895 = vst.msk [vmem:[%s370] sm:$0xff] %vm120, %v1893
  %v1896 = vld [vmem:[%s372] sm:$0xff]
  %v1897 = vpack.c.bf16 %v1890, %v1890
  %1899 = vrot.lane.b32.xlu0 %v1897, 32
  %v1900 = vpop.permute.xlu0 %1899
  %v1902 = vsel %vm120, %v1900, 0
  %1904 = vmatprep.subr.bf16.mxu0 0
  %1905 = vmatpush1.bf16.msra.mxu0 %v1744
  %1906 = vmatprep.subr.bf16.mxu0 0
  %1907 = vmatpush1.bf16.msra.mxu0 %v1745
  %1908 = vmatprep.subr.bf16.mxu0 0
  %1909 = vmatpush1.bf16.msra.mxu0 0
  %1910 = vmatprep.subr.bf16.mxu0 0
  %1911 = vmatpush1.bf16.msra.mxu0 0
  %1912 = vmatprep.subr.bf16.mxu0 0
  %1913 = vmatpush1.bf16.msra.mxu0 0
  %1914 = vmatprep.subr.bf16.mxu0 0
  %1915 = vmatpush1.bf16.msra.mxu0 0
  %1916 = vmatprep.subr.bf16.mxu0 0
  %1917 = vmatpush1.bf16.msra.mxu0 0
  %1918 = vmatprep.subr.bf16.mxu0 0
  %1919 = vmatpush1.bf16.msra.mxu0 0
  %1920 = vmatprep.subr.bf16.mxu0 0
  %1921 = vmatpush1.bf16.msra.mxu0 0
  %1922 = vmatprep.subr.bf16.mxu0 0
  %1923 = vmatpush1.bf16.msra.mxu0 0
  %1924 = vmatprep.subr.bf16.mxu0 0
  %1925 = vmatpush1.bf16.msra.mxu0 0
  %1926 = vmatprep.subr.bf16.mxu0 0
  %1927 = vmatpush1.bf16.msra.mxu0 0
  %1928 = vmatprep.subr.bf16.mxu0 0
  %1929 = vmatpush1.bf16.msra.mxu0 0
  %1930 = vmatprep.subr.bf16.mxu0 0
  %1931 = vmatpush1.bf16.msra.mxu0 0
  %1932 = vmatprep.subr.bf16.mxu0 0
  %1933 = vmatpush1.bf16.msra.mxu0 0
  %1934 = vmatprep.subr.bf16.mxu0 0
  %1935 = vmatpush1.bf16.msra.mxu0 0
  %1936 = vmatprep.mubr.bf16.mxu0 0
  %1937 = vmatmul.mubr.bf16.gmra.mrb[0].mxu0 %v1902
  %v1938 = vpop.f32.mrb[0].mxu0
  %v1939 = vadd.f32 0.0, %v1938
  %v1940 = vpop.f32.mrb[0].mxu0
  %v1941 = vpop.f32.mrb[0].mxu0
  %v1942 = vpop.f32.mrb[0].mxu0
  %1943 = vdwg.mxu0
  %v1944 = vadd.f32 %v1896, %v1939
  %v1945 = vxor.u32 %v1944, 2147483648
  %v1946 = vmul.f32 %v1945, 1.442695
  %v1947 = vpow.pop %v1946
  %v1948 = vadd.f32 %v1947, 1.0
  %v1949 = vrcp.pop %v1948
  %v1950 = vmul.f32 1.0, %v1949
  %v1951 = vtanh.pop %v1944
  %v1952 = vmul.f32 %v1950, %v1884
  %1954 = vrot.lane.b32.xlu0 %v1951, 64
  %v1955 = vpop.permute.xlu0 %1954
  %v1957 = vmul.f32 %v1950, %v1955
  %1959 = vrot.lane.b32.xlu0 %v1957, 32
  %v1960 = vpop.permute.xlu0 %1959
  %v1962 = vadd.f32 %v1952, %v1960
  %v1963 = vtanh.pop %v1962
  %1965 = vrot.lane.b32.xlu0 %v1963, 64
  %v1966 = vpop.permute.xlu0 %1965
  %v1968 = vmul.f32 %v1950, %v1966
  %1970 = vrot.lane.b32.xlu0 %v1968, 32
  %v1971 = vpop.permute.xlu0 %1970
  %1973 = vst.msk [vmem:[%s450] sm:$0xff] %vm120, %v1971
  %v1974 = vld [vmem:[%s452] sm:$0xff]
  %v1975 = vpack.c.bf16 %v1968, %v1968
  %1977 = vrot.lane.b32.xlu0 %v1975, 32
  %v1978 = vpop.permute.xlu0 %1977
  %v1980 = vsel %vm120, %v1978, 0
  %1982 = vmatprep.subr.bf16.mxu0 0
  %1983 = vmatpush1.bf16.msra.mxu0 %v1744
  %1984 = vmatprep.subr.bf16.mxu0 0
  %1985 = vmatpush1.bf16.msra.mxu0 %v1745
  %1986 = vmatprep.subr.bf16.mxu0 0
  %1987 = vmatpush1.bf16.msra.mxu0 0
  %1988 = vmatprep.subr.bf16.mxu0 0
  %1989 = vmatpush1.bf16.msra.mxu0 0
  %1990 = vmatprep.subr.bf16.mxu0 0
  %1991 = vmatpush1.bf16.msra.mxu0 0
  %1992 = vmatprep.subr.bf16.mxu0 0
  %1993 = vmatpush1.bf16.msra.mxu0 0
  %1994 = vmatprep.subr.bf16.mxu0 0
  %1995 = vmatpush1.bf16.msra.mxu0 0
  %1996 = vmatprep.subr.bf16.mxu0 0
  %1997 = vmatpush1.bf16.msra.mxu0 0
  %1998 = vmatprep.subr.bf16.mxu0 0
  %1999 = vmatpush1.bf16.msra.mxu0 0
  %2000 = vmatprep.subr.bf16.mxu0 0
  %2001 = vmatpush1.bf16.msra.mxu0 0
  %2002 = vmatprep.subr.bf16.mxu0 0
  %2003 = vmatpush1.bf16.msra.mxu0 0
  %2004 = vmatprep.subr.bf16.mxu0 0
  %2005 = vmatpush1.bf16.msra.mxu0 0
  %2006 = vmatprep.subr.bf16.mxu0 0
  %2007 = vmatpush1.bf16.msra.mxu0 0
  %2008 = vmatprep.subr.bf16.mxu0 0
  %2009 = vmatpush1.bf16.msra.mxu0 0
  %2010 = vmatprep.subr.bf16.mxu0 0
  %2011 = vmatpush1.bf16.msra.mxu0 0
  %2012 = vmatprep.subr.bf16.mxu0 0
  %2013 = vmatpush1.bf16.msra.mxu0 0
  %2014 = vmatprep.mubr.bf16.mxu0 0
  %2015 = vmatmul.mubr.bf16.gmra.mrb[0].mxu0 %v1980
  %v2016 = vpop.f32.mrb[0].mxu0
  %v2017 = vadd.f32 0.0, %v2016
  %v2018 = vpop.f32.mrb[0].mxu0
  %v2019 = vpop.f32.mrb[0].mxu0
  %v2020 = vpop.f32.mrb[0].mxu0
  %2021 = vdwg.mxu0
  %v2022 = vadd.f32 %v1974, %v2017
  %v2023 = vxor.u32 %v2022, 2147483648
  %v2024 = vmul.f32 %v2023, 1.442695
  %v2025 = vpow.pop %v2024
  %v2026 = vadd.f32 %v2025, 1.0
  %v2027 = vrcp.pop %v2026
  %v2028 = vmul.f32 1.0, %v2027
  %v2029 = vtanh.pop %v2022
  %v2030 = vmul.f32 %v2028, %v1962
  %2032 = vrot.lane.b32.xlu0 %v2029, 64
  %v2033 = vpop.permute.xlu0 %2032
  %v2035 = vmul.f32 %v2028, %v2033
  %2037 = vrot.lane.b32.xlu0 %v2035, 32
  %v2038 = vpop.permute.xlu0 %2037
  %v2040 = vadd.f32 %v2030, %v2038
  %v2041 = vtanh.pop %v2040
  %2043 = vrot.lane.b32.xlu0 %v2041, 64
  %v2044 = vpop.permute.xlu0 %2043
  %v2046 = vmul.f32 %v2028, %v2044
  %2048 = vrot.lane.b32.xlu0 %v2046, 32
  %v2049 = vpop.permute.xlu0 %2048
  %2051 = vst.msk [vmem:[%s530] sm:$0xff] %vm120, %v2049
  %v2052 = vld [vmem:[%s532] sm:$0xff]
  %v2053 = vpack.c.bf16 %v2046, %v2046
  %2055 = vrot.lane.b32.xlu0 %v2053, 32
  %v2056 = vpop.permute.xlu0 %2055
  %v2058 = vsel %vm120, %v2056, 0
  %2060 = vmatprep.subr.bf16.mxu0 0
  %2061 = vmatpush1.bf16.msra.mxu0 %v1744
  %2062 = vmatprep.subr.bf16.mxu0 0
  %2063 = vmatpush1.bf16.msra.mxu0 %v1745
  %2064 = vmatprep.subr.bf16.mxu0 0
  %2065 = vmatpush1.bf16.msra.mxu0 0
  %2066 = vmatprep.subr.bf16.mxu0 0
  %2067 = vmatpush1.bf16.msra.mxu0 0
  %2068 = vmatprep.subr.bf16.mxu0 0
  %2069 = vmatpush1.bf16.msra.mxu0 0
  %2070 = vmatprep.subr.bf16.mxu0 0
  %2071 = vmatpush1.bf16.msra.mxu0 0
  %2072 = vmatprep.subr.bf16.mxu0 0
  %2073 = vmatpush1.bf16.msra.mxu0 0
  %2074 = vmatprep.subr.bf16.mxu0 0
  %2075 = vmatpush1.bf16.msra.mxu0 0
  %2076 = vmatprep.subr.bf16.mxu0 0
  %2077 = vmatpush1.bf16.msra.mxu0 0
  %2078 = vmatprep.subr.bf16.mxu0 0
  %2079 = vmatpush1.bf16.msra.mxu0 0
  %2080 = vmatprep.subr.bf16.mxu0 0
  %2081 = vmatpush1.bf16.msra.mxu0 0
  %2082 = vmatprep.subr.bf16.mxu0 0
  %2083 = vmatpush1.bf16.msra.mxu0 0
  %2084 = vmatprep.subr.bf16.mxu0 0
  %2085 = vmatpush1.bf16.msra.mxu0 0
  %2086 = vmatprep.subr.bf16.mxu0 0
  %2087 = vmatpush1.bf16.msra.mxu0 0
  %2088 = vmatprep.subr.bf16.mxu0 0
  %2089 = vmatpush1.bf16.msra.mxu0 0
  %2090 = vmatprep.subr.bf16.mxu0 0
  %2091 = vmatpush1.bf16.msra.mxu0 0
  %2092 = vmatprep.mubr.bf16.mxu0 0
  %2093 = vmatmul.mubr.bf16.gmra.mrb[0].mxu0 %v2058
  %v2094 = vpop.f32.mrb[0].mxu0
  %v2095 = vadd.f32 0.0, %v2094
  %v2096 = vpop.f32.mrb[0].mxu0
  %v2097 = vpop.f32.mrb[0].mxu0
  %v2098 = vpop.f32.mrb[0].mxu0
  %2099 = vdwg.mxu0
  %v2100 = vadd.f32 %v2052, %v2095
  %v2101 = vxor.u32 %v2100, 2147483648
  %v2102 = vmul.f32 %v2101, 1.442695
  %v2103 = vpow.pop %v2102
  %v2104 = vadd.f32 %v2103, 1.0
  %v2105 = vrcp.pop %v2104
  %v2106 = vmul.f32 1.0, %v2105
  %v2107 = vtanh.pop %v2100
  %v2108 = vmul.f32 %v2106, %v2040
  %2110 = vrot.lane.b32.xlu0 %v2107, 64
  %v2111 = vpop.permute.xlu0 %2110
  %v2113 = vmul.f32 %v2106, %v2111
  %2115 = vrot.lane.b32.xlu0 %v2113, 32
  %v2116 = vpop.permute.xlu0 %2115
  %v2118 = vadd.f32 %v2108, %v2116
  %v2119 = vtanh.pop %v2118
  %2121 = vrot.lane.b32.xlu0 %v2119, 64
  %v2122 = vpop.permute.xlu0 %2121
  %v2124 = vmul.f32 %v2106, %v2122
  %2126 = vrot.lane.b32.xlu0 %v2124, 32
  %v2127 = vpop.permute.xlu0 %2126
  %2129 = vst.msk [vmem:[%s610] sm:$0xff] %vm120, %v2127
  %v2130 = vld [vmem:[%s612] sm:$0xff]
  %v2131 = vpack.c.bf16 %v2124, %v2124
  %2133 = vrot.lane.b32.xlu0 %v2131, 32
  %v2134 = vpop.permute.xlu0 %2133
  %v2136 = vsel %vm120, %v2134, 0
  %2138 = vmatprep.subr.bf16.mxu0 0
  %2139 = vmatpush1.bf16.msra.mxu0 %v1744
  %2140 = vmatprep.subr.bf16.mxu0 0
  %2141 = vmatpush1.bf16.msra.mxu0 %v1745
  %2142 = vmatprep.subr.bf16.mxu0 0
  %2143 = vmatpush1.bf16.msra.mxu0 0
  %2144 = vmatprep.subr.bf16.mxu0 0
  %2145 = vmatpush1.bf16.msra.mxu0 0
  %2146 = vmatprep.subr.bf16.mxu0 0
  %2147 = vmatpush1.bf16.msra.mxu0 0
  %2148 = vmatprep.subr.bf16.mxu0 0
  %2149 = vmatpush1.bf16.msra.mxu0 0
  %2150 = vmatprep.subr.bf16.mxu0 0
  %2151 = vmatpush1.bf16.msra.mxu0 0
  %2152 = vmatprep.subr.bf16.mxu0 0
  %2153 = vmatpush1.bf16.msra.mxu0 0
  %2154 = vmatprep.subr.bf16.mxu0 0
  %2155 = vmatpush1.bf16.msra.mxu0 0
  %2156 = vmatprep.subr.bf16.mxu0 0
  %2157 = vmatpush1.bf16.msra.mxu0 0
  %2158 = vmatprep.subr.bf16.mxu0 0
  %2159 = vmatpush1.bf16.msra.mxu0 0
  %2160 = vmatprep.subr.bf16.mxu0 0
  %2161 = vmatpush1.bf16.msra.mxu0 0
  %2162 = vmatprep.subr.bf16.mxu0 0
  %2163 = vmatpush1.bf16.msra.mxu0 0
  %2164 = vmatprep.subr.bf16.mxu0 0
  %2165 = vmatpush1.bf16.msra.mxu0 0
  %2166 = vmatprep.subr.bf16.mxu0 0
  %2167 = vmatpush1.bf16.msra.mxu0 0
  %2168 = vmatprep.subr.bf16.mxu0 0
  %2169 = vmatpush1.bf16.msra.mxu0 0
  %2170 = vmatprep.mubr.bf16.mxu0 0
  %2171 = vmatmul.mubr.bf16.gmra.mrb[0].mxu0 %v2136
  %v2172 = vpop.f32.mrb[0].mxu0
  %v2173 = vadd.f32 0.0, %v2172
  %v2174 = vpop.f32.mrb[0].mxu0
  %v2175 = vpop.f32.mrb[0].mxu0
  %v2176 = vpop.f32.mrb[0].mxu0
  %2177 = vdwg.mxu0
  %v2178 = vadd.f32 %v2130, %v2173
  %v2179 = vxor.u32 %v2178, 2147483648
  %v2180 = vmul.f32 %v2179, 1.442695
  %v2181 = vpow.pop %v2180
  %v2182 = vadd.f32 %v2181, 1.0
  %v2183 = vrcp.pop %v2182
  %v2184 = vmul.f32 1.0, %v2183
  %v2185 = vtanh.pop %v2178
  %v2186 = vmul.f32 %v2184, %v2118
  %2188 = vrot.lane.b32.xlu0 %v2185, 64
  %v2189 = vpop.permute.xlu0 %2188
  %v2191 = vmul.f32 %v2184, %v2189
  %2193 = vrot.lane.b32.xlu0 %v2191, 32
  %v2194 = vpop.permute.xlu0 %2193
  %v2196 = vadd.f32 %v2186, %v2194
  %v2197 = vtanh.pop %v2196
  %2199 = vrot.lane.b32.xlu0 %v2197, 64
  %v2200 = vpop.permute.xlu0 %2199
  %v2202 = vmul.f32 %v2184, %v2200
  %2204 = vrot.lane.b32.xlu0 %v2202, 32
  %v2205 = vpop.permute.xlu0 %2204
  %2207 = vst.msk [vmem:[%s690] sm:$0xff] %vm120, %v2205
  %v2208 = vld [vmem:[%s692] sm:$0xff]
  %v2209 = vpack.c.bf16 %v2202, %v2202
  %2211 = vrot.lane.b32.xlu0 %v2209, 32
  %v2212 = vpop.permute.xlu0 %2211
  %v2214 = vsel %vm120, %v2212, 0
  %2216 = vmatprep.subr.bf16.mxu0 0
  %2217 = vmatpush1.bf16.msra.mxu0 %v1744
  %2218 = vmatprep.subr.bf16.mxu0 0
  %2219 = vmatpush1.bf16.msra.mxu0 %v1745
  %2220 = vmatprep.subr.bf16.mxu0 0
  %2221 = vmatpush1.bf16.msra.mxu0 0
  %2222 = vmatprep.subr.bf16.mxu0 0
  %2223 = vmatpush1.bf16.msra.mxu0 0
  %2224 = vmatprep.subr.bf16.mxu0 0
  %2225 = vmatpush1.bf16.msra.mxu0 0
  %2226 = vmatprep.subr.bf16.mxu0 0
  %2227 = vmatpush1.bf16.msra.mxu0 0
  %2228 = vmatprep.subr.bf16.mxu0 0
  %2229 = vmatpush1.bf16.msra.mxu0 0
  %2230 = vmatprep.subr.bf16.mxu0 0
  %2231 = vmatpush1.bf16.msra.mxu0 0
  %2232 = vmatprep.subr.bf16.mxu0 0
  %2233 = vmatpush1.bf16.msra.mxu0 0
  %2234 = vmatprep.subr.bf16.mxu0 0
  %2235 = vmatpush1.bf16.msra.mxu0 0
  %2236 = vmatprep.subr.bf16.mxu0 0
  %2237 = vmatpush1.bf16.msra.mxu0 0
  %2238 = vmatprep.subr.bf16.mxu0 0
  %2239 = vmatpush1.bf16.msra.mxu0 0
  %2240 = vmatprep.subr.bf16.mxu0 0
  %2241 = vmatpush1.bf16.msra.mxu0 0
  %2242 = vmatprep.subr.bf16.mxu0 0
  %2243 = vmatpush1.bf16.msra.mxu0 0
  %2244 = vmatprep.subr.bf16.mxu0 0
  %2245 = vmatpush1.bf16.msra.mxu0 0
  %2246 = vmatprep.subr.bf16.mxu0 0
  %2247 = vmatpush1.bf16.msra.mxu0 0
  %2248 = vmatprep.mubr.bf16.mxu0 0
  %2249 = vmatmul.mubr.bf16.gmra.mrb[0].mxu0 %v2214
  %v2250 = vpop.f32.mrb[0].mxu0
  %v2251 = vadd.f32 0.0, %v2250
  %v2252 = vpop.f32.mrb[0].mxu0
  %v2253 = vpop.f32.mrb[0].mxu0
  %v2254 = vpop.f32.mrb[0].mxu0
  %2255 = vdwg.mxu0
  %v2256 = vadd.f32 %v2208, %v2251
  %v2257 = vxor.u32 %v2256, 2147483648
  %v2258 = vmul.f32 %v2257, 1.442695
  %v2259 = vpow.pop %v2258
  %v2260 = vadd.f32 %v2259, 1.0
  %v2261 = vrcp.pop %v2260
  %v2262 = vmul.f32 1.0, %v2261
  %v2263 = vtanh.pop %v2256
  %v2264 = vmul.f32 %v2262, %v2196
  %2266 = vrot.lane.b32.xlu0 %v2263, 64
  %v2267 = vpop.permute.xlu0 %2266
  %v2269 = vmul.f32 %v2262, %v2267
  %2271 = vrot.lane.b32.xlu0 %v2269, 32
  %v2272 = vpop.permute.xlu0 %2271
  %v2274 = vadd.f32 %v2264, %v2272
  %v2275 = vtanh.pop %v2274
  %2277 = vrot.lane.b32.xlu0 %v2275, 64
  %v2278 = vpop.permute.xlu0 %2277
  %v2280 = vmul.f32 %v2262, %v2278
  %2282 = vrot.lane.b32.xlu0 %v2280, 32
  %v2283 = vpop.permute.xlu0 %2282
  %2285 = vst.msk [vmem:[%s770] sm:$0xff] %vm120, %v2283
  %v2286 = vld [vmem:[%s772] sm:$0xff]
  %v2287 = vpack.c.bf16 %v2280, %v2280
  %2289 = vrot.lane.b32.xlu0 %v2287, 32
  %v2290 = vpop.permute.xlu0 %2289
  %v2292 = vsel %vm120, %v2290, 0
  %2294 = vmatprep.subr.bf16.mxu0 0
  %2295 = vmatpush1.bf16.msra.mxu0 %v1744
  %2296 = vmatprep.subr.bf16.mxu0 0
  %2297 = vmatpush1.bf16.msra.mxu0 %v1745
  %2298 = vmatprep.subr.bf16.mxu0 0
  %2299 = vmatpush1.bf16.msra.mxu0 0
  %2300 = vmatprep.subr.bf16.mxu0 0
  %2301 = vmatpush1.bf16.msra.mxu0 0
  %2302 = vmatprep.subr.bf16.mxu0 0
  %2303 = vmatpush1.bf16.msra.mxu0 0
  %2304 = vmatprep.subr.bf16.mxu0 0
  %2305 = vmatpush1.bf16.msra.mxu0 0
  %2306 = vmatprep.subr.bf16.mxu0 0
  %2307 = vmatpush1.bf16.msra.mxu0 0
  %2308 = vmatprep.subr.bf16.mxu0 0
  %2309 = vmatpush1.bf16.msra.mxu0 0
  %2310 = vmatprep.subr.bf16.mxu0 0
  %2311 = vmatpush1.bf16.msra.mxu0 0
  %2312 = vmatprep.subr.bf16.mxu0 0
  %2313 = vmatpush1.bf16.msra.mxu0 0
  %2314 = vmatprep.subr.bf16.mxu0 0
  %2315 = vmatpush1.bf16.msra.mxu0 0
  %2316 = vmatprep.subr.bf16.mxu0 0
  %2317 = vmatpush1.bf16.msra.mxu0 0
  %2318 = vmatprep.subr.bf16.mxu0 0
  %2319 = vmatpush1.bf16.msra.mxu0 0
  %2320 = vmatprep.subr.bf16.mxu0 0
  %2321 = vmatpush1.bf16.msra.mxu0 0
  %2322 = vmatprep.subr.bf16.mxu0 0
  %2323 = vmatpush1.bf16.msra.mxu0 0
  %2324 = vmatprep.subr.bf16.mxu0 0
  %2325 = vmatpush1.bf16.msra.mxu0 0
  %2326 = vmatprep.mubr.bf16.mxu0 0
  %2327 = vmatmul.mubr.bf16.gmra.mrb[0].mxu0 %v2292
  %v2328 = vpop.f32.mrb[0].mxu0
  %v2329 = vadd.f32 0.0, %v2328
  %v2330 = vpop.f32.mrb[0].mxu0
  %v2331 = vpop.f32.mrb[0].mxu0
  %v2332 = vpop.f32.mrb[0].mxu0
  %2333 = vdwg.mxu0
  %v2334 = vadd.f32 %v2286, %v2329
  %v2335 = vxor.u32 %v2334, 2147483648
  %v2336 = vmul.f32 %v2335, 1.442695
  %v2337 = vpow.pop %v2336
  %v2338 = vadd.f32 %v2337, 1.0
  %v2339 = vrcp.pop %v2338
  %v2340 = vmul.f32 1.0, %v2339
  %v2341 = vtanh.pop %v2334
  %v2342 = vmul.f32 %v2340, %v2274
  %2344 = vrot.lane.b32.xlu0 %v2341, 64
  %v2345 = vpop.permute.xlu0 %2344
  %v2347 = vmul.f32 %v2340, %v2345
  %2349 = vrot.lane.b32.xlu0 %v2347, 32
  %v2350 = vpop.permute.xlu0 %2349
  %v2352 = vadd.f32 %v2342, %v2350
  %v2353 = vtanh.pop %v2352
  %2355 = vrot.lane.b32.xlu0 %v2353, 64
  %v2356 = vpop.permute.xlu0 %2355
  %v2358 = vmul.f32 %v2340, %v2356
  %2360 = vrot.lane.b32.xlu0 %v2358, 32
  %v2361 = vpop.permute.xlu0 %2360
  %2363 = vst.msk [vmem:[%s850] sm:$0xff] %vm120, %v2361
  %s2364 = scalar_lea.vmem %s1, 48
  %v2365 = vld [vmem:[%s2364] sm:$0xf]
  %v2366 = vld [vmem:[%s2364 + $0x4] sm:$0xf]
  %v2367 = vld [vmem:[%s2364 + $0x8] sm:$0xf]
  %v2368 = vld [vmem:[%s2364 + $0xc] sm:$0xf]
  %s2369 = scalar_lea.vmem %s2, 48
  %v2370 = vld [vmem:[%s2369] sm:$0xf]
  %v2371 = vld [vmem:[%s2369 + $0x4] sm:$0xf]
  %v2372 = vld [vmem:[%s2369 + $0x8] sm:$0xf]
  %v2373 = vld [vmem:[%s2369 + $0xc] sm:$0xf]
  %s2374 = scalar_lea.vmem %s3, 3
  %v2375 = vld [vmem:[%s2374] sm:$0x1]
  %v2376 = vld [vmem:[#allocation2] sm:$0xff]
  %v2377 = vld [vmem:[#allocation2 + $0x8] sm:$0xff]
  %v2378 = vld [vmem:[#allocation2 + $0x10] sm:$0xff]
  %v2379 = vld [vmem:[#allocation2 + $0x18] sm:$0xff]
  %v2380 = vld [vmem:[#allocation2 + $0x20] sm:$0xff]
  %v2381 = vld [vmem:[#allocation2 + $0x28] sm:$0xff]
  %v2382 = vld [vmem:[#allocation2 + $0x30] sm:$0xff]
  %v2383 = vld [vmem:[#allocation2 + $0x38] sm:$0xff]
  %v2384 = vpack.c.bf16 %v2377, %v2376
  %v2385 = vpack.c.bf16 %v2379, %v2378
  %v2386 = vpack.c.bf16 %v2381, %v2380
  %v2387 = vpack.c.bf16 %v2383, %v2382
  %v2389 = vlaneseq
  %v2390 = vshrl.u32 %v2389, 7
  %v2391 = vsub.s32 0, %v2390
  %v2392 = vrot.slane %v2375, %v2391
  %v2398 = vunpack.c.l.b16 %v2365
  %v2399 = vunpack.c.l.b16 %v2366
  %v2400 = vunpack.c.l.b16 %v2367
  %v2401 = vunpack.c.l.b16 %v2368
  %v2402 = vpack.c.b16 %v2399, %v2398
  %v2403 = vpack.c.b16 %v2401, %v2400
  %v2407 = vsel %vm120, %v2384, 0
  %v2410 = vsel %vm120, %v2385, 0
  %v2413 = vsel %vm120, %v2386, 0
  %v2416 = vsel %vm120, %v2387, 0
  %2418 = vmatprep.subr.bf16.mxu0 0
  %2419 = vmatpush1.bf16.msra.mxu0 %v2402
  %2420 = vmatprep.subr.bf16.mxu0 0
  %2421 = vmatpush1.bf16.msra.mxu0 %v2403
  %2422 = vmatprep.subr.bf16.mxu0 0
  %2423 = vmatpush1.bf16.msra.mxu0 0
  %2424 = vmatprep.subr.bf16.mxu0 0
  %2425 = vmatpush1.bf16.msra.mxu0 0
  %2426 = vmatprep.subr.bf16.mxu0 0
  %2427 = vmatpush1.bf16.msra.mxu0 0
  %2428 = vmatprep.subr.bf16.mxu0 0
  %2429 = vmatpush1.bf16.msra.mxu0 0
  %2430 = vmatprep.subr.bf16.mxu0 0
  %2431 = vmatpush1.bf16.msra.mxu0 0
  %2432 = vmatprep.subr.bf16.mxu0 0
  %2433 = vmatpush1.bf16.msra.mxu0 0
  %2434 = vmatprep.subr.bf16.mxu0 0
  %2435 = vmatpush1.bf16.msra.mxu0 0
  %2436 = vmatprep.subr.bf16.mxu0 0
  %2437 = vmatpush1.bf16.msra.mxu0 0
  %2438 = vmatprep.subr.bf16.mxu0 0
  %2439 = vmatpush1.bf16.msra.mxu0 0
  %2440 = vmatprep.subr.bf16.mxu0 0
  %2441 = vmatpush1.bf16.msra.mxu0 0
  %2442 = vmatprep.subr.bf16.mxu0 0
  %2443 = vmatpush1.bf16.msra.mxu0 0
  %2444 = vmatprep.subr.bf16.mxu0 0
  %2445 = vmatpush1.bf16.msra.mxu0 0
  %2446 = vmatprep.subr.bf16.mxu0 0
  %2447 = vmatpush1.bf16.msra.mxu0 0
  %2448 = vmatprep.subr.bf16.mxu0 0
  %2449 = vmatpush1.bf16.msra.mxu0 0
  %2450 = vmatprep.mubr.bf16.mxu0 0
  %2451 = vmatmul.mubr.bf16.gmra.mrb[0].mxu0 %v2407
  %v2452 = vpop.f32.mrb[0].mxu0
  %v2453 = vadd.f32 %v2392, %v2452
  %v2454 = vpop.f32.mrb[0].mxu0
  %v2455 = vpop.f32.mrb[0].mxu0
  %v2456 = vadd.f32 %v2392, %v2455
  %v2457 = vpop.f32.mrb[0].mxu0
  %2458 = vmatprep.mubr.bf16.mxu0 0
  %2459 = vmatmul.mubr.bf16.gmra.mrb[0].mxu0 %v2410
  %v2460 = vpop.f32.mrb[0].mxu0
  %v2461 = vadd.f32 %v2392, %v2460
  %v2462 = vpop.f32.mrb[0].mxu0
  %v2463 = vpop.f32.mrb[0].mxu0
  %v2464 = vadd.f32 %v2392, %v2463
  %v2465 = vpop.f32.mrb[0].mxu0
  %2466 = vmatprep.mubr.bf16.mxu0 0
  %2467 = vmatmul.mubr.bf16.gmra.mrb[0].mxu0 %v2413
  %v2468 = vpop.f32.mrb[0].mxu0
  %v2469 = vadd.f32 %v2392, %v2468
  %v2470 = vpop.f32.mrb[0].mxu0
  %v2471 = vpop.f32.mrb[0].mxu0
  %v2472 = vadd.f32 %v2392, %v2471
  %v2473 = vpop.f32.mrb[0].mxu0
  %2474 = vmatprep.mubr.bf16.mxu0 0
  %2475 = vmatmul.mubr.bf16.gmra.mrb[0].mxu0 %v2416
  %v2476 = vpop.f32.mrb[0].mxu0
  %v2477 = vadd.f32 %v2392, %v2476
  %v2478 = vpop.f32.mrb[0].mxu0
  %v2479 = vpop.f32.mrb[0].mxu0
  %v2480 = vadd.f32 %v2392, %v2479
  %v2481 = vpop.f32.mrb[0].mxu0
  %2482 = vdwg.mxu0
  %2483 = vst [vmem:[#allocation3] sm:$0xff] %v2453
  %2484 = vst [vmem:[#allocation3 + $0x8] sm:$0xff] %v2456
  %2485 = vst [vmem:[#allocation3 + $0x10] sm:$0xff] %v2461
  %2486 = vst [vmem:[#allocation3 + $0x18] sm:$0xff] %v2464
  %2487 = vst [vmem:[#allocation3 + $0x20] sm:$0xff] %v2469
  %2488 = vst [vmem:[#allocation3 + $0x28] sm:$0xff] %v2472
  %2489 = vst [vmem:[#allocation3 + $0x30] sm:$0xff] %v2477
  %2490 = vst [vmem:[#allocation3 + $0x38] sm:$0xff] %v2480
  %v2491 = vld [vmem:[#allocation3] sm:$0xff]
  %v2496 = vunpack.c.l.b16 %v2370
  %v2497 = vunpack.c.l.b16 %v2371
  %v2498 = vunpack.c.l.b16 %v2372
  %v2499 = vunpack.c.l.b16 %v2373
  %v2500 = vpack.c.b16 %v2497, %v2496
  %v2501 = vpack.c.b16 %v2499, %v2498
  %2504 = vmatprep.subr.bf16.mxu0 0
  %2505 = vmatpush1.bf16.msra.mxu0 %v2500
  %2506 = vmatprep.subr.bf16.mxu0 0
  %2507 = vmatpush1.bf16.msra.mxu0 %v2501
  %2508 = vmatprep.subr.bf16.mxu0 0
  %2509 = vmatpush1.bf16.msra.mxu0 0
  %2510 = vmatprep.subr.bf16.mxu0 0
  %2511 = vmatpush1.bf16.msra.mxu0 0
  %2512 = vmatprep.subr.bf16.mxu0 0
  %2513 = vmatpush1.bf16.msra.mxu0 0
  %2514 = vmatprep.subr.bf16.mxu0 0
  %2515 = vmatpush1.bf16.msra.mxu0 0
  %2516 = vmatprep.subr.bf16.mxu0 0
  %2517 = vmatpush1.bf16.msra.mxu0 0
  %2518 = vmatprep.subr.bf16.mxu0 0
  %2519 = vmatpush1.bf16.msra.mxu0 0
  %2520 = vmatprep.subr.bf16.mxu0 0
  %2521 = vmatpush1.bf16.msra.mxu0 0
  %2522 = vmatprep.subr.bf16.mxu0 0
  %2523 = vmatpush1.bf16.msra.mxu0 0
  %2524 = vmatprep.subr.bf16.mxu0 0
  %2525 = vmatpush1.bf16.msra.mxu0 0
  %2526 = vmatprep.subr.bf16.mxu0 0
  %2527 = vmatpush1.bf16.msra.mxu0 0
  %2528 = vmatprep.subr.bf16.mxu0 0
  %2529 = vmatpush1.bf16.msra.mxu0 0
  %2530 = vmatprep.subr.bf16.mxu0 0
  %2531 = vmatpush1.bf16.msra.mxu0 0
  %2532 = vmatprep.subr.bf16.mxu0 0
  %2533 = vmatpush1.bf16.msra.mxu0 0
  %2534 = vmatprep.subr.bf16.mxu0 0
  %2535 = vmatpush1.bf16.msra.mxu0 0
  %2536 = vmatprep.mubr.bf16.mxu0 0
  %2537 = vmatmul.mubr.bf16.gmra.mrb[0].mxu0 %v220
  %v2538 = vpop.f32.mrb[0].mxu0
  %v2539 = vadd.f32 0.0, %v2538
  %v2540 = vpop.f32.mrb[0].mxu0
  %v2541 = vpop.f32.mrb[0].mxu0
  %v2542 = vpop.f32.mrb[0].mxu0
  %2543 = vdwg.mxu0
  %v2544 = vadd.f32 %v2491, %v2539
  %v2545 = vxor.u32 %v2544, 2147483648
  %v2546 = vmul.f32 %v2545, 1.442695
  %v2547 = vpow.pop %v2546
  %v2548 = vadd.f32 %v2547, 1.0
  %v2549 = vrcp.pop %v2548
  %v2550 = vmul.f32 1.0, %v2549
  %v2551 = vtanh.pop %v2544
  %v2552 = vmul.f32 %v2550, 0.0
  %2554 = vrot.lane.b32.xlu0 %v2551, 64
  %v2555 = vpop.permute.xlu0 %2554
  %v2557 = vmul.f32 %v2550, %v2555
  %2559 = vrot.lane.b32.xlu0 %v2557, 32
  %v2560 = vpop.permute.xlu0 %2559
  %v2562 = vadd.f32 %v2552, %v2560
  %v2563 = vtanh.pop %v2562
  %2565 = vrot.lane.b32.xlu0 %v2563, 64
  %v2566 = vpop.permute.xlu0 %2565
  %v2568 = vmul.f32 %v2550, %v2566
  %2570 = vrot.lane.b32.xlu0 %v2568, 32
  %v2571 = vpop.permute.xlu0 %2570
  %2573 = vst.msk [vmem:[#allocation2] sm:$0xff] %vm120, %v2571
  %v2574 = vld [vmem:[%s292] sm:$0xff]
  %v2575 = vpack.c.bf16 %v2568, %v2568
  %2577 = vrot.lane.b32.xlu0 %v2575, 32
  %v2578 = vpop.permute.xlu0 %2577
  %v2580 = vsel %vm120, %v2578, 0
  %2582 = vmatprep.subr.bf16.mxu0 0
  %2583 = vmatpush1.bf16.msra.mxu0 %v2500
  %2584 = vmatprep.subr.bf16.mxu0 0
  %2585 = vmatpush1.bf16.msra.mxu0 %v2501
  %2586 = vmatprep.subr.bf16.mxu0 0
  %2587 = vmatpush1.bf16.msra.mxu0 0
  %2588 = vmatprep.subr.bf16.mxu0 0
  %2589 = vmatpush1.bf16.msra.mxu0 0
  %2590 = vmatprep.subr.bf16.mxu0 0
  %2591 = vmatpush1.bf16.msra.mxu0 0
  %2592 = vmatprep.subr.bf16.mxu0 0
  %2593 = vmatpush1.bf16.msra.mxu0 0
  %2594 = vmatprep.subr.bf16.mxu0 0
  %2595 = vmatpush1.bf16.msra.mxu0 0
  %2596 = vmatprep.subr.bf16.mxu0 0
  %2597 = vmatpush1.bf16.msra.mxu0 0
  %2598 = vmatprep.subr.bf16.mxu0 0
  %2599 = vmatpush1.bf16.msra.mxu0 0
  %2600 = vmatprep.subr.bf16.mxu0 0
  %2601 = vmatpush1.bf16.msra.mxu0 0
  %2602 = vmatprep.subr.bf16.mxu0 0
  %2603 = vmatpush1.bf16.msra.mxu0 0
  %2604 = vmatprep.subr.bf16.mxu0 0
  %2605 = vmatpush1.bf16.msra.mxu0 0
  %2606 = vmatprep.subr.bf16.mxu0 0
  %2607 = vmatpush1.bf16.msra.mxu0 0
  %2608 = vmatprep.subr.bf16.mxu0 0
  %2609 = vmatpush1.bf16.msra.mxu0 0
  %2610 = vmatprep.subr.bf16.mxu0 0
  %2611 = vmatpush1.bf16.msra.mxu0 0
  %2612 = vmatprep.subr.bf16.mxu0 0
  %2613 = vmatpush1.bf16.msra.mxu0 0
  %2614 = vmatprep.mubr.bf16.mxu0 0
  %2615 = vmatmul.mubr.bf16.gmra.mrb[0].mxu0 %v2580
  %v2616 = vpop.f32.mrb[0].mxu0
  %v2617 = vadd.f32 0.0, %v2616
  %v2618 = vpop.f32.mrb[0].mxu0
  %v2619 = vpop.f32.mrb[0].mxu0
  %v2620 = vpop.f32.mrb[0].mxu0
  %2621 = vdwg.mxu0
  %v2622 = vadd.f32 %v2574, %v2617
  %v2623 = vxor.u32 %v2622, 2147483648
  %v2624 = vmul.f32 %v2623, 1.442695
  %v2625 = vpow.pop %v2624
  %v2626 = vadd.f32 %v2625, 1.0
  %v2627 = vrcp.pop %v2626
  %v2628 = vmul.f32 1.0, %v2627
  %v2629 = vtanh.pop %v2622
  %v2630 = vmul.f32 %v2628, %v2562
  %2632 = vrot.lane.b32.xlu0 %v2629, 64
  %v2633 = vpop.permute.xlu0 %2632
  %v2635 = vmul.f32 %v2628, %v2633
  %2637 = vrot.lane.b32.xlu0 %v2635, 32
  %v2638 = vpop.permute.xlu0 %2637
  %v2640 = vadd.f32 %v2630, %v2638
  %v2641 = vtanh.pop %v2640
  %2643 = vrot.lane.b32.xlu0 %v2641, 64
  %v2644 = vpop.permute.xlu0 %2643
  %v2646 = vmul.f32 %v2628, %v2644
  %2648 = vrot.lane.b32.xlu0 %v2646, 32
  %v2649 = vpop.permute.xlu0 %2648
  %2651 = vst.msk [vmem:[%s370] sm:$0xff] %vm120, %v2649
  %v2652 = vld [vmem:[%s372] sm:$0xff]
  %v2653 = vpack.c.bf16 %v2646, %v2646
  %2655 = vrot.lane.b32.xlu0 %v2653, 32
  %v2656 = vpop.permute.xlu0 %2655
  %v2658 = vsel %vm120, %v2656, 0
  %2660 = vmatprep.subr.bf16.mxu0 0
  %2661 = vmatpush1.bf16.msra.mxu0 %v2500
  %2662 = vmatprep.subr.bf16.mxu0 0
  %2663 = vmatpush1.bf16.msra.mxu0 %v2501
  %2664 = vmatprep.subr.bf16.mxu0 0
  %2665 = vmatpush1.bf16.msra.mxu0 0
  %2666 = vmatprep.subr.bf16.mxu0 0
  %2667 = vmatpush1.bf16.msra.mxu0 0
  %2668 = vmatprep.subr.bf16.mxu0 0
  %2669 = vmatpush1.bf16.msra.mxu0 0
  %2670 = vmatprep.subr.bf16.mxu0 0
  %2671 = vmatpush1.bf16.msra.mxu0 0
  %2672 = vmatprep.subr.bf16.mxu0 0
  %2673 = vmatpush1.bf16.msra.mxu0 0
  %2674 = vmatprep.subr.bf16.mxu0 0
  %2675 = vmatpush1.bf16.msra.mxu0 0
  %2676 = vmatprep.subr.bf16.mxu0 0
  %2677 = vmatpush1.bf16.msra.mxu0 0
  %2678 = vmatprep.subr.bf16.mxu0 0
  %2679 = vmatpush1.bf16.msra.mxu0 0
  %2680 = vmatprep.subr.bf16.mxu0 0
  %2681 = vmatpush1.bf16.msra.mxu0 0
  %2682 = vmatprep.subr.bf16.mxu0 0
  %2683 = vmatpush1.bf16.msra.mxu0 0
  %2684 = vmatprep.subr.bf16.mxu0 0
  %2685 = vmatpush1.bf16.msra.mxu0 0
  %2686 = vmatprep.subr.bf16.mxu0 0
  %2687 = vmatpush1.bf16.msra.mxu0 0
  %2688 = vmatprep.subr.bf16.mxu0 0
  %2689 = vmatpush1.bf16.msra.mxu0 0
  %2690 = vmatprep.subr.bf16.mxu0 0
  %2691 = vmatpush1.bf16.msra.mxu0 0
  %2692 = vmatprep.mubr.bf16.mxu0 0
  %2693 = vmatmul.mubr.bf16.gmra.mrb[0].mxu0 %v2658
  %v2694 = vpop.f32.mrb[0].mxu0
  %v2695 = vadd.f32 0.0, %v2694
  %v2696 = vpop.f32.mrb[0].mxu0
  %v2697 = vpop.f32.mrb[0].mxu0
  %v2698 = vpop.f32.mrb[0].mxu0
  %2699 = vdwg.mxu0
  %v2700 = vadd.f32 %v2652, %v2695
  %v2701 = vxor.u32 %v2700, 2147483648
  %v2702 = vmul.f32 %v2701, 1.442695
  %v2703 = vpow.pop %v2702
  %v2704 = vadd.f32 %v2703, 1.0
  %v2705 = vrcp.pop %v2704
  %v2706 = vmul.f32 1.0, %v2705
  %v2707 = vtanh.pop %v2700
  %v2708 = vmul.f32 %v2706, %v2640
  %2710 = vrot.lane.b32.xlu0 %v2707, 64
  %v2711 = vpop.permute.xlu0 %2710
  %v2713 = vmul.f32 %v2706, %v2711
  %2715 = vrot.lane.b32.xlu0 %v2713, 32
  %v2716 = vpop.permute.xlu0 %2715
  %v2718 = vadd.f32 %v2708, %v2716
  %v2719 = vtanh.pop %v2718
  %2721 = vrot.lane.b32.xlu0 %v2719, 64
  %v2722 = vpop.permute.xlu0 %2721
  %v2724 = vmul.f32 %v2706, %v2722
  %2726 = vrot.lane.b32.xlu0 %v2724, 32
  %v2727 = vpop.permute.xlu0 %2726
  %2729 = vst.msk [vmem:[%s450] sm:$0xff] %vm120, %v2727
  %v2730 = vld [vmem:[%s452] sm:$0xff]
  %v2731 = vpack.c.bf16 %v2724, %v2724
  %2733 = vrot.lane.b32.xlu0 %v2731, 32
  %v2734 = vpop.permute.xlu0 %2733
  %v2736 = vsel %vm120, %v2734, 0
  %2738 = vmatprep.subr.bf16.mxu0 0
  %2739 = vmatpush1.bf16.msra.mxu0 %v2500
  %2740 = vmatprep.subr.bf16.mxu0 0
  %2741 = vmatpush1.bf16.msra.mxu0 %v2501
  %2742 = vmatprep.subr.bf16.mxu0 0
  %2743 = vmatpush1.bf16.msra.mxu0 0
  %2744 = vmatprep.subr.bf16.mxu0 0
  %2745 = vmatpush1.bf16.msra.mxu0 0
  %2746 = vmatprep.subr.bf16.mxu0 0
  %2747 = vmatpush1.bf16.msra.mxu0 0
  %2748 = vmatprep.subr.bf16.mxu0 0
  %2749 = vmatpush1.bf16.msra.mxu0 0
  %2750 = vmatprep.subr.bf16.mxu0 0
  %2751 = vmatpush1.bf16.msra.mxu0 0
  %2752 = vmatprep.subr.bf16.mxu0 0
  %2753 = vmatpush1.bf16.msra.mxu0 0
  %2754 = vmatprep.subr.bf16.mxu0 0
  %2755 = vmatpush1.bf16.msra.mxu0 0
  %2756 = vmatprep.subr.bf16.mxu0 0
  %2757 = vmatpush1.bf16.msra.mxu0 0
  %2758 = vmatprep.subr.bf16.mxu0 0
  %2759 = vmatpush1.bf16.msra.mxu0 0
  %2760 = vmatprep.subr.bf16.mxu0 0
  %2761 = vmatpush1.bf16.msra.mxu0 0
  %2762 = vmatprep.subr.bf16.mxu0 0
  %2763 = vmatpush1.bf16.msra.mxu0 0
  %2764 = vmatprep.subr.bf16.mxu0 0
  %2765 = vmatpush1.bf16.msra.mxu0 0
  %2766 = vmatprep.subr.bf16.mxu0 0
  %2767 = vmatpush1.bf16.msra.mxu0 0
  %2768 = vmatprep.subr.bf16.mxu0 0
  %2769 = vmatpush1.bf16.msra.mxu0 0
  %2770 = vmatprep.mubr.bf16.mxu0 0
  %2771 = vmatmul.mubr.bf16.gmra.mrb[0].mxu0 %v2736
  %v2772 = vpop.f32.mrb[0].mxu0
  %v2773 = vadd.f32 0.0, %v2772
  %v2774 = vpop.f32.mrb[0].mxu0
  %v2775 = vpop.f32.mrb[0].mxu0
  %v2776 = vpop.f32.mrb[0].mxu0
  %2777 = vdwg.mxu0
  %v2778 = vadd.f32 %v2730, %v2773
  %v2779 = vxor.u32 %v2778, 2147483648
  %v2780 = vmul.f32 %v2779, 1.442695
  %v2781 = vpow.pop %v2780
  %v2782 = vadd.f32 %v2781, 1.0
  %v2783 = vrcp.pop %v2782
  %v2784 = vmul.f32 1.0, %v2783
  %v2785 = vtanh.pop %v2778
  %v2786 = vmul.f32 %v2784, %v2718
  %2788 = vrot.lane.b32.xlu0 %v2785, 64
  %v2789 = vpop.permute.xlu0 %2788
  %v2791 = vmul.f32 %v2784, %v2789
  %2793 = vrot.lane.b32.xlu0 %v2791, 32
  %v2794 = vpop.permute.xlu0 %2793
  %v2796 = vadd.f32 %v2786, %v2794
  %v2797 = vtanh.pop %v2796
  %2799 = vrot.lane.b32.xlu0 %v2797, 64
  %v2800 = vpop.permute.xlu0 %2799
  %v2802 = vmul.f32 %v2784, %v2800
  %2804 = vrot.lane.b32.xlu0 %v2802, 32
  %v2805 = vpop.permute.xlu0 %2804
  %2807 = vst.msk [vmem:[%s530] sm:$0xff] %vm120, %v2805
  %v2808 = vld [vmem:[%s532] sm:$0xff]
  %v2809 = vpack.c.bf16 %v2802, %v2802
  %2811 = vrot.lane.b32.xlu0 %v2809, 32
  %v2812 = vpop.permute.xlu0 %2811
  %v2814 = vsel %vm120, %v2812, 0
  %2816 = vmatprep.subr.bf16.mxu0 0
  %2817 = vmatpush1.bf16.msra.mxu0 %v2500
  %2818 = vmatprep.subr.bf16.mxu0 0
  %2819 = vmatpush1.bf16.msra.mxu0 %v2501
  %2820 = vmatprep.subr.bf16.mxu0 0
  %2821 = vmatpush1.bf16.msra.mxu0 0
  %2822 = vmatprep.subr.bf16.mxu0 0
  %2823 = vmatpush1.bf16.msra.mxu0 0
  %2824 = vmatprep.subr.bf16.mxu0 0
  %2825 = vmatpush1.bf16.msra.mxu0 0
  %2826 = vmatprep.subr.bf16.mxu0 0
  %2827 = vmatpush1.bf16.msra.mxu0 0
  %2828 = vmatprep.subr.bf16.mxu0 0
  %2829 = vmatpush1.bf16.msra.mxu0 0
  %2830 = vmatprep.subr.bf16.mxu0 0
  %2831 = vmatpush1.bf16.msra.mxu0 0
  %2832 = vmatprep.subr.bf16.mxu0 0
  %2833 = vmatpush1.bf16.msra.mxu0 0
  %2834 = vmatprep.subr.bf16.mxu0 0
  %2835 = vmatpush1.bf16.msra.mxu0 0
  %2836 = vmatprep.subr.bf16.mxu0 0
  %2837 = vmatpush1.bf16.msra.mxu0 0
  %2838 = vmatprep.subr.bf16.mxu0 0
  %2839 = vmatpush1.bf16.msra.mxu0 0
  %2840 = vmatprep.subr.bf16.mxu0 0
  %2841 = vmatpush1.bf16.msra.mxu0 0
  %2842 = vmatprep.subr.bf16.mxu0 0
  %2843 = vmatpush1.bf16.msra.mxu0 0
  %2844 = vmatprep.subr.bf16.mxu0 0
  %2845 = vmatpush1.bf16.msra.mxu0 0
  %2846 = vmatprep.subr.bf16.mxu0 0
  %2847 = vmatpush1.bf16.msra.mxu0 0
  %2848 = vmatprep.mubr.bf16.mxu0 0
  %2849 = vmatmul.mubr.bf16.gmra.mrb[0].mxu0 %v2814
  %v2850 = vpop.f32.mrb[0].mxu0
  %v2851 = vadd.f32 0.0, %v2850
  %v2852 = vpop.f32.mrb[0].mxu0
  %v2853 = vpop.f32.mrb[0].mxu0
  %v2854 = vpop.f32.mrb[0].mxu0
  %2855 = vdwg.mxu0
  %v2856 = vadd.f32 %v2808, %v2851
  %v2857 = vxor.u32 %v2856, 2147483648
  %v2858 = vmul.f32 %v2857, 1.442695
  %v2859 = vpow.pop %v2858
  %v2860 = vadd.f32 %v2859, 1.0
  %v2861 = vrcp.pop %v2860
  %v2862 = vmul.f32 1.0, %v2861
  %v2863 = vtanh.pop %v2856
  %v2864 = vmul.f32 %v2862, %v2796
  %2866 = vrot.lane.b32.xlu0 %v2863, 64
  %v2867 = vpop.permute.xlu0 %2866
  %v2869 = vmul.f32 %v2862, %v2867
  %2871 = vrot.lane.b32.xlu0 %v2869, 32
  %v2872 = vpop.permute.xlu0 %2871
  %v2874 = vadd.f32 %v2864, %v2872
  %v2875 = vtanh.pop %v2874
  %2877 = vrot.lane.b32.xlu0 %v2875, 64
  %v2878 = vpop.permute.xlu0 %2877
  %v2880 = vmul.f32 %v2862, %v2878
  %2882 = vrot.lane.b32.xlu0 %v2880, 32
  %v2883 = vpop.permute.xlu0 %2882
  %2885 = vst.msk [vmem:[%s610] sm:$0xff] %vm120, %v2883
  %v2886 = vld [vmem:[%s612] sm:$0xff]
  %v2887 = vpack.c.bf16 %v2880, %v2880
  %2889 = vrot.lane.b32.xlu0 %v2887, 32
  %v2890 = vpop.permute.xlu0 %2889
  %v2892 = vsel %vm120, %v2890, 0
  %2894 = vmatprep.subr.bf16.mxu0 0
  %2895 = vmatpush1.bf16.msra.mxu0 %v2500
  %2896 = vmatprep.subr.bf16.mxu0 0
  %2897 = vmatpush1.bf16.msra.mxu0 %v2501
  %2898 = vmatprep.subr.bf16.mxu0 0
  %2899 = vmatpush1.bf16.msra.mxu0 0
  %2900 = vmatprep.subr.bf16.mxu0 0
  %2901 = vmatpush1.bf16.msra.mxu0 0
  %2902 = vmatprep.subr.bf16.mxu0 0
  %2903 = vmatpush1.bf16.msra.mxu0 0
  %2904 = vmatprep.subr.bf16.mxu0 0
  %2905 = vmatpush1.bf16.msra.mxu0 0
  %2906 = vmatprep.subr.bf16.mxu0 0
  %2907 = vmatpush1.bf16.msra.mxu0 0
  %2908 = vmatprep.subr.bf16.mxu0 0
  %2909 = vmatpush1.bf16.msra.mxu0 0
  %2910 = vmatprep.subr.bf16.mxu0 0
  %2911 = vmatpush1.bf16.msra.mxu0 0
  %2912 = vmatprep.subr.bf16.mxu0 0
  %2913 = vmatpush1.bf16.msra.mxu0 0
  %2914 = vmatprep.subr.bf16.mxu0 0
  %2915 = vmatpush1.bf16.msra.mxu0 0
  %2916 = vmatprep.subr.bf16.mxu0 0
  %2917 = vmatpush1.bf16.msra.mxu0 0
  %2918 = vmatprep.subr.bf16.mxu0 0
  %2919 = vmatpush1.bf16.msra.mxu0 0
  %2920 = vmatprep.subr.bf16.mxu0 0
  %2921 = vmatpush1.bf16.msra.mxu0 0
  %2922 = vmatprep.subr.bf16.mxu0 0
  %2923 = vmatpush1.bf16.msra.mxu0 0
  %2924 = vmatprep.subr.bf16.mxu0 0
  %2925 = vmatpush1.bf16.msra.mxu0 0
  %2926 = vmatprep.mubr.bf16.mxu0 0
  %2927 = vmatmul.mubr.bf16.gmra.mrb[0].mxu0 %v2892
  %v2928 = vpop.f32.mrb[0].mxu0
  %v2929 = vadd.f32 0.0, %v2928
  %v2930 = vpop.f32.mrb[0].mxu0
  %v2931 = vpop.f32.mrb[0].mxu0
  %v2932 = vpop.f32.mrb[0].mxu0
  %2933 = vdwg.mxu0
  %v2934 = vadd.f32 %v2886, %v2929
  %v2935 = vxor.u32 %v2934, 2147483648
  %v2936 = vmul.f32 %v2935, 1.442695
  %v2937 = vpow.pop %v2936
  %v2938 = vadd.f32 %v2937, 1.0
  %v2939 = vrcp.pop %v2938
  %v2940 = vmul.f32 1.0, %v2939
  %v2941 = vtanh.pop %v2934
  %v2942 = vmul.f32 %v2940, %v2874
  %2944 = vrot.lane.b32.xlu0 %v2941, 64
  %v2945 = vpop.permute.xlu0 %2944
  %v2947 = vmul.f32 %v2940, %v2945
  %2949 = vrot.lane.b32.xlu0 %v2947, 32
  %v2950 = vpop.permute.xlu0 %2949
  %v2952 = vadd.f32 %v2942, %v2950
  %v2953 = vtanh.pop %v2952
  %2955 = vrot.lane.b32.xlu0 %v2953, 64
  %v2956 = vpop.permute.xlu0 %2955
  %v2958 = vmul.f32 %v2940, %v2956
  %2960 = vrot.lane.b32.xlu0 %v2958, 32
  %v2961 = vpop.permute.xlu0 %2960
  %2963 = vst.msk [vmem:[%s690] sm:$0xff] %vm120, %v2961
  %v2964 = vld [vmem:[%s692] sm:$0xff]
  %v2965 = vpack.c.bf16 %v2958, %v2958
  %2967 = vrot.lane.b32.xlu0 %v2965, 32
  %v2968 = vpop.permute.xlu0 %2967
  %v2970 = vsel %vm120, %v2968, 0
  %2972 = vmatprep.subr.bf16.mxu0 0
  %2973 = vmatpush1.bf16.msra.mxu0 %v2500
  %2974 = vmatprep.subr.bf16.mxu0 0
  %2975 = vmatpush1.bf16.msra.mxu0 %v2501
  %2976 = vmatprep.subr.bf16.mxu0 0
  %2977 = vmatpush1.bf16.msra.mxu0 0
  %2978 = vmatprep.subr.bf16.mxu0 0
  %2979 = vmatpush1.bf16.msra.mxu0 0
  %2980 = vmatprep.subr.bf16.mxu0 0
  %2981 = vmatpush1.bf16.msra.mxu0 0
  %2982 = vmatprep.subr.bf16.mxu0 0
  %2983 = vmatpush1.bf16.msra.mxu0 0
  %2984 = vmatprep.subr.bf16.mxu0 0
  %2985 = vmatpush1.bf16.msra.mxu0 0
  %2986 = vmatprep.subr.bf16.mxu0 0
  %2987 = vmatpush1.bf16.msra.mxu0 0
  %2988 = vmatprep.subr.bf16.mxu0 0
  %2989 = vmatpush1.bf16.msra.mxu0 0
  %2990 = vmatprep.subr.bf16.mxu0 0
  %2991 = vmatpush1.bf16.msra.mxu0 0
  %2992 = vmatprep.subr.bf16.mxu0 0
  %2993 = vmatpush1.bf16.msra.mxu0 0
  %2994 = vmatprep.subr.bf16.mxu0 0
  %2995 = vmatpush1.bf16.msra.mxu0 0
  %2996 = vmatprep.subr.bf16.mxu0 0
  %2997 = vmatpush1.bf16.msra.mxu0 0
  %2998 = vmatprep.subr.bf16.mxu0 0
  %2999 = vmatpush1.bf16.msra.mxu0 0
  %3000 = vmatprep.subr.bf16.mxu0 0
  %3001 = vmatpush1.bf16.msra.mxu0 0
  %3002 = vmatprep.subr.bf16.mxu0 0
  %3003 = vmatpush1.bf16.msra.mxu0 0
  %3004 = vmatprep.mubr.bf16.mxu0 0
  %3005 = vmatmul.mubr.bf16.gmra.mrb[0].mxu0 %v2970
  %v3006 = vpop.f32.mrb[0].mxu0
  %v3007 = vadd.f32 0.0, %v3006
  %v3008 = vpop.f32.mrb[0].mxu0
  %v3009 = vpop.f32.mrb[0].mxu0
  %v3010 = vpop.f32.mrb[0].mxu0
  %3011 = vdwg.mxu0
  %v3012 = vadd.f32 %v2964, %v3007
  %v3013 = vxor.u32 %v3012, 2147483648
  %v3014 = vmul.f32 %v3013, 1.442695
  %v3015 = vpow.pop %v3014
  %v3016 = vadd.f32 %v3015, 1.0
  %v3017 = vrcp.pop %v3016
  %v3018 = vmul.f32 1.0, %v3017
  %v3019 = vtanh.pop %v3012
  %v3020 = vmul.f32 %v3018, %v2952
  %3022 = vrot.lane.b32.xlu0 %v3019, 64
  %v3023 = vpop.permute.xlu0 %3022
  %v3025 = vmul.f32 %v3018, %v3023
  %3027 = vrot.lane.b32.xlu0 %v3025, 32
  %v3028 = vpop.permute.xlu0 %3027
  %v3030 = vadd.f32 %v3020, %v3028
  %v3031 = vtanh.pop %v3030
  %3033 = vrot.lane.b32.xlu0 %v3031, 64
  %v3034 = vpop.permute.xlu0 %3033
  %v3036 = vmul.f32 %v3018, %v3034
  %3038 = vrot.lane.b32.xlu0 %v3036, 32
  %v3039 = vpop.permute.xlu0 %3038
  %3041 = vst.msk [vmem:[%s770] sm:$0xff] %vm120, %v3039
  %v3042 = vld [vmem:[%s772] sm:$0xff]
  %v3043 = vpack.c.bf16 %v3036, %v3036
  %3045 = vrot.lane.b32.xlu0 %v3043, 32
  %v3046 = vpop.permute.xlu0 %3045
  %v3048 = vsel %vm120, %v3046, 0
  %3050 = vmatprep.subr.bf16.mxu0 0
  %3051 = vmatpush1.bf16.msra.mxu0 %v2500
  %3052 = vmatprep.subr.bf16.mxu0 0
  %3053 = vmatpush1.bf16.msra.mxu0 %v2501
  %3054 = vmatprep.subr.bf16.mxu0 0
  %3055 = vmatpush1.bf16.msra.mxu0 0
  %3056 = vmatprep.subr.bf16.mxu0 0
  %3057 = vmatpush1.bf16.msra.mxu0 0
  %3058 = vmatprep.subr.bf16.mxu0 0
  %3059 = vmatpush1.bf16.msra.mxu0 0
  %3060 = vmatprep.subr.bf16.mxu0 0
  %3061 = vmatpush1.bf16.msra.mxu0 0
  %3062 = vmatprep.subr.bf16.mxu0 0
  %3063 = vmatpush1.bf16.msra.mxu0 0
  %3064 = vmatprep.subr.bf16.mxu0 0
  %3065 = vmatpush1.bf16.msra.mxu0 0
  %3066 = vmatprep.subr.bf16.mxu0 0
  %3067 = vmatpush1.bf16.msra.mxu0 0
  %3068 = vmatprep.subr.bf16.mxu0 0
  %3069 = vmatpush1.bf16.msra.mxu0 0
  %3070 = vmatprep.subr.bf16.mxu0 0
  %3071 = vmatpush1.bf16.msra.mxu0 0
  %3072 = vmatprep.subr.bf16.mxu0 0
  %3073 = vmatpush1.bf16.msra.mxu0 0
  %3074 = vmatprep.subr.bf16.mxu0 0
  %3075 = vmatpush1.bf16.msra.mxu0 0
  %3076 = vmatprep.subr.bf16.mxu0 0
  %3077 = vmatpush1.bf16.msra.mxu0 0
  %3078 = vmatprep.subr.bf16.mxu0 0
  %3079 = vmatpush1.bf16.msra.mxu0 0
  %3080 = vmatprep.subr.bf16.mxu0 0
  %3081 = vmatpush1.bf16.msra.mxu0 0
  %3082 = vmatprep.mubr.bf16.mxu0 0
  %3083 = vmatmul.mubr.bf16.gmra.mrb[0].mxu0 %v3048
  %v3084 = vpop.f32.mrb[0].mxu0
  %v3085 = vadd.f32 0.0, %v3084
  %v3086 = vpop.f32.mrb[0].mxu0
  %v3087 = vpop.f32.mrb[0].mxu0
  %v3088 = vpop.f32.mrb[0].mxu0
  %3089 = vdwg.mxu0
  %v3090 = vadd.f32 %v3042, %v3085
  %v3091 = vxor.u32 %v3090, 2147483648
  %v3092 = vmul.f32 %v3091, 1.442695
  %v3093 = vpow.pop %v3092
  %v3094 = vadd.f32 %v3093, 1.0
  %v3095 = vrcp.pop %v3094
  %v3096 = vmul.f32 1.0, %v3095
  %v3097 = vtanh.pop %v3090
  %v3098 = vmul.f32 %v3096, %v3030
  %3100 = vrot.lane.b32.xlu0 %v3097, 64
  %v3101 = vpop.permute.xlu0 %3100
  %v3103 = vmul.f32 %v3096, %v3101
  %3105 = vrot.lane.b32.xlu0 %v3103, 32
  %v3106 = vpop.permute.xlu0 %3105
  %v3108 = vadd.f32 %v3098, %v3106
  %v3109 = vtanh.pop %v3108
  %3111 = vrot.lane.b32.xlu0 %v3109, 64
  %v3112 = vpop.permute.xlu0 %3111
  %v3114 = vmul.f32 %v3096, %v3112
  %3116 = vrot.lane.b32.xlu0 %v3114, 32
  %v3117 = vpop.permute.xlu0 %3116
  %3119 = vst.msk [vmem:[%s850] sm:$0xff] %vm120, %v3117
  %s3120 = scalar_lea.vmem %s1, 64
  %v3121 = vld [vmem:[%s3120] sm:$0xf]
  %v3122 = vld [vmem:[%s3120 + $0x4] sm:$0xf]
  %v3123 = vld [vmem:[%s3120 + $0x8] sm:$0xf]
  %v3124 = vld [vmem:[%s3120 + $0xc] sm:$0xf]
  %s3125 = scalar_lea.vmem %s2, 64
  %v3126 = vld [vmem:[%s3125] sm:$0xf]
  %v3127 = vld [vmem:[%s3125 + $0x4] sm:$0xf]
  %v3128 = vld [vmem:[%s3125 + $0x8] sm:$0xf]
  %v3129 = vld [vmem:[%s3125 + $0xc] sm:$0xf]
  %s3130 = scalar_lea.vmem %s3, 4
  %v3131 = vld [vmem:[%s3130] sm:$0x1]
  %v3132 = vld [vmem:[#allocation2] sm:$0xff]
  %v3133 = vld [vmem:[#allocation2 + $0x8] sm:$0xff]
  %v3134 = vld [vmem:[#allocation2 + $0x10] sm:$0xff]
  %v3135 = vld [vmem:[#allocation2 + $0x18] sm:$0xff]
  %v3136 = vld [vmem:[#allocation2 + $0x20] sm:$0xff]
  %v3137 = vld [vmem:[#allocation2 + $0x28] sm:$0xff]
  %v3138 = vld [vmem:[#allocation2 + $0x30] sm:$0xff]
  %v3139 = vld [vmem:[#allocation2 + $0x38] sm:$0xff]
  %v3140 = vpack.c.bf16 %v3133, %v3132
  %v3141 = vpack.c.bf16 %v3135, %v3134
  %v3142 = vpack.c.bf16 %v3137, %v3136
  %v3143 = vpack.c.bf16 %v3139, %v3138
  %v3145 = vlaneseq
  %v3146 = vshrl.u32 %v3145, 7
  %v3147 = vsub.s32 0, %v3146
  %v3148 = vrot.slane %v3131, %v3147
  %v3154 = vunpack.c.l.b16 %v3121
  %v3155 = vunpack.c.l.b16 %v3122
  %v3156 = vunpack.c.l.b16 %v3123
  %v3157 = vunpack.c.l.b16 %v3124
  %v3158 = vpack.c.b16 %v3155, %v3154
  %v3159 = vpack.c.b16 %v3157, %v3156
  %v3163 = vsel %vm120, %v3140, 0
  %v3166 = vsel %vm120, %v3141, 0
  %v3169 = vsel %vm120, %v3142, 0
  %v3172 = vsel %vm120, %v3143, 0
  %3174 = vmatprep.subr.bf16.mxu0 0
  %3175 = vmatpush1.bf16.msra.mxu0 %v3158
  %3176 = vmatprep.subr.bf16.mxu0 0
  %3177 = vmatpush1.bf16.msra.mxu0 %v3159
  %3178 = vmatprep.subr.bf16.mxu0 0
  %3179 = vmatpush1.bf16.msra.mxu0 0
  %3180 = vmatprep.subr.bf16.mxu0 0
  %3181 = vmatpush1.bf16.msra.mxu0 0
  %3182 = vmatprep.subr.bf16.mxu0 0
  %3183 = vmatpush1.bf16.msra.mxu0 0
  %3184 = vmatprep.subr.bf16.mxu0 0
  %3185 = vmatpush1.bf16.msra.mxu0 0
  %3186 = vmatprep.subr.bf16.mxu0 0
  %3187 = vmatpush1.bf16.msra.mxu0 0
  %3188 = vmatprep.subr.bf16.mxu0 0
  %3189 = vmatpush1.bf16.msra.mxu0 0
  %3190 = vmatprep.subr.bf16.mxu0 0
  %3191 = vmatpush1.bf16.msra.mxu0 0
  %3192 = vmatprep.subr.bf16.mxu0 0
  %3193 = vmatpush1.bf16.msra.mxu0 0
  %3194 = vmatprep.subr.bf16.mxu0 0
  %3195 = vmatpush1.bf16.msra.mxu0 0
  %3196 = vmatprep.subr.bf16.mxu0 0
  %3197 = vmatpush1.bf16.msra.mxu0 0
  %3198 = vmatprep.subr.bf16.mxu0 0
  %3199 = vmatpush1.bf16.msra.mxu0 0
  %3200 = vmatprep.subr.bf16.mxu0 0
  %3201 = vmatpush1.bf16.msra.mxu0 0
  %3202 = vmatprep.subr.bf16.mxu0 0
  %3203 = vmatpush1.bf16.msra.mxu0 0
  %3204 = vmatprep.subr.bf16.mxu0 0
  %3205 = vmatpush1.bf16.msra.mxu0 0
  %3206 = vmatprep.mubr.bf16.mxu0 0
  %3207 = vmatmul.mubr.bf16.gmra.mrb[0].mxu0 %v3163
  %v3208 = vpop.f32.mrb[0].mxu0
  %v3209 = vadd.f32 %v3148, %v3208
  %v3210 = vpop.f32.mrb[0].mxu0
  %v3211 = vpop.f32.mrb[0].mxu0
  %v3212 = vadd.f32 %v3148, %v3211
  %v3213 = vpop.f32.mrb[0].mxu0
  %3214 = vmatprep.mubr.bf16.mxu0 0
  %3215 = vmatmul.mubr.bf16.gmra.mrb[0].mxu0 %v3166
  %v3216 = vpop.f32.mrb[0].mxu0
  %v3217 = vadd.f32 %v3148, %v3216
  %v3218 = vpop.f32.mrb[0].mxu0
  %v3219 = vpop.f32.mrb[0].mxu0
  %v3220 = vadd.f32 %v3148, %v3219
  %v3221 = vpop.f32.mrb[0].mxu0
  %3222 = vmatprep.mubr.bf16.mxu0 0
  %3223 = vmatmul.mubr.bf16.gmra.mrb[0].mxu0 %v3169
  %v3224 = vpop.f32.mrb[0].mxu0
  %v3225 = vadd.f32 %v3148, %v3224
  %v3226 = vpop.f32.mrb[0].mxu0
  %v3227 = vpop.f32.mrb[0].mxu0
  %v3228 = vadd.f32 %v3148, %v3227
  %v3229 = vpop.f32.mrb[0].mxu0
  %3230 = vmatprep.mubr.bf16.mxu0 0
  %3231 = vmatmul.mubr.bf16.gmra.mrb[0].mxu0 %v3172
  %v3232 = vpop.f32.mrb[0].mxu0
  %v3233 = vadd.f32 %v3148, %v3232
  %v3234 = vpop.f32.mrb[0].mxu0
  %v3235 = vpop.f32.mrb[0].mxu0
  %v3236 = vadd.f32 %v3148, %v3235
  %v3237 = vpop.f32.mrb[0].mxu0
  %3238 = vdwg.mxu0
  %3239 = vst [vmem:[#allocation3] sm:$0xff] %v3209
  %3240 = vst [vmem:[#allocation3 + $0x8] sm:$0xff] %v3212
  %3241 = vst [vmem:[#allocation3 + $0x10] sm:$0xff] %v3217
  %3242 = vst [vmem:[#allocation3 + $0x18] sm:$0xff] %v3220
  %3243 = vst [vmem:[#allocation3 + $0x20] sm:$0xff] %v3225
  %3244 = vst [vmem:[#allocation3 + $0x28] sm:$0xff] %v3228
  %3245 = vst [vmem:[#allocation3 + $0x30] sm:$0xff] %v3233
  %3246 = vst [vmem:[#allocation3 + $0x38] sm:$0xff] %v3236
  %v3247 = vld [vmem:[#allocation3] sm:$0xff]
  %v3252 = vunpack.c.l.b16 %v3126
  %v3253 = vunpack.c.l.b16 %v3127
  %v3254 = vunpack.c.l.b16 %v3128
  %v3255 = vunpack.c.l.b16 %v3129
  %v3256 = vpack.c.b16 %v3253, %v3252
  %v3257 = vpack.c.b16 %v3255, %v3254
  %3260 = vmatprep.subr.bf16.mxu0 0
  %3261 = vmatpush1.bf16.msra.mxu0 %v3256
  %3262 = vmatprep.subr.bf16.mxu0 0
  %3263 = vmatpush1.bf16.msra.mxu0 %v3257
  %3264 = vmatprep.subr.bf16.mxu0 0
  %3265 = vmatpush1.bf16.msra.mxu0 0
  %3266 = vmatprep.subr.bf16.mxu0 0
  %3267 = vmatpush1.bf16.msra.mxu0 0
  %3268 = vmatprep.subr.bf16.mxu0 0
  %3269 = vmatpush1.bf16.msra.mxu0 0
  %3270 = vmatprep.subr.bf16.mxu0 0
  %3271 = vmatpush1.bf16.msra.mxu0 0
  %3272 = vmatprep.subr.bf16.mxu0 0
  %3273 = vmatpush1.bf16.msra.mxu0 0
  %3274 = vmatprep.subr.bf16.mxu0 0
  %3275 = vmatpush1.bf16.msra.mxu0 0
  %3276 = vmatprep.subr.bf16.mxu0 0
  %3277 = vmatpush1.bf16.msra.mxu0 0
  %3278 = vmatprep.subr.bf16.mxu0 0
  %3279 = vmatpush1.bf16.msra.mxu0 0
  %3280 = vmatprep.subr.bf16.mxu0 0
  %3281 = vmatpush1.bf16.msra.mxu0 0
  %3282 = vmatprep.subr.bf16.mxu0 0
  %3283 = vmatpush1.bf16.msra.mxu0 0
  %3284 = vmatprep.subr.bf16.mxu0 0
  %3285 = vmatpush1.bf16.msra.mxu0 0
  %3286 = vmatprep.subr.bf16.mxu0 0
  %3287 = vmatpush1.bf16.msra.mxu0 0
  %3288 = vmatprep.subr.bf16.mxu0 0
  %3289 = vmatpush1.bf16.msra.mxu0 0
  %3290 = vmatprep.subr.bf16.mxu0 0
  %3291 = vmatpush1.bf16.msra.mxu0 0
  %3292 = vmatprep.mubr.bf16.mxu0 0
  %3293 = vmatmul.mubr.bf16.gmra.mrb[0].mxu0 %v220
  %v3294 = vpop.f32.mrb[0].mxu0
  %v3295 = vadd.f32 0.0, %v3294
  %v3296 = vpop.f32.mrb[0].mxu0
  %v3297 = vpop.f32.mrb[0].mxu0
  %v3298 = vpop.f32.mrb[0].mxu0
  %3299 = vdwg.mxu0
  %v3300 = vadd.f32 %v3247, %v3295
  %v3301 = vxor.u32 %v3300, 2147483648
  %v3302 = vmul.f32 %v3301, 1.442695
  %v3303 = vpow.pop %v3302
  %v3304 = vadd.f32 %v3303, 1.0
  %v3305 = vrcp.pop %v3304
  %v3306 = vmul.f32 1.0, %v3305
  %v3307 = vtanh.pop %v3300
  %v3308 = vmul.f32 %v3306, 0.0
  %3310 = vrot.lane.b32.xlu0 %v3307, 64
  %v3311 = vpop.permute.xlu0 %3310
  %v3313 = vmul.f32 %v3306, %v3311
  %3315 = vrot.lane.b32.xlu0 %v3313, 32
  %v3316 = vpop.permute.xlu0 %3315
  %v3318 = vadd.f32 %v3308, %v3316
  %v3319 = vtanh.pop %v3318
  %3321 = vrot.lane.b32.xlu0 %v3319, 64
  %v3322 = vpop.permute.xlu0 %3321
  %v3324 = vmul.f32 %v3306, %v3322
  %v3325 = vld [vmem:[%s292] sm:$0xff]
  %v3326 = vpack.c.bf16 %v3324, %v3324
  %3328 = vrot.lane.b32.xlu0 %v3326, 32
  %v3329 = vpop.permute.xlu0 %3328
  %v3331 = vsel %vm120, %v3329, 0
  %3333 = vmatprep.subr.bf16.mxu0 0
  %3334 = vmatpush1.bf16.msra.mxu0 %v3256
  %3335 = vmatprep.subr.bf16.mxu0 0
  %3336 = vmatpush1.bf16.msra.mxu0 %v3257
  %3337 = vmatprep.subr.bf16.mxu0 0
  %3338 = vmatpush1.bf16.msra.mxu0 0
  %3339 = vmatprep.subr.bf16.mxu0 0
  %3340 = vmatpush1.bf16.msra.mxu0 0
  %3341 = vmatprep.subr.bf16.mxu0 0
  %3342 = vmatpush1.bf16.msra.mxu0 0
  %3343 = vmatprep.subr.bf16.mxu0 0
  %3344 = vmatpush1.bf16.msra.mxu0 0
  %3345 = vmatprep.subr.bf16.mxu0 0
  %3346 = vmatpush1.bf16.msra.mxu0 0
  %3347 = vmatprep.subr.bf16.mxu0 0
  %3348 = vmatpush1.bf16.msra.mxu0 0
  %3349 = vmatprep.subr.bf16.mxu0 0
  %3350 = vmatpush1.bf16.msra.mxu0 0
  %3351 = vmatprep.subr.bf16.mxu0 0
  %3352 = vmatpush1.bf16.msra.mxu0 0
  %3353 = vmatprep.subr.bf16.mxu0 0
  %3354 = vmatpush1.bf16.msra.mxu0 0
  %3355 = vmatprep.subr.bf16.mxu0 0
  %3356 = vmatpush1.bf16.msra.mxu0 0
  %3357 = vmatprep.subr.bf16.mxu0 0
  %3358 = vmatpush1.bf16.msra.mxu0 0
  %3359 = vmatprep.subr.bf16.mxu0 0
  %3360 = vmatpush1.bf16.msra.mxu0 0
  %3361 = vmatprep.subr.bf16.mxu0 0
  %3362 = vmatpush1.bf16.msra.mxu0 0
  %3363 = vmatprep.subr.bf16.mxu0 0
  %3364 = vmatpush1.bf16.msra.mxu0 0
  %3365 = vmatprep.mubr.bf16.mxu0 0
  %3366 = vmatmul.mubr.bf16.gmra.mrb[0].mxu0 %v3331
  %v3367 = vpop.f32.mrb[0].mxu0
  %v3368 = vadd.f32 0.0, %v3367
  %v3369 = vpop.f32.mrb[0].mxu0
  %v3370 = vpop.f32.mrb[0].mxu0
  %v3371 = vpop.f32.mrb[0].mxu0
  %3372 = vdwg.mxu0
  %v3373 = vadd.f32 %v3325, %v3368
  %v3374 = vxor.u32 %v3373, 2147483648
  %v3375 = vmul.f32 %v3374, 1.442695
  %v3376 = vpow.pop %v3375
  %v3377 = vadd.f32 %v3376, 1.0
  %v3378 = vrcp.pop %v3377
  %v3379 = vmul.f32 1.0, %v3378
  %v3380 = vtanh.pop %v3373
  %v3381 = vmul.f32 %v3379, %v3318
  %3383 = vrot.lane.b32.xlu0 %v3380, 64
  %v3384 = vpop.permute.xlu0 %3383
  %v3386 = vmul.f32 %v3379, %v3384
  %3388 = vrot.lane.b32.xlu0 %v3386, 32
  %v3389 = vpop.permute.xlu0 %3388
  %v3391 = vadd.f32 %v3381, %v3389
  %v3392 = vtanh.pop %v3391
  %3394 = vrot.lane.b32.xlu0 %v3392, 64
  %v3395 = vpop.permute.xlu0 %3394
  %v3397 = vmul.f32 %v3379, %v3395
  %v3398 = vld [vmem:[%s372] sm:$0xff]
  %v3399 = vpack.c.bf16 %v3397, %v3397
  %3401 = vrot.lane.b32.xlu0 %v3399, 32
  %v3402 = vpop.permute.xlu0 %3401
  %v3404 = vsel %vm120, %v3402, 0
  %3406 = vmatprep.subr.bf16.mxu0 0
  %3407 = vmatpush1.bf16.msra.mxu0 %v3256
  %3408 = vmatprep.subr.bf16.mxu0 0
  %3409 = vmatpush1.bf16.msra.mxu0 %v3257
  %3410 = vmatprep.subr.bf16.mxu0 0
  %3411 = vmatpush1.bf16.msra.mxu0 0
  %3412 = vmatprep.subr.bf16.mxu0 0
  %3413 = vmatpush1.bf16.msra.mxu0 0
  %3414 = vmatprep.subr.bf16.mxu0 0
  %3415 = vmatpush1.bf16.msra.mxu0 0
  %3416 = vmatprep.subr.bf16.mxu0 0
  %3417 = vmatpush1.bf16.msra.mxu0 0
  %3418 = vmatprep.subr.bf16.mxu0 0
  %3419 = vmatpush1.bf16.msra.mxu0 0
  %3420 = vmatprep.subr.bf16.mxu0 0
  %3421 = vmatpush1.bf16.msra.mxu0 0
  %3422 = vmatprep.subr.bf16.mxu0 0
  %3423 = vmatpush1.bf16.msra.mxu0 0
  %3424 = vmatprep.subr.bf16.mxu0 0
  %3425 = vmatpush1.bf16.msra.mxu0 0
  %3426 = vmatprep.subr.bf16.mxu0 0
  %3427 = vmatpush1.bf16.msra.mxu0 0
  %3428 = vmatprep.subr.bf16.mxu0 0
  %3429 = vmatpush1.bf16.msra.mxu0 0
  %3430 = vmatprep.subr.bf16.mxu0 0
  %3431 = vmatpush1.bf16.msra.mxu0 0
  %3432 = vmatprep.subr.bf16.mxu0 0
  %3433 = vmatpush1.bf16.msra.mxu0 0
  %3434 = vmatprep.subr.bf16.mxu0 0
  %3435 = vmatpush1.bf16.msra.mxu0 0
  %3436 = vmatprep.subr.bf16.mxu0 0
  %3437 = vmatpush1.bf16.msra.mxu0 0
  %3438 = vmatprep.mubr.bf16.mxu0 0
  %3439 = vmatmul.mubr.bf16.gmra.mrb[0].mxu0 %v3404
  %v3440 = vpop.f32.mrb[0].mxu0
  %v3441 = vadd.f32 0.0, %v3440
  %v3442 = vpop.f32.mrb[0].mxu0
  %v3443 = vpop.f32.mrb[0].mxu0
  %v3444 = vpop.f32.mrb[0].mxu0
  %3445 = vdwg.mxu0
  %v3446 = vadd.f32 %v3398, %v3441
  %v3447 = vxor.u32 %v3446, 2147483648
  %v3448 = vmul.f32 %v3447, 1.442695
  %v3449 = vpow.pop %v3448
  %v3450 = vadd.f32 %v3449, 1.0
  %v3451 = vrcp.pop %v3450
  %v3452 = vmul.f32 1.0, %v3451
  %v3453 = vtanh.pop %v3446
  %v3454 = vmul.f32 %v3452, %v3391
  %3456 = vrot.lane.b32.xlu0 %v3453, 64
  %v3457 = vpop.permute.xlu0 %3456
  %v3459 = vmul.f32 %v3452, %v3457
  %3461 = vrot.lane.b32.xlu0 %v3459, 32
  %v3462 = vpop.permute.xlu0 %3461
  %v3464 = vadd.f32 %v3454, %v3462
  %v3465 = vtanh.pop %v3464
  %3467 = vrot.lane.b32.xlu0 %v3465, 64
  %v3468 = vpop.permute.xlu0 %3467
  %v3470 = vmul.f32 %v3452, %v3468
  %v3471 = vld [vmem:[%s452] sm:$0xff]
  %v3472 = vpack.c.bf16 %v3470, %v3470
  %3474 = vrot.lane.b32.xlu0 %v3472, 32
  %v3475 = vpop.permute.xlu0 %3474
  %v3477 = vsel %vm120, %v3475, 0
  %3479 = vmatprep.subr.bf16.mxu0 0
  %3480 = vmatpush1.bf16.msra.mxu0 %v3256
  %3481 = vmatprep.subr.bf16.mxu0 0
  %3482 = vmatpush1.bf16.msra.mxu0 %v3257
  %3483 = vmatprep.subr.bf16.mxu0 0
  %3484 = vmatpush1.bf16.msra.mxu0 0
  %3485 = vmatprep.subr.bf16.mxu0 0
  %3486 = vmatpush1.bf16.msra.mxu0 0
  %3487 = vmatprep.subr.bf16.mxu0 0
  %3488 = vmatpush1.bf16.msra.mxu0 0
  %3489 = vmatprep.subr.bf16.mxu0 0
  %3490 = vmatpush1.bf16.msra.mxu0 0
  %3491 = vmatprep.subr.bf16.mxu0 0
  %3492 = vmatpush1.bf16.msra.mxu0 0
  %3493 = vmatprep.subr.bf16.mxu0 0
  %3494 = vmatpush1.bf16.msra.mxu0 0
  %3495 = vmatprep.subr.bf16.mxu0 0
  %3496 = vmatpush1.bf16.msra.mxu0 0
  %3497 = vmatprep.subr.bf16.mxu0 0
  %3498 = vmatpush1.bf16.msra.mxu0 0
  %3499 = vmatprep.subr.bf16.mxu0 0
  %3500 = vmatpush1.bf16.msra.mxu0 0
  %3501 = vmatprep.subr.bf16.mxu0 0
  %3502 = vmatpush1.bf16.msra.mxu0 0
  %3503 = vmatprep.subr.bf16.mxu0 0
  %3504 = vmatpush1.bf16.msra.mxu0 0
  %3505 = vmatprep.subr.bf16.mxu0 0
  %3506 = vmatpush1.bf16.msra.mxu0 0
  %3507 = vmatprep.subr.bf16.mxu0 0
  %3508 = vmatpush1.bf16.msra.mxu0 0
  %3509 = vmatprep.subr.bf16.mxu0 0
  %3510 = vmatpush1.bf16.msra.mxu0 0
  %3511 = vmatprep.mubr.bf16.mxu0 0
  %3512 = vmatmul.mubr.bf16.gmra.mrb[0].mxu0 %v3477
  %v3513 = vpop.f32.mrb[0].mxu0
  %v3514 = vadd.f32 0.0, %v3513
  %v3515 = vpop.f32.mrb[0].mxu0
  %v3516 = vpop.f32.mrb[0].mxu0
  %v3517 = vpop.f32.mrb[0].mxu0
  %3518 = vdwg.mxu0
  %v3519 = vadd.f32 %v3471, %v3514
  %v3520 = vxor.u32 %v3519, 2147483648
  %v3521 = vmul.f32 %v3520, 1.442695
  %v3522 = vpow.pop %v3521
  %v3523 = vadd.f32 %v3522, 1.0
  %v3524 = vrcp.pop %v3523
  %v3525 = vmul.f32 1.0, %v3524
  %v3526 = vtanh.pop %v3519
  %v3527 = vmul.f32 %v3525, %v3464
  %3529 = vrot.lane.b32.xlu0 %v3526, 64
  %v3530 = vpop.permute.xlu0 %3529
  %v3532 = vmul.f32 %v3525, %v3530
  %3534 = vrot.lane.b32.xlu0 %v3532, 32
  %v3535 = vpop.permute.xlu0 %3534
  %v3537 = vadd.f32 %v3527, %v3535
  %v3538 = vtanh.pop %v3537
  %3540 = vrot.lane.b32.xlu0 %v3538, 64
  %v3541 = vpop.permute.xlu0 %3540
  %v3543 = vmul.f32 %v3525, %v3541
  %v3544 = vld [vmem:[%s532] sm:$0xff]
  %v3545 = vpack.c.bf16 %v3543, %v3543
  %3547 = vrot.lane.b32.xlu0 %v3545, 32
  %v3548 = vpop.permute.xlu0 %3547
  %v3550 = vsel %vm120, %v3548, 0
  %3552 = vmatprep.subr.bf16.mxu0 0
  %3553 = vmatpush1.bf16.msra.mxu0 %v3256
  %3554 = vmatprep.subr.bf16.mxu0 0
  %3555 = vmatpush1.bf16.msra.mxu0 %v3257
  %3556 = vmatprep.subr.bf16.mxu0 0
  %3557 = vmatpush1.bf16.msra.mxu0 0
  %3558 = vmatprep.subr.bf16.mxu0 0
  %3559 = vmatpush1.bf16.msra.mxu0 0
  %3560 = vmatprep.subr.bf16.mxu0 0
  %3561 = vmatpush1.bf16.msra.mxu0 0
  %3562 = vmatprep.subr.bf16.mxu0 0
  %3563 = vmatpush1.bf16.msra.mxu0 0
  %3564 = vmatprep.subr.bf16.mxu0 0
  %3565 = vmatpush1.bf16.msra.mxu0 0
  %3566 = vmatprep.subr.bf16.mxu0 0
  %3567 = vmatpush1.bf16.msra.mxu0 0
  %3568 = vmatprep.subr.bf16.mxu0 0
  %3569 = vmatpush1.bf16.msra.mxu0 0
  %3570 = vmatprep.subr.bf16.mxu0 0
  %3571 = vmatpush1.bf16.msra.mxu0 0
  %3572 = vmatprep.subr.bf16.mxu0 0
  %3573 = vmatpush1.bf16.msra.mxu0 0
  %3574 = vmatprep.subr.bf16.mxu0 0
  %3575 = vmatpush1.bf16.msra.mxu0 0
  %3576 = vmatprep.subr.bf16.mxu0 0
  %3577 = vmatpush1.bf16.msra.mxu0 0
  %3578 = vmatprep.subr.bf16.mxu0 0
  %3579 = vmatpush1.bf16.msra.mxu0 0
  %3580 = vmatprep.subr.bf16.mxu0 0
  %3581 = vmatpush1.bf16.msra.mxu0 0
  %3582 = vmatprep.subr.bf16.mxu0 0
  %3583 = vmatpush1.bf16.msra.mxu0 0
  %3584 = vmatprep.mubr.bf16.mxu0 0
  %3585 = vmatmul.mubr.bf16.gmra.mrb[0].mxu0 %v3550
  %v3586 = vpop.f32.mrb[0].mxu0
  %v3587 = vadd.f32 0.0, %v3586
  %v3588 = vpop.f32.mrb[0].mxu0
  %v3589 = vpop.f32.mrb[0].mxu0
  %v3590 = vpop.f32.mrb[0].mxu0
  %3591 = vdwg.mxu0
  %v3592 = vadd.f32 %v3544, %v3587
  %v3593 = vxor.u32 %v3592, 2147483648
  %v3594 = vmul.f32 %v3593, 1.442695
  %v3595 = vpow.pop %v3594
  %v3596 = vadd.f32 %v3595, 1.0
  %v3597 = vrcp.pop %v3596
  %v3598 = vmul.f32 1.0, %v3597
  %v3599 = vtanh.pop %v3592
  %v3600 = vmul.f32 %v3598, %v3537
  %3602 = vrot.lane.b32.xlu0 %v3599, 64
  %v3603 = vpop.permute.xlu0 %3602
  %v3605 = vmul.f32 %v3598, %v3603
  %3607 = vrot.lane.b32.xlu0 %v3605, 32
  %v3608 = vpop.permute.xlu0 %3607
  %v3610 = vadd.f32 %v3600, %v3608
  %v3611 = vtanh.pop %v3610
  %3613 = vrot.lane.b32.xlu0 %v3611, 64
  %v3614 = vpop.permute.xlu0 %3613
  %v3616 = vmul.f32 %v3598, %v3614
  %v3617 = vld [vmem:[%s612] sm:$0xff]
  %v3618 = vpack.c.bf16 %v3616, %v3616
  %3620 = vrot.lane.b32.xlu0 %v3618, 32
  %v3621 = vpop.permute.xlu0 %3620
  %v3623 = vsel %vm120, %v3621, 0
  %3625 = vmatprep.subr.bf16.mxu0 0
  %3626 = vmatpush1.bf16.msra.mxu0 %v3256
  %3627 = vmatprep.subr.bf16.mxu0 0
  %3628 = vmatpush1.bf16.msra.mxu0 %v3257
  %3629 = vmatprep.subr.bf16.mxu0 0
  %3630 = vmatpush1.bf16.msra.mxu0 0
  %3631 = vmatprep.subr.bf16.mxu0 0
  %3632 = vmatpush1.bf16.msra.mxu0 0
  %3633 = vmatprep.subr.bf16.mxu0 0
  %3634 = vmatpush1.bf16.msra.mxu0 0
  %3635 = vmatprep.subr.bf16.mxu0 0
  %3636 = vmatpush1.bf16.msra.mxu0 0
  %3637 = vmatprep.subr.bf16.mxu0 0
  %3638 = vmatpush1.bf16.msra.mxu0 0
  %3639 = vmatprep.subr.bf16.mxu0 0
  %3640 = vmatpush1.bf16.msra.mxu0 0
  %3641 = vmatprep.subr.bf16.mxu0 0
  %3642 = vmatpush1.bf16.msra.mxu0 0
  %3643 = vmatprep.subr.bf16.mxu0 0
  %3644 = vmatpush1.bf16.msra.mxu0 0
  %3645 = vmatprep.subr.bf16.mxu0 0
  %3646 = vmatpush1.bf16.msra.mxu0 0
  %3647 = vmatprep.subr.bf16.mxu0 0
  %3648 = vmatpush1.bf16.msra.mxu0 0
  %3649 = vmatprep.subr.bf16.mxu0 0
  %3650 = vmatpush1.bf16.msra.mxu0 0
  %3651 = vmatprep.subr.bf16.mxu0 0
  %3652 = vmatpush1.bf16.msra.mxu0 0
  %3653 = vmatprep.subr.bf16.mxu0 0
  %3654 = vmatpush1.bf16.msra.mxu0 0
  %3655 = vmatprep.subr.bf16.mxu0 0
  %3656 = vmatpush1.bf16.msra.mxu0 0
  %3657 = vmatprep.mubr.bf16.mxu0 0
  %3658 = vmatmul.mubr.bf16.gmra.mrb[0].mxu0 %v3623
  %v3659 = vpop.f32.mrb[0].mxu0
  %v3660 = vadd.f32 0.0, %v3659
  %v3661 = vpop.f32.mrb[0].mxu0
  %v3662 = vpop.f32.mrb[0].mxu0
  %v3663 = vpop.f32.mrb[0].mxu0
  %3664 = vdwg.mxu0
  %v3665 = vadd.f32 %v3617, %v3660
  %v3666 = vxor.u32 %v3665, 2147483648
  %v3667 = vmul.f32 %v3666, 1.442695
  %v3668 = vpow.pop %v3667
  %v3669 = vadd.f32 %v3668, 1.0
  %v3670 = vrcp.pop %v3669
  %v3671 = vmul.f32 1.0, %v3670
  %v3672 = vtanh.pop %v3665
  %v3673 = vmul.f32 %v3671, %v3610
  %3675 = vrot.lane.b32.xlu0 %v3672, 64
  %v3676 = vpop.permute.xlu0 %3675
  %v3678 = vmul.f32 %v3671, %v3676
  %3680 = vrot.lane.b32.xlu0 %v3678, 32
  %v3681 = vpop.permute.xlu0 %3680
  %v3683 = vadd.f32 %v3673, %v3681
  %v3684 = vtanh.pop %v3683
  %3686 = vrot.lane.b32.xlu0 %v3684, 64
  %v3687 = vpop.permute.xlu0 %3686
  %v3689 = vmul.f32 %v3671, %v3687
  %v3690 = vld [vmem:[%s692] sm:$0xff]
  %v3691 = vpack.c.bf16 %v3689, %v3689
  %3693 = vrot.lane.b32.xlu0 %v3691, 32
  %v3694 = vpop.permute.xlu0 %3693
  %v3696 = vsel %vm120, %v3694, 0
  %3698 = vmatprep.subr.bf16.mxu0 0
  %3699 = vmatpush1.bf16.msra.mxu0 %v3256
  %3700 = vmatprep.subr.bf16.mxu0 0
  %3701 = vmatpush1.bf16.msra.mxu0 %v3257
  %3702 = vmatprep.subr.bf16.mxu0 0
  %3703 = vmatpush1.bf16.msra.mxu0 0
  %3704 = vmatprep.subr.bf16.mxu0 0
  %3705 = vmatpush1.bf16.msra.mxu0 0
  %3706 = vmatprep.subr.bf16.mxu0 0
  %3707 = vmatpush1.bf16.msra.mxu0 0
  %3708 = vmatprep.subr.bf16.mxu0 0
  %3709 = vmatpush1.bf16.msra.mxu0 0
  %3710 = vmatprep.subr.bf16.mxu0 0
  %3711 = vmatpush1.bf16.msra.mxu0 0
  %3712 = vmatprep.subr.bf16.mxu0 0
  %3713 = vmatpush1.bf16.msra.mxu0 0
  %3714 = vmatprep.subr.bf16.mxu0 0
  %3715 = vmatpush1.bf16.msra.mxu0 0
  %3716 = vmatprep.subr.bf16.mxu0 0
  %3717 = vmatpush1.bf16.msra.mxu0 0
  %3718 = vmatprep.subr.bf16.mxu0 0
  %3719 = vmatpush1.bf16.msra.mxu0 0
  %3720 = vmatprep.subr.bf16.mxu0 0
  %3721 = vmatpush1.bf16.msra.mxu0 0
  %3722 = vmatprep.subr.bf16.mxu0 0
  %3723 = vmatpush1.bf16.msra.mxu0 0
  %3724 = vmatprep.subr.bf16.mxu0 0
  %3725 = vmatpush1.bf16.msra.mxu0 0
  %3726 = vmatprep.subr.bf16.mxu0 0
  %3727 = vmatpush1.bf16.msra.mxu0 0
  %3728 = vmatprep.subr.bf16.mxu0 0
  %3729 = vmatpush1.bf16.msra.mxu0 0
  %3730 = vmatprep.mubr.bf16.mxu0 0
  %3731 = vmatmul.mubr.bf16.gmra.mrb[0].mxu0 %v3696
  %v3732 = vpop.f32.mrb[0].mxu0
  %v3733 = vadd.f32 0.0, %v3732
  %v3734 = vpop.f32.mrb[0].mxu0
  %v3735 = vpop.f32.mrb[0].mxu0
  %v3736 = vpop.f32.mrb[0].mxu0
  %3737 = vdwg.mxu0
  %v3738 = vadd.f32 %v3690, %v3733
  %v3739 = vxor.u32 %v3738, 2147483648
  %v3740 = vmul.f32 %v3739, 1.442695
  %v3741 = vpow.pop %v3740
  %v3742 = vadd.f32 %v3741, 1.0
  %v3743 = vrcp.pop %v3742
  %v3744 = vmul.f32 1.0, %v3743
  %v3745 = vtanh.pop %v3738
  %v3746 = vmul.f32 %v3744, %v3683
  %3748 = vrot.lane.b32.xlu0 %v3745, 64
  %v3749 = vpop.permute.xlu0 %3748
  %v3751 = vmul.f32 %v3744, %v3749
  %3753 = vrot.lane.b32.xlu0 %v3751, 32
  %v3754 = vpop.permute.xlu0 %3753
  %v3756 = vadd.f32 %v3746, %v3754
  %v3757 = vtanh.pop %v3756
  %3759 = vrot.lane.b32.xlu0 %v3757, 64
  %v3760 = vpop.permute.xlu0 %3759
  %v3762 = vmul.f32 %v3744, %v3760
  %v3763 = vld [vmem:[%s772] sm:$0xff]
  %v3764 = vpack.c.bf16 %v3762, %v3762
  %3766 = vrot.lane.b32.xlu0 %v3764, 32
  %v3767 = vpop.permute.xlu0 %3766
  %v3769 = vsel %vm120, %v3767, 0
  %3771 = vmatprep.subr.bf16.mxu0 0
  %3772 = vmatpush1.bf16.msra.mxu0 %v3256
  %3773 = vmatprep.subr.bf16.mxu0 0
  %3774 = vmatpush1.bf16.msra.mxu0 %v3257
  %3775 = vmatprep.subr.bf16.mxu0 0
  %3776 = vmatpush1.bf16.msra.mxu0 0
  %3777 = vmatprep.subr.bf16.mxu0 0
  %3778 = vmatpush1.bf16.msra.mxu0 0
  %3779 = vmatprep.subr.bf16.mxu0 0
  %3780 = vmatpush1.bf16.msra.mxu0 0
  %3781 = vmatprep.subr.bf16.mxu0 0
  %3782 = vmatpush1.bf16.msra.mxu0 0
  %3783 = vmatprep.subr.bf16.mxu0 0
  %3784 = vmatpush1.bf16.msra.mxu0 0
  %3785 = vmatprep.subr.bf16.mxu0 0
  %3786 = vmatpush1.bf16.msra.mxu0 0
  %3787 = vmatprep.subr.bf16.mxu0 0
  %3788 = vmatpush1.bf16.msra.mxu0 0
  %3789 = vmatprep.subr.bf16.mxu0 0
  %3790 = vmatpush1.bf16.msra.mxu0 0
  %3791 = vmatprep.subr.bf16.mxu0 0
  %3792 = vmatpush1.bf16.msra.mxu0 0
  %3793 = vmatprep.subr.bf16.mxu0 0
  %3794 = vmatpush1.bf16.msra.mxu0 0
  %3795 = vmatprep.subr.bf16.mxu0 0
  %3796 = vmatpush1.bf16.msra.mxu0 0
  %3797 = vmatprep.subr.bf16.mxu0 0
  %3798 = vmatpush1.bf16.msra.mxu0 0
  %3799 = vmatprep.subr.bf16.mxu0 0
  %3800 = vmatpush1.bf16.msra.mxu0 0
  %3801 = vmatprep.subr.bf16.mxu0 0
  %3802 = vmatpush1.bf16.msra.mxu0 0
  %3803 = vmatprep.mubr.bf16.mxu0 0
  %3804 = vmatmul.mubr.bf16.gmra.mrb[0].mxu0 %v3769
  %v3805 = vpop.f32.mrb[0].mxu0
  %v3806 = vadd.f32 0.0, %v3805
  %v3807 = vpop.f32.mrb[0].mxu0
  %v3808 = vpop.f32.mrb[0].mxu0
  %v3809 = vpop.f32.mrb[0].mxu0
  %3810 = vdwg.mxu0
  %v3811 = vadd.f32 %v3763, %v3806
  %v3812 = vxor.u32 %v3811, 2147483648
  %v3813 = vmul.f32 %v3812, 1.442695
  %v3814 = vpow.pop %v3813
  %v3815 = vadd.f32 %v3814, 1.0
  %v3816 = vrcp.pop %v3815
  %v3817 = vmul.f32 1.0, %v3816
  %v3818 = vtanh.pop %v3811
  %v3819 = vmul.f32 %v3817, %v3756
  %3821 = vrot.lane.b32.xlu0 %v3818, 64
  %v3822 = vpop.permute.xlu0 %3821
  %v3824 = vmul.f32 %v3817, %v3822
  %3826 = vrot.lane.b32.xlu0 %v3824, 32
  %v3827 = vpop.permute.xlu0 %3826
  %v3829 = vadd.f32 %v3819, %v3827
  %v3830 = vtanh.pop %v3829
  %3832 = vrot.lane.b32.xlu0 %v3830, 64
  %v3833 = vpop.permute.xlu0 %3832
  %v3835 = vmul.f32 %v3817, %v3833
  %v3836 = vmul.f32 %v3835, 0.5
  %v3837 = vrcp.pop 1.4142135
  %v3838 = vmul.f32 %v3835, %v3837
  %v3839 = verf.f32.pop %v3838
  %v3840 = vadd.f32 %v3839, 1.0
  %v3841 = vmul.f32 %v3836, %v3840
  %v3842 = vpack.c.bf16 %v3841, %v3841
  %v3843 = vld [vmem:[%s4] sm:$0xf]
  %v3844 = vld [vmem:[%s4 + $0x4] sm:$0xf]
  %v3845 = vld [vmem:[%s4 + $0x8] sm:$0xf]
  %v3846 = vld [vmem:[%s4 + $0xc] sm:$0xf]
  %v3847 = vld [vmem:[%s5] sm:$0x1]
  %v3849 = vlaneseq
  %v3850 = vshrl.u32 %v3849, 7
  %v3851 = vsub.s32 0, %v3850
  %v3852 = vrot.slane %v3847, %v3851
  %3855 = vrot.lane.b32.xlu0 %v3842, 32
  %v3856 = vpop.permute.xlu0 %3855
  %v3861 = vunpack.c.l.b16 %v3843
  %v3862 = vunpack.c.l.b16 %v3844
  %v3863 = vunpack.c.l.b16 %v3845
  %v3864 = vunpack.c.l.b16 %v3846
  %v3865 = vpack.c.b16 %v3862, %v3861
  %v3866 = vpack.c.b16 %v3864, %v3863
  %v3870 = vsel %vm120, %v3856, 0
  %3872 = vmatprep.subr.bf16.mxu0 0
  %3873 = vmatpush1.bf16.msra.mxu0 %v3865
  %3874 = vmatprep.subr.bf16.mxu0 0
  %3875 = vmatpush1.bf16.msra.mxu0 %v3866
  %3876 = vmatprep.subr.bf16.mxu0 0
  %3877 = vmatpush1.bf16.msra.mxu0 0
  %3878 = vmatprep.subr.bf16.mxu0 0
  %3879 = vmatpush1.bf16.msra.mxu0 0
  %3880 = vmatprep.subr.bf16.mxu0 0
  %3881 = vmatpush1.bf16.msra.mxu0 0
  %3882 = vmatprep.subr.bf16.mxu0 0
  %3883 = vmatpush1.bf16.msra.mxu0 0
  %3884 = vmatprep.subr.bf16.mxu0 0
  %3885 = vmatpush1.bf16.msra.mxu0 0
  %3886 = vmatprep.subr.bf16.mxu0 0
  %3887 = vmatpush1.bf16.msra.mxu0 0
  %3888 = vmatprep.subr.bf16.mxu0 0
  %3889 = vmatpush1.bf16.msra.mxu0 0
  %3890 = vmatprep.subr.bf16.mxu0 0
  %3891 = vmatpush1.bf16.msra.mxu0 0
  %3892 = vmatprep.subr.bf16.mxu0 0
  %3893 = vmatpush1.bf16.msra.mxu0 0
  %3894 = vmatprep.subr.bf16.mxu0 0
  %3895 = vmatpush1.bf16.msra.mxu0 0
  %3896 = vmatprep.subr.bf16.mxu0 0
  %3897 = vmatpush1.bf16.msra.mxu0 0
  %3898 = vmatprep.subr.bf16.mxu0 0
  %3899 = vmatpush1.bf16.msra.mxu0 0
  %3900 = vmatprep.subr.bf16.mxu0 0
  %3901 = vmatpush1.bf16.msra.mxu0 0
  %3902 = vmatprep.subr.bf16.mxu0 0
  %3903 = vmatpush1.bf16.msra.mxu0 0
  %3904 = vmatprep.mubr.bf16.mxu0 0
  %3905 = vmatmul.mubr.bf16.gmra.mrb[0].mxu0 %v3870
  %v3906 = vpop.f32.mrb[0].mxu0
  %v3907 = vadd.f32 %v3852, %v3906
  %v3908 = vpop.f32.mrb[0].mxu0
  %v3909 = vpop.f32.mrb[0].mxu0
  %v3910 = vpop.f32.mrb[0].mxu0
  %3911 = vdwg.mxu0
  %3912 = vst [vmem:[%s6] sm:$0xff] %v3907
  // Predicated region
  $region57: #{lstm_forward.1} parent=0 // pred_check
    _
  $region58: #{lstm_forward.1} parent=0 // pred_check_branch
    %3914 = sbr.rel (0) target = $region60
  $region59: #{lstm_forward.1} parent=0 // pred_region
    _
  $region60: #{lstm_forward.1} parent=0 // pred_fallthru
    _
  // Predicated region
  $region61: #{lstm_forward.1} parent=0 // pred_check
    _
  $region62: #{lstm_forward.1} parent=0 // pred_check_branch
    %3916 = sbr.rel (0) target = $region64
  $region63: #{lstm_forward.1} parent=0 // pred_region
    _
  $region64: #{lstm_forward.1} parent=0 // pred_fallthru
    _

</llo_original>
